<compile_context>
chip_gen: v7x
topology: tpu7x:2x2x1
jax: 0.10.0
libtpu: 0.0.40
codegen_flags: <defaults>
</compile_context>

<pallas_src>
import jax
import jax.numpy as jnp
from jax.experimental import pallas as pl
from jax.experimental.pallas import tpu as pltpu

EMB_DIM = 300            # fixed by the torch module (self.embedding_dims = 300)
EMB_PAD = 384            # lane-dense K for the layer-0 input projection
HIDDEN = 32
NUM_LAYERS = 2
BATCH = 2
SEQ = 8
VOCAB_BASE = 50          # number of "provided" embeddings
VOCAB = VOCAB_BASE + 2   # +1 zero row (padding_idx=0) front, +1 rand row appended
VOCAB_PAD = 128          # lane-dense head output; sliced back to VOCAB in wrapper
N_TOK = SEQ * BATCH      # packed length (equal-length sequences, time-major flatten)
NEG_INF = -1e30


# -----------------------------------------------------------------------------
# Fused kernel: skewed 2-layer GRU + (fc1∘fc2∘embᵀ) head + softmax, grid=(1,).
# -----------------------------------------------------------------------------
def _fused_kernel(x_ref, h0_ref,
                  wih0_ref, bih0_ref,
                  wrec_ref, brec_ref,
                  whead_ref, bhead_ref,
                  probs_ref, hfin_ref):
    H = HIDDEN

    def gru_update(gi, gh, h):
        # PyTorch gate order r, z, n;  gh already includes b_hh.
        r = jax.nn.sigmoid(gi[:, 0:H] + gh[:, 0:H])
        z = jax.nn.sigmoid(gi[:, H:2 * H] + gh[:, H:2 * H])
        n = jnp.tanh(gi[:, 2 * H:3 * H] + r * gh[:, 2 * H:3 * H])
        return (1.0 - z) * n + z * h

    # ---- layer 0: one batched (T*B, EMB_PAD) @ (EMB_PAD, 3H) input projection ----
    gi0 = jnp.dot(x_ref[...], wih0_ref[...],
                  preferred_element_type=jnp.float32) + bih0_ref[...]

    w_rec = wrec_ref[...]          # (2H, 9H): [Whh0 | 0 | Wih1] over rows 0:H,
    b_rec = brec_ref[...]          #           [0 | Whh1 | 0  ] over rows H:2H
    h0_all = h0_ref[...]
    h_l0 = h0_all[0:BATCH, :]
    h_l1 = h0_all[BATCH:2 * BATCH, :]

    # ---- skewed recurrence: iteration t runs layer-0 step t and layer-1 step t-1.
    # One (B, 2H) @ (2H, 9H) MXU dispatch per iteration produces gh0, gh1 and
    # gi1[t-1] (layer-1 input gates computed from the *pre-update* h_l0, which
    # is exactly layer-0's output at step t-1).  Hidden state stays in vregs.
    # TODO(synk): inter-layer dropout (p=0.5) omitted -> eval() semantics only.
    hs1 = []
    for t in range(SEQ + 1):                                  # static unrolled
        lhs = jnp.concatenate([h_l0, h_l1], axis=1)           # (B, 2H)
        big = jnp.dot(lhs, w_rec,
                      preferred_element_type=jnp.float32) + b_rec   # (B, 9H)
        gh0 = big[:, 0:3 * H]
        gh1 = big[:, 3 * H:6 * H]
        gi1 = big[:, 6 * H:9 * H]                              # gi for layer-1 step t-1
        if t >= 1:                                             # layer-1 step t-1
            h_l1 = gru_update(gi1, gh1, h_l1)
            hs1.append(h_l1)
        if t < SEQ:                                            # layer-0 step t
            gi0_t = gi0[t * BATCH:(t + 1) * BATCH, :]          # static slice
            h_l0 = gru_update(gi0_t, gh0, h_l0)

    hseq1 = jnp.concatenate(hs1, axis=0)                       # (T*B, H) time-major

    # ---- fused head: single (T*B, H) @ (H, VOCAB_PAD) matmul + exact softmax ----
    logits = jnp.dot(hseq1, whead_ref[...],
                     preferred_element_type=jnp.float32) + bhead_ref[...]
    m = jnp.max(logits, axis=1, keepdims=True)
    p = jnp.exp(logits - m)                    # padded lanes (bias -1e30) -> exp ~ 0
    denom = jnp.sum(p, axis=1, keepdims=True)
    probs_ref[...] = (p / denom).astype(probs_ref.dtype)

    # ---- final hidden states, single store ----
    hfin_ref[...] = jnp.concatenate([h_l0, h_l1], axis=0).astype(hfin_ref.dtype)


def fused_gru_head(x_flat, h0_flat, prep):
    kernel = pl.pallas_call(
        _fused_kernel,
        out_shape=(
            jax.ShapeDtypeStruct((N_TOK, VOCAB_PAD), jnp.float32),
            jax.ShapeDtypeStruct((NUM_LAYERS * BATCH, HIDDEN), jnp.float32),
        ),
        grid_spec=pltpu.PrefetchScalarGridSpec(
            num_scalar_prefetch=0,
            grid=(1,),
            in_specs=[
                pl.BlockSpec((N_TOK, EMB_PAD), lambda i: (0, 0)),              # x (time-major, padded K)
                pl.BlockSpec((NUM_LAYERS * BATCH, HIDDEN), lambda i: (0, 0)),  # h0
                pl.BlockSpec((EMB_PAD, 3 * HIDDEN), lambda i: (0, 0)),         # W_ih0 (fused gates, padded K)
                pl.BlockSpec((1, 3 * HIDDEN), lambda i: (0, 0)),               # b_ih0
                pl.BlockSpec((2 * HIDDEN, 9 * HIDDEN), lambda i: (0, 0)),      # W_rec (block: Whh0|Whh1|Wih1)
                pl.BlockSpec((1, 9 * HIDDEN), lambda i: (0, 0)),               # b_rec (b_hh0|b_hh1|b_ih1)
                pl.BlockSpec((HIDDEN, VOCAB_PAD), lambda i: (0, 0)),           # W_head (fc1∘fc2∘embᵀ)
                pl.BlockSpec((1, VOCAB_PAD), lambda i: (0, 0)),                # b_head
            ],
            out_specs=[
                pl.BlockSpec((N_TOK, VOCAB_PAD), lambda i: (0, 0)),            # softmax probs (padded)
                pl.BlockSpec((NUM_LAYERS * BATCH, HIDDEN), lambda i: (0, 0)),  # final hidden states
            ],
        ),
        compiler_params=pltpu.CompilerParams(
            dimension_semantics=("arbitrary",),
        ),
    )
    return kernel(x_flat, h0_flat,
                  prep["w_ih0"], prep["b_ih0"],
                  prep["w_rec"], prep["b_rec"],
                  prep["w_head"], prep["b_head"])


# -----------------------------------------------------------------------------
# Parameter construction (deterministic, xavier-ish normal; shapes from torch).
# -----------------------------------------------------------------------------
def make_params(key):
    keys = jax.random.split(key, 16)

    def xavier(k, shape):
        fan_in, fan_out = shape[-1], shape[-2]
        std = (2.0 / (fan_in + fan_out)) ** 0.5
        return std * jax.random.normal(k, shape, jnp.float32)

    # Embedding table: row 0 zeros (padding_idx), last row "random" append.
    emb_body = jax.random.normal(keys[0], (VOCAB_BASE + 1, EMB_DIM), jnp.float32)
    embedding = jnp.concatenate([jnp.zeros((1, EMB_DIM), jnp.float32), emb_body], axis=0)

    params = {"embedding": embedding}

    # GRU layers: torch weight_ih_l{l}: (3H, in), weight_hh_l{l}: (3H, H),
    # gate order r, z, n.  Stored here fused & pre-transposed: (in, 3H) / (H, 3H).
    for layer in range(NUM_LAYERS):
        in_dim = EMB_DIM if layer == 0 else HIDDEN
        kw = keys[1 + 4 * layer: 5 + 4 * layer]
        w_ih = xavier(kw[0], (3 * HIDDEN, in_dim))
        w_hh = xavier(kw[1], (3 * HIDDEN, HIDDEN))
        params[f"gru{layer}"] = {
            "w_ih": w_ih.T,                                                   # (in, 3H)
            "w_hh": w_hh.T,                                                   # (H, 3H)
            "b_ih": 0.01 * jax.random.normal(kw[2], (1, 3 * HIDDEN), jnp.float32),
            "b_hh": 0.01 * jax.random.normal(kw[3], (1, 3 * HIDDEN), jnp.float32),
        }

    # fc1: (H, H), fc2: (E, H) in torch; stored transposed for x @ W.
    params["fc1_w"] = xavier(keys[9], (HIDDEN, HIDDEN)).T       # (H, H)  == W1^T
    params["fc1_b"] = 0.01 * jax.random.normal(keys[10], (1, HIDDEN), jnp.float32)
    params["fc2_w"] = xavier(keys[11], (EMB_DIM, HIDDEN)).T     # (H, E)  == W2^T
    params["fc2_b"] = 0.01 * jax.random.normal(keys[12], (1, EMB_DIM), jnp.float32)
    return params


# -----------------------------------------------------------------------------
# One-time inference preparation: head folding, weight fusion, padding.
# (Hoisted out of the per-call forward — parameter-only work.)
# -----------------------------------------------------------------------------
def prepare_inference_params(params):
    H = HIDDEN
    emb = params["embedding"]

    # Algebraic head fusion (no nonlinearity between fc1, fc2, embᵀ):
    #   logits = h @ (W1ᵀ W2ᵀ embᵀ) + (b1 W2ᵀ + b2) embᵀ
    emb_t = emb.T                                                    # (E, V)
    w_mid = params["fc2_w"] @ emb_t                                  # (H, V)
    w_head = params["fc1_w"] @ w_mid                                 # (H, V)
    b_head = params["fc1_b"] @ w_mid + params["fc2_b"] @ emb_t      # (1, V)
    w_head = jnp.pad(w_head, ((0, 0), (0, VOCAB_PAD - VOCAB)))
    b_head = jnp.pad(b_head, ((0, 0), (0, VOCAB_PAD - VOCAB)),
                     constant_values=NEG_INF)

    # Lane-dense K for the layer-0 projection: pad feature dim 300 -> 384 with
    # zeros (padded rows of W_ih0 are zero, so the result is unchanged).
    emb_pad = jnp.pad(emb, ((0, 0), (0, EMB_PAD - EMB_DIM)))
    w_ih0 = jnp.pad(params["gru0"]["w_ih"], ((0, EMB_PAD - EMB_DIM), (0, 0)))

    # Block recurrence weight for the skewed loop: (2H, 9H)
    #   rows 0:H  -> [ W_hh0 | 0     | W_ih1 ]
    #   rows H:2H -> [ 0     | W_hh1 | 0     ]
    w_rec = jnp.zeros((2 * H, 9 * H), jnp.float32)
    w_rec = w_rec.at[0:H, 0:3 * H].set(params["gru0"]["w_hh"])
    w_rec = w_rec.at[H:2 * H, 3 * H:6 * H].set(params["gru1"]["w_hh"])
    w_rec = w_rec.at[0:H, 6 * H:9 * H].set(params["gru1"]["w_ih"])
    b_rec = jnp.concatenate([params["gru0"]["b_hh"],
                             params["gru1"]["b_hh"],
                             params["gru1"]["b_ih"]], axis=1)        # (1, 9H)

    return {
        "embedding_pad": emb_pad,
        "w_ih0": w_ih0,
        "b_ih0": params["gru0"]["b_ih"],
        "w_rec": w_rec,
        "b_rec": b_rec,
        "w_head": w_head,
        "b_head": b_head,
    }


# -----------------------------------------------------------------------------
# Forward pass (mirrors Model.forward; dense batch == PackedSequence with
# equal lengths, so packed `data` order is the time-major flatten).
# -----------------------------------------------------------------------------
@jax.jit
def forward(token_ids, h0, prep):
    # Embedding lookup (glue) + time-major packing; feature dim already padded.
    x = jnp.take(prep["embedding_pad"], token_ids, axis=0)           # (B, T, EMB_PAD)
    x_flat = jnp.transpose(x, (1, 0, 2)).reshape(N_TOK, EMB_PAD)     # (T*B, EMB_PAD)
    h0_flat = h0.reshape(NUM_LAYERS * BATCH, HIDDEN)

    probs_pad, hfin_flat = fused_gru_head(x_flat, h0_flat, prep)

    probs = probs_pad[:, :VOCAB]                                     # (T*B, VOCAB)
    h_final = hfin_flat.reshape(NUM_LAYERS, BATCH, HIDDEN)           # (2, B, H)
    return probs, h_final


if __name__ == "__main__":
    key = jax.random.PRNGKey(0)
    k_param, k_tok, k_h = jax.random.split(key, 3)

    params = make_params(k_param)
    prep = prepare_inference_params(params)                          # one-time
    token_ids = jax.random.randint(k_tok, (BATCH, SEQ), 1, VOCAB, dtype=jnp.int32)
    h0 = jax.random.normal(k_h, (NUM_LAYERS, BATCH, HIDDEN), jnp.float32)

    probs, h_final = forward(token_ids, h0, prep)
    jax.block_until_ready((probs, h_final))

    assert probs.shape == (SEQ * BATCH, VOCAB)
    assert h_final.shape == (NUM_LAYERS, BATCH, HIDDEN)
    assert bool(jnp.all(jnp.isfinite(probs)))
    assert bool(jnp.all(jnp.isfinite(h_final)))
    assert bool(jnp.all(probs >= 0.0))
    # exact softmax divide -> rows sum to 1 tightly
    assert bool(jnp.allclose(jnp.sum(probs, axis=1), 1.0, atol=1e-4))

    print("KERNEL_OK")
</pallas_src>

<mosaic_0001>
module attributes {stable_mosaic.version = 11 : i64} {
  func.func @_fused_kernel(%arg0: i32, %arg1: memref<16x384xf32, #tpu.memory_space<vmem>>, %arg2: memref<4x32xf32, #tpu.memory_space<vmem>>, %arg3: memref<384x96xf32, #tpu.memory_space<vmem>>, %arg4: memref<1x96xf32, #tpu.memory_space<vmem>>, %arg5: memref<64x288xf32, #tpu.memory_space<vmem>>, %arg6: memref<1x288xf32, #tpu.memory_space<vmem>>, %arg7: memref<32x128xf32, #tpu.memory_space<vmem>>, %arg8: memref<1x128xf32, #tpu.memory_space<vmem>>, %arg9: memref<16x128xf32, #tpu.memory_space<vmem>>, %arg10: memref<4x32xf32, #tpu.memory_space<vmem>>) attributes {dimension_semantics = [#tpu.dimension_semantics<arbitrary>], iteration_bounds = array<i64: 1>, scalar_prefetch = 0 : i64, scratch_operands = 0 : i64, tpu.core_type = #tpu.core_type<tc>, window_params = [{pipeline_mode = #tpu.pipeline_mode<synchronous>, transform_indices = @transform_0, window_bounds = array<i64: 16, 384>}, {pipeline_mode = #tpu.pipeline_mode<synchronous>, transform_indices = @transform_1, window_bounds = array<i64: 4, 32>}, {pipeline_mode = #tpu.pipeline_mode<synchronous>, transform_indices = @transform_2, window_bounds = array<i64: 384, 96>}, {pipeline_mode = #tpu.pipeline_mode<synchronous>, transform_indices = @transform_3, window_bounds = array<i64: 1, 96>}, {pipeline_mode = #tpu.pipeline_mode<synchronous>, transform_indices = @transform_4, window_bounds = array<i64: 64, 288>}, {pipeline_mode = #tpu.pipeline_mode<synchronous>, transform_indices = @transform_5, window_bounds = array<i64: 1, 288>}, {pipeline_mode = #tpu.pipeline_mode<synchronous>, transform_indices = @transform_6, window_bounds = array<i64: 32, 128>}, {pipeline_mode = #tpu.pipeline_mode<synchronous>, transform_indices = @transform_7, window_bounds = array<i64: 1, 128>}, {pipeline_mode = #tpu.pipeline_mode<synchronous>, transform_indices = @transform_8, window_bounds = array<i64: 16, 128>}, {pipeline_mode = #tpu.pipeline_mode<synchronous>, transform_indices = @transform_9, window_bounds = array<i64: 4, 32>}]} {
    %c0 = arith.constant 0 : index
    %c0_0 = arith.constant 0 : index
    %0 = vector.load %arg1[%c0, %c0_0] : memref<16x384xf32, #tpu.memory_space<vmem>>, vector<16x384xf32>
    %c0_1 = arith.constant 0 : index
    %c0_2 = arith.constant 0 : index
    %1 = vector.load %arg3[%c0_1, %c0_2] : memref<384x96xf32, #tpu.memory_space<vmem>>, vector<384x96xf32>
    %cst = arith.constant dense<0.000000e+00> : vector<16x96xf32>
    %2 = tpu.matmul %0, %1, %cst {dimension_numbers = #tpu.dot_dimension_numbers<[1], [0], [0], [1], [0, 0, 1, 1], [], []>} : vector<16x384xf32>, vector<384x96xf32>, vector<16x96xf32> -> vector<16x96xf32>
    %c0_3 = arith.constant 0 : index
    %c0_4 = arith.constant 0 : index
    %3 = vector.load %arg4[%c0_3, %c0_4] : memref<1x96xf32, #tpu.memory_space<vmem>>, vector<1x96xf32>
    %4 = vector.broadcast %3 : vector<1x96xf32> to vector<16x96xf32>
    %5 = arith.addf %2, %4 : vector<16x96xf32>
    %c0_5 = arith.constant 0 : index
    %c0_6 = arith.constant 0 : index
    %6 = vector.load %arg5[%c0_5, %c0_6] : memref<64x288xf32, #tpu.memory_space<vmem>>, vector<64x288xf32>
    %c0_7 = arith.constant 0 : index
    %c0_8 = arith.constant 0 : index
    %7 = vector.load %arg6[%c0_7, %c0_8] : memref<1x288xf32, #tpu.memory_space<vmem>>, vector<1x288xf32>
    %c0_9 = arith.constant 0 : index
    %c0_10 = arith.constant 0 : index
    %8 = vector.load %arg2[%c0_9, %c0_10] : memref<4x32xf32, #tpu.memory_space<vmem>>, vector<4x32xf32>
    %9 = vector.extract_strided_slice %8 {offsets = [0, 0], sizes = [2, 32], strides = [1, 1]} : vector<4x32xf32> to vector<2x32xf32>
    %10 = vector.extract_strided_slice %8 {offsets = [2, 0], sizes = [2, 32], strides = [1, 1]} : vector<4x32xf32> to vector<2x32xf32>
    %11 = tpu.concatenate %9, %10 in 1 : vector<2x32xf32>, vector<2x32xf32> -> vector<2x64xf32>
    %cst_11 = arith.constant dense<0.000000e+00> : vector<2x288xf32>
    %12 = tpu.matmul %11, %6, %cst_11 {dimension_numbers = #tpu.dot_dimension_numbers<[1], [0], [0], [1], [0, 0, 1, 1], [], []>} : vector<2x64xf32>, vector<64x288xf32>, vector<2x288xf32> -> vector<2x288xf32>
    %13 = vector.broadcast %7 : vector<1x288xf32> to vector<2x288xf32>
    %14 = arith.addf %12, %13 : vector<2x288xf32>
    %15 = vector.extract_strided_slice %14 {offsets = [0, 0], sizes = [2, 96], strides = [1, 1]} : vector<2x288xf32> to vector<2x96xf32>
    %16 = vector.extract_strided_slice %5 {offsets = [0, 0], sizes = [2, 96], strides = [1, 1]} : vector<16x96xf32> to vector<2x96xf32>
    %17 = vector.extract_strided_slice %16 {offsets = [0, 0], sizes = [2, 32], strides = [1, 1]} : vector<2x96xf32> to vector<2x32xf32>
    %18 = vector.extract_strided_slice %15 {offsets = [0, 0], sizes = [2, 32], strides = [1, 1]} : vector<2x96xf32> to vector<2x32xf32>
    %19 = arith.addf %17, %18 : vector<2x32xf32>
    %20 = arith.negf %19 : vector<2x32xf32>
    %21 = math.exp %20 : vector<2x32xf32>
    %cst_12 = arith.constant 1.000000e+00 : f32
    %22 = vector.broadcast %cst_12 : f32 to vector<2x32xf32>
    %23 = arith.addf %22, %21 : vector<2x32xf32>
    %24 = arith.divf %22, %23 : vector<2x32xf32>
    %25 = vector.extract_strided_slice %16 {offsets = [0, 32], sizes = [2, 32], strides = [1, 1]} : vector<2x96xf32> to vector<2x32xf32>
    %26 = vector.extract_strided_slice %15 {offsets = [0, 32], sizes = [2, 32], strides = [1, 1]} : vector<2x96xf32> to vector<2x32xf32>
    %27 = arith.addf %25, %26 : vector<2x32xf32>
    %28 = arith.negf %27 : vector<2x32xf32>
    %29 = math.exp %28 : vector<2x32xf32>
    %cst_13 = arith.constant 1.000000e+00 : f32
    %30 = vector.broadcast %cst_13 : f32 to vector<2x32xf32>
    %31 = arith.addf %30, %29 : vector<2x32xf32>
    %32 = arith.divf %30, %31 : vector<2x32xf32>
    %33 = vector.extract_strided_slice %16 {offsets = [0, 64], sizes = [2, 32], strides = [1, 1]} : vector<2x96xf32> to vector<2x32xf32>
    %34 = vector.extract_strided_slice %15 {offsets = [0, 64], sizes = [2, 32], strides = [1, 1]} : vector<2x96xf32> to vector<2x32xf32>
    %35 = arith.mulf %24, %34 : vector<2x32xf32>
    %36 = arith.addf %33, %35 : vector<2x32xf32>
    %37 = math.tanh %36 : vector<2x32xf32>
    %cst_14 = arith.constant 1.000000e+00 : f32
    %38 = vector.broadcast %cst_14 : f32 to vector<2x32xf32>
    %39 = arith.subf %38, %32 : vector<2x32xf32>
    %40 = arith.mulf %39, %37 : vector<2x32xf32>
    %41 = arith.mulf %32, %9 : vector<2x32xf32>
    %42 = arith.addf %40, %41 : vector<2x32xf32>
    %43 = tpu.concatenate %42, %10 in 1 : vector<2x32xf32>, vector<2x32xf32> -> vector<2x64xf32>
    %cst_15 = arith.constant dense<0.000000e+00> : vector<2x288xf32>
    %44 = tpu.matmul %43, %6, %cst_15 {dimension_numbers = #tpu.dot_dimension_numbers<[1], [0], [0], [1], [0, 0, 1, 1], [], []>} : vector<2x64xf32>, vector<64x288xf32>, vector<2x288xf32> -> vector<2x288xf32>
    %45 = vector.broadcast %7 : vector<1x288xf32> to vector<2x288xf32>
    %46 = arith.addf %44, %45 : vector<2x288xf32>
    %47 = vector.extract_strided_slice %46 {offsets = [0, 0], sizes = [2, 96], strides = [1, 1]} : vector<2x288xf32> to vector<2x96xf32>
    %48 = vector.extract_strided_slice %46 {offsets = [0, 96], sizes = [2, 96], strides = [1, 1]} : vector<2x288xf32> to vector<2x96xf32>
    %49 = vector.extract_strided_slice %46 {offsets = [0, 192], sizes = [2, 96], strides = [1, 1]} : vector<2x288xf32> to vector<2x96xf32>
    %50 = vector.extract_strided_slice %49 {offsets = [0, 0], sizes = [2, 32], strides = [1, 1]} : vector<2x96xf32> to vector<2x32xf32>
    %51 = vector.extract_strided_slice %48 {offsets = [0, 0], sizes = [2, 32], strides = [1, 1]} : vector<2x96xf32> to vector<2x32xf32>
    %52 = arith.addf %50, %51 : vector<2x32xf32>
    %53 = arith.negf %52 : vector<2x32xf32>
    %54 = math.exp %53 : vector<2x32xf32>
    %cst_16 = arith.constant 1.000000e+00 : f32
    %55 = vector.broadcast %cst_16 : f32 to vector<2x32xf32>
    %56 = arith.addf %55, %54 : vector<2x32xf32>
    %57 = arith.divf %55, %56 : vector<2x32xf32>
    %58 = vector.extract_strided_slice %49 {offsets = [0, 32], sizes = [2, 32], strides = [1, 1]} : vector<2x96xf32> to vector<2x32xf32>
    %59 = vector.extract_strided_slice %48 {offsets = [0, 32], sizes = [2, 32], strides = [1, 1]} : vector<2x96xf32> to vector<2x32xf32>
    %60 = arith.addf %58, %59 : vector<2x32xf32>
    %61 = arith.negf %60 : vector<2x32xf32>
    %62 = math.exp %61 : vector<2x32xf32>
    %cst_17 = arith.constant 1.000000e+00 : f32
    %63 = vector.broadcast %cst_17 : f32 to vector<2x32xf32>
    %64 = arith.addf %63, %62 : vector<2x32xf32>
    %65 = arith.divf %63, %64 : vector<2x32xf32>
    %66 = vector.extract_strided_slice %49 {offsets = [0, 64], sizes = [2, 32], strides = [1, 1]} : vector<2x96xf32> to vector<2x32xf32>
    %67 = vector.extract_strided_slice %48 {offsets = [0, 64], sizes = [2, 32], strides = [1, 1]} : vector<2x96xf32> to vector<2x32xf32>
    %68 = arith.mulf %57, %67 : vector<2x32xf32>
    %69 = arith.addf %66, %68 : vector<2x32xf32>
    %70 = math.tanh %69 : vector<2x32xf32>
    %cst_18 = arith.constant 1.000000e+00 : f32
    %71 = vector.broadcast %cst_18 : f32 to vector<2x32xf32>
    %72 = arith.subf %71, %65 : vector<2x32xf32>
    %73 = arith.mulf %72, %70 : vector<2x32xf32>
    %74 = arith.mulf %65, %10 : vector<2x32xf32>
    %75 = arith.addf %73, %74 : vector<2x32xf32>
    %76 = vector.extract_strided_slice %5 {offsets = [2, 0], sizes = [2, 96], strides = [1, 1]} : vector<16x96xf32> to vector<2x96xf32>
    %77 = vector.extract_strided_slice %76 {offsets = [0, 0], sizes = [2, 32], strides = [1, 1]} : vector<2x96xf32> to vector<2x32xf32>
    %78 = vector.extract_strided_slice %47 {offsets = [0, 0], sizes = [2, 32], strides = [1, 1]} : vector<2x96xf32> to vector<2x32xf32>
    %79 = arith.addf %77, %78 : vector<2x32xf32>
    %80 = arith.negf %79 : vector<2x32xf32>
    %81 = math.exp %80 : vector<2x32xf32>
    %cst_19 = arith.constant 1.000000e+00 : f32
    %82 = vector.broadcast %cst_19 : f32 to vector<2x32xf32>
    %83 = arith.addf %82, %81 : vector<2x32xf32>
    %84 = arith.divf %82, %83 : vector<2x32xf32>
    %85 = vector.extract_strided_slice %76 {offsets = [0, 32], sizes = [2, 32], strides = [1, 1]} : vector<2x96xf32> to vector<2x32xf32>
    %86 = vector.extract_strided_slice %47 {offsets = [0, 32], sizes = [2, 32], strides = [1, 1]} : vector<2x96xf32> to vector<2x32xf32>
    %87 = arith.addf %85, %86 : vector<2x32xf32>
    %88 = arith.negf %87 : vector<2x32xf32>
    %89 = math.exp %88 : vector<2x32xf32>
    %cst_20 = arith.constant 1.000000e+00 : f32
    %90 = vector.broadcast %cst_20 : f32 to vector<2x32xf32>
    %91 = arith.addf %90, %89 : vector<2x32xf32>
    %92 = arith.divf %90, %91 : vector<2x32xf32>
    %93 = vector.extract_strided_slice %76 {offsets = [0, 64], sizes = [2, 32], strides = [1, 1]} : vector<2x96xf32> to vector<2x32xf32>
    %94 = vector.extract_strided_slice %47 {offsets = [0, 64], sizes = [2, 32], strides = [1, 1]} : vector<2x96xf32> to vector<2x32xf32>
    %95 = arith.mulf %84, %94 : vector<2x32xf32>
    %96 = arith.addf %93, %95 : vector<2x32xf32>
    %97 = math.tanh %96 : vector<2x32xf32>
    %cst_21 = arith.constant 1.000000e+00 : f32
    %98 = vector.broadcast %cst_21 : f32 to vector<2x32xf32>
    %99 = arith.subf %98, %92 : vector<2x32xf32>
    %100 = arith.mulf %99, %97 : vector<2x32xf32>
    %101 = arith.mulf %92, %42 : vector<2x32xf32>
    %102 = arith.addf %100, %101 : vector<2x32xf32>
    %103 = tpu.concatenate %102, %75 in 1 : vector<2x32xf32>, vector<2x32xf32> -> vector<2x64xf32>
    %cst_22 = arith.constant dense<0.000000e+00> : vector<2x288xf32>
    %104 = tpu.matmul %103, %6, %cst_22 {dimension_numbers = #tpu.dot_dimension_numbers<[1], [0], [0], [1], [0, 0, 1, 1], [], []>} : vector<2x64xf32>, vector<64x288xf32>, vector<2x288xf32> -> vector<2x288xf32>
    %105 = vector.broadcast %7 : vector<1x288xf32> to vector<2x288xf32>
    %106 = arith.addf %104, %105 : vector<2x288xf32>
    %107 = vector.extract_strided_slice %106 {offsets = [0, 0], sizes = [2, 96], strides = [1, 1]} : vector<2x288xf32> to vector<2x96xf32>
    %108 = vector.extract_strided_slice %106 {offsets = [0, 96], sizes = [2, 96], strides = [1, 1]} : vector<2x288xf32> to vector<2x96xf32>
    %109 = vector.extract_strided_slice %106 {offsets = [0, 192], sizes = [2, 96], strides = [1, 1]} : vector<2x288xf32> to vector<2x96xf32>
    %110 = vector.extract_strided_slice %109 {offsets = [0, 0], sizes = [2, 32], strides = [1, 1]} : vector<2x96xf32> to vector<2x32xf32>
    %111 = vector.extract_strided_slice %108 {offsets = [0, 0], sizes = [2, 32], strides = [1, 1]} : vector<2x96xf32> to vector<2x32xf32>
    %112 = arith.addf %110, %111 : vector<2x32xf32>
    %113 = arith.negf %112 : vector<2x32xf32>
    %114 = math.exp %113 : vector<2x32xf32>
    %cst_23 = arith.constant 1.000000e+00 : f32
    %115 = vector.broadcast %cst_23 : f32 to vector<2x32xf32>
    %116 = arith.addf %115, %114 : vector<2x32xf32>
    %117 = arith.divf %115, %116 : vector<2x32xf32>
    %118 = vector.extract_strided_slice %109 {offsets = [0, 32], sizes = [2, 32], strides = [1, 1]} : vector<2x96xf32> to vector<2x32xf32>
    %119 = vector.extract_strided_slice %108 {offsets = [0, 32], sizes = [2, 32], strides = [1, 1]} : vector<2x96xf32> to vector<2x32xf32>
    %120 = arith.addf %118, %119 : vector<2x32xf32>
    %121 = arith.negf %120 : vector<2x32xf32>
    %122 = math.exp %121 : vector<2x32xf32>
    %cst_24 = arith.constant 1.000000e+00 : f32
    %123 = vector.broadcast %cst_24 : f32 to vector<2x32xf32>
    %124 = arith.addf %123, %122 : vector<2x32xf32>
    %125 = arith.divf %123, %124 : vector<2x32xf32>
    %126 = vector.extract_strided_slice %109 {offsets = [0, 64], sizes = [2, 32], strides = [1, 1]} : vector<2x96xf32> to vector<2x32xf32>
    %127 = vector.extract_strided_slice %108 {offsets = [0, 64], sizes = [2, 32], strides = [1, 1]} : vector<2x96xf32> to vector<2x32xf32>
    %128 = arith.mulf %117, %127 : vector<2x32xf32>
    %129 = arith.addf %126, %128 : vector<2x32xf32>
    %130 = math.tanh %129 : vector<2x32xf32>
    %cst_25 = arith.constant 1.000000e+00 : f32
    %131 = vector.broadcast %cst_25 : f32 to vector<2x32xf32>
    %132 = arith.subf %131, %125 : vector<2x32xf32>
    %133 = arith.mulf %132, %130 : vector<2x32xf32>
    %134 = arith.mulf %125, %75 : vector<2x32xf32>
    %135 = arith.addf %133, %134 : vector<2x32xf32>
    %136 = vector.extract_strided_slice %5 {offsets = [4, 0], sizes = [2, 96], strides = [1, 1]} : vector<16x96xf32> to vector<2x96xf32>
    %137 = vector.extract_strided_slice %136 {offsets = [0, 0], sizes = [2, 32], strides = [1, 1]} : vector<2x96xf32> to vector<2x32xf32>
    %138 = vector.extract_strided_slice %107 {offsets = [0, 0], sizes = [2, 32], strides = [1, 1]} : vector<2x96xf32> to vector<2x32xf32>
    %139 = arith.addf %137, %138 : vector<2x32xf32>
    %140 = arith.negf %139 : vector<2x32xf32>
    %141 = math.exp %140 : vector<2x32xf32>
    %cst_26 = arith.constant 1.000000e+00 : f32
    %142 = vector.broadcast %cst_26 : f32 to vector<2x32xf32>
    %143 = arith.addf %142, %141 : vector<2x32xf32>
    %144 = arith.divf %142, %143 : vector<2x32xf32>
    %145 = vector.extract_strided_slice %136 {offsets = [0, 32], sizes = [2, 32], strides = [1, 1]} : vector<2x96xf32> to vector<2x32xf32>
    %146 = vector.extract_strided_slice %107 {offsets = [0, 32], sizes = [2, 32], strides = [1, 1]} : vector<2x96xf32> to vector<2x32xf32>
    %147 = arith.addf %145, %146 : vector<2x32xf32>
    %148 = arith.negf %147 : vector<2x32xf32>
    %149 = math.exp %148 : vector<2x32xf32>
    %cst_27 = arith.constant 1.000000e+00 : f32
    %150 = vector.broadcast %cst_27 : f32 to vector<2x32xf32>
    %151 = arith.addf %150, %149 : vector<2x32xf32>
    %152 = arith.divf %150, %151 : vector<2x32xf32>
    %153 = vector.extract_strided_slice %136 {offsets = [0, 64], sizes = [2, 32], strides = [1, 1]} : vector<2x96xf32> to vector<2x32xf32>
    %154 = vector.extract_strided_slice %107 {offsets = [0, 64], sizes = [2, 32], strides = [1, 1]} : vector<2x96xf32> to vector<2x32xf32>
    %155 = arith.mulf %144, %154 : vector<2x32xf32>
    %156 = arith.addf %153, %155 : vector<2x32xf32>
    %157 = math.tanh %156 : vector<2x32xf32>
    %cst_28 = arith.constant 1.000000e+00 : f32
    %158 = vector.broadcast %cst_28 : f32 to vector<2x32xf32>
    %159 = arith.subf %158, %152 : vector<2x32xf32>
    %160 = arith.mulf %159, %157 : vector<2x32xf32>
    %161 = arith.mulf %152, %102 : vector<2x32xf32>
    %162 = arith.addf %160, %161 : vector<2x32xf32>
    %163 = tpu.concatenate %162, %135 in 1 : vector<2x32xf32>, vector<2x32xf32> -> vector<2x64xf32>
    %cst_29 = arith.constant dense<0.000000e+00> : vector<2x288xf32>
    %164 = tpu.matmul %163, %6, %cst_29 {dimension_numbers = #tpu.dot_dimension_numbers<[1], [0], [0], [1], [0, 0, 1, 1], [], []>} : vector<2x64xf32>, vector<64x288xf32>, vector<2x288xf32> -> vector<2x288xf32>
    %165 = vector.broadcast %7 : vector<1x288xf32> to vector<2x288xf32>
    %166 = arith.addf %164, %165 : vector<2x288xf32>
    %167 = vector.extract_strided_slice %166 {offsets = [0, 0], sizes = [2, 96], strides = [1, 1]} : vector<2x288xf32> to vector<2x96xf32>
    %168 = vector.extract_strided_slice %166 {offsets = [0, 96], sizes = [2, 96], strides = [1, 1]} : vector<2x288xf32> to vector<2x96xf32>
    %169 = vector.extract_strided_slice %166 {offsets = [0, 192], sizes = [2, 96], strides = [1, 1]} : vector<2x288xf32> to vector<2x96xf32>
    %170 = vector.extract_strided_slice %169 {offsets = [0, 0], sizes = [2, 32], strides = [1, 1]} : vector<2x96xf32> to vector<2x32xf32>
    %171 = vector.extract_strided_slice %168 {offsets = [0, 0], sizes = [2, 32], strides = [1, 1]} : vector<2x96xf32> to vector<2x32xf32>
    %172 = arith.addf %170, %171 : vector<2x32xf32>
    %173 = arith.negf %172 : vector<2x32xf32>
    %174 = math.exp %173 : vector<2x32xf32>
    %cst_30 = arith.constant 1.000000e+00 : f32
    %175 = vector.broadcast %cst_30 : f32 to vector<2x32xf32>
    %176 = arith.addf %175, %174 : vector<2x32xf32>
    %177 = arith.divf %175, %176 : vector<2x32xf32>
    %178 = vector.extract_strided_slice %169 {offsets = [0, 32], sizes = [2, 32], strides = [1, 1]} : vector<2x96xf32> to vector<2x32xf32>
    %179 = vector.extract_strided_slice %168 {offsets = [0, 32], sizes = [2, 32], strides = [1, 1]} : vector<2x96xf32> to vector<2x32xf32>
    %180 = arith.addf %178, %179 : vector<2x32xf32>
    %181 = arith.negf %180 : vector<2x32xf32>
    %182 = math.exp %181 : vector<2x32xf32>
    %cst_31 = arith.constant 1.000000e+00 : f32
    %183 = vector.broadcast %cst_31 : f32 to vector<2x32xf32>
    %184 = arith.addf %183, %182 : vector<2x32xf32>
    %185 = arith.divf %183, %184 : vector<2x32xf32>
    %186 = vector.extract_strided_slice %169 {offsets = [0, 64], sizes = [2, 32], strides = [1, 1]} : vector<2x96xf32> to vector<2x32xf32>
    %187 = vector.extract_strided_slice %168 {offsets = [0, 64], sizes = [2, 32], strides = [1, 1]} : vector<2x96xf32> to vector<2x32xf32>
    %188 = arith.mulf %177, %187 : vector<2x32xf32>
    %189 = arith.addf %186, %188 : vector<2x32xf32>
    %190 = math.tanh %189 : vector<2x32xf32>
    %cst_32 = arith.constant 1.000000e+00 : f32
    %191 = vector.broadcast %cst_32 : f32 to vector<2x32xf32>
    %192 = arith.subf %191, %185 : vector<2x32xf32>
    %193 = arith.mulf %192, %190 : vector<2x32xf32>
    %194 = arith.mulf %185, %135 : vector<2x32xf32>
    %195 = arith.addf %193, %194 : vector<2x32xf32>
    %196 = vector.extract_strided_slice %5 {offsets = [6, 0], sizes = [2, 96], strides = [1, 1]} : vector<16x96xf32> to vector<2x96xf32>
    %197 = vector.extract_strided_slice %196 {offsets = [0, 0], sizes = [2, 32], strides = [1, 1]} : vector<2x96xf32> to vector<2x32xf32>
    %198 = vector.extract_strided_slice %167 {offsets = [0, 0], sizes = [2, 32], strides = [1, 1]} : vector<2x96xf32> to vector<2x32xf32>
    %199 = arith.addf %197, %198 : vector<2x32xf32>
    %200 = arith.negf %199 : vector<2x32xf32>
    %201 = math.exp %200 : vector<2x32xf32>
    %cst_33 = arith.constant 1.000000e+00 : f32
    %202 = vector.broadcast %cst_33 : f32 to vector<2x32xf32>
    %203 = arith.addf %202, %201 : vector<2x32xf32>
    %204 = arith.divf %202, %203 : vector<2x32xf32>
    %205 = vector.extract_strided_slice %196 {offsets = [0, 32], sizes = [2, 32], strides = [1, 1]} : vector<2x96xf32> to vector<2x32xf32>
    %206 = vector.extract_strided_slice %167 {offsets = [0, 32], sizes = [2, 32], strides = [1, 1]} : vector<2x96xf32> to vector<2x32xf32>
    %207 = arith.addf %205, %206 : vector<2x32xf32>
    %208 = arith.negf %207 : vector<2x32xf32>
    %209 = math.exp %208 : vector<2x32xf32>
    %cst_34 = arith.constant 1.000000e+00 : f32
    %210 = vector.broadcast %cst_34 : f32 to vector<2x32xf32>
    %211 = arith.addf %210, %209 : vector<2x32xf32>
    %212 = arith.divf %210, %211 : vector<2x32xf32>
    %213 = vector.extract_strided_slice %196 {offsets = [0, 64], sizes = [2, 32], strides = [1, 1]} : vector<2x96xf32> to vector<2x32xf32>
    %214 = vector.extract_strided_slice %167 {offsets = [0, 64], sizes = [2, 32], strides = [1, 1]} : vector<2x96xf32> to vector<2x32xf32>
    %215 = arith.mulf %204, %214 : vector<2x32xf32>
    %216 = arith.addf %213, %215 : vector<2x32xf32>
    %217 = math.tanh %216 : vector<2x32xf32>
    %cst_35 = arith.constant 1.000000e+00 : f32
    %218 = vector.broadcast %cst_35 : f32 to vector<2x32xf32>
    %219 = arith.subf %218, %212 : vector<2x32xf32>
    %220 = arith.mulf %219, %217 : vector<2x32xf32>
    %221 = arith.mulf %212, %162 : vector<2x32xf32>
    %222 = arith.addf %220, %221 : vector<2x32xf32>
    %223 = tpu.concatenate %222, %195 in 1 : vector<2x32xf32>, vector<2x32xf32> -> vector<2x64xf32>
    %cst_36 = arith.constant dense<0.000000e+00> : vector<2x288xf32>
    %224 = tpu.matmul %223, %6, %cst_36 {dimension_numbers = #tpu.dot_dimension_numbers<[1], [0], [0], [1], [0, 0, 1, 1], [], []>} : vector<2x64xf32>, vector<64x288xf32>, vector<2x288xf32> -> vector<2x288xf32>
    %225 = vector.broadcast %7 : vector<1x288xf32> to vector<2x288xf32>
    %226 = arith.addf %224, %225 : vector<2x288xf32>
    %227 = vector.extract_strided_slice %226 {offsets = [0, 0], sizes = [2, 96], strides = [1, 1]} : vector<2x288xf32> to vector<2x96xf32>
    %228 = vector.extract_strided_slice %226 {offsets = [0, 96], sizes = [2, 96], strides = [1, 1]} : vector<2x288xf32> to vector<2x96xf32>
    %229 = vector.extract_strided_slice %226 {offsets = [0, 192], sizes = [2, 96], strides = [1, 1]} : vector<2x288xf32> to vector<2x96xf32>
    %230 = vector.extract_strided_slice %229 {offsets = [0, 0], sizes = [2, 32], strides = [1, 1]} : vector<2x96xf32> to vector<2x32xf32>
    %231 = vector.extract_strided_slice %228 {offsets = [0, 0], sizes = [2, 32], strides = [1, 1]} : vector<2x96xf32> to vector<2x32xf32>
    %232 = arith.addf %230, %231 : vector<2x32xf32>
    %233 = arith.negf %232 : vector<2x32xf32>
    %234 = math.exp %233 : vector<2x32xf32>
    %cst_37 = arith.constant 1.000000e+00 : f32
    %235 = vector.broadcast %cst_37 : f32 to vector<2x32xf32>
    %236 = arith.addf %235, %234 : vector<2x32xf32>
    %237 = arith.divf %235, %236 : vector<2x32xf32>
    %238 = vector.extract_strided_slice %229 {offsets = [0, 32], sizes = [2, 32], strides = [1, 1]} : vector<2x96xf32> to vector<2x32xf32>
    %239 = vector.extract_strided_slice %228 {offsets = [0, 32], sizes = [2, 32], strides = [1, 1]} : vector<2x96xf32> to vector<2x32xf32>
    %240 = arith.addf %238, %239 : vector<2x32xf32>
    %241 = arith.negf %240 : vector<2x32xf32>
    %242 = math.exp %241 : vector<2x32xf32>
    %cst_38 = arith.constant 1.000000e+00 : f32
    %243 = vector.broadcast %cst_38 : f32 to vector<2x32xf32>
    %244 = arith.addf %243, %242 : vector<2x32xf32>
    %245 = arith.divf %243, %244 : vector<2x32xf32>
    %246 = vector.extract_strided_slice %229 {offsets = [0, 64], sizes = [2, 32], strides = [1, 1]} : vector<2x96xf32> to vector<2x32xf32>
    %247 = vector.extract_strided_slice %228 {offsets = [0, 64], sizes = [2, 32], strides = [1, 1]} : vector<2x96xf32> to vector<2x32xf32>
    %248 = arith.mulf %237, %247 : vector<2x32xf32>
    %249 = arith.addf %246, %248 : vector<2x32xf32>
    %250 = math.tanh %249 : vector<2x32xf32>
    %cst_39 = arith.constant 1.000000e+00 : f32
    %251 = vector.broadcast %cst_39 : f32 to vector<2x32xf32>
    %252 = arith.subf %251, %245 : vector<2x32xf32>
    %253 = arith.mulf %252, %250 : vector<2x32xf32>
    %254 = arith.mulf %245, %195 : vector<2x32xf32>
    %255 = arith.addf %253, %254 : vector<2x32xf32>
    %256 = vector.extract_strided_slice %5 {offsets = [8, 0], sizes = [2, 96], strides = [1, 1]} : vector<16x96xf32> to vector<2x96xf32>
    %257 = vector.extract_strided_slice %256 {offsets = [0, 0], sizes = [2, 32], strides = [1, 1]} : vector<2x96xf32> to vector<2x32xf32>
    %258 = vector.extract_strided_slice %227 {offsets = [0, 0], sizes = [2, 32], strides = [1, 1]} : vector<2x96xf32> to vector<2x32xf32>
    %259 = arith.addf %257, %258 : vector<2x32xf32>
    %260 = arith.negf %259 : vector<2x32xf32>
    %261 = math.exp %260 : vector<2x32xf32>
    %cst_40 = arith.constant 1.000000e+00 : f32
    %262 = vector.broadcast %cst_40 : f32 to vector<2x32xf32>
    %263 = arith.addf %262, %261 : vector<2x32xf32>
    %264 = arith.divf %262, %263 : vector<2x32xf32>
    %265 = vector.extract_strided_slice %256 {offsets = [0, 32], sizes = [2, 32], strides = [1, 1]} : vector<2x96xf32> to vector<2x32xf32>
    %266 = vector.extract_strided_slice %227 {offsets = [0, 32], sizes = [2, 32], strides = [1, 1]} : vector<2x96xf32> to vector<2x32xf32>
    %267 = arith.addf %265, %266 : vector<2x32xf32>
    %268 = arith.negf %267 : vector<2x32xf32>
    %269 = math.exp %268 : vector<2x32xf32>
    %cst_41 = arith.constant 1.000000e+00 : f32
    %270 = vector.broadcast %cst_41 : f32 to vector<2x32xf32>
    %271 = arith.addf %270, %269 : vector<2x32xf32>
    %272 = arith.divf %270, %271 : vector<2x32xf32>
    %273 = vector.extract_strided_slice %256 {offsets = [0, 64], sizes = [2, 32], strides = [1, 1]} : vector<2x96xf32> to vector<2x32xf32>
    %274 = vector.extract_strided_slice %227 {offsets = [0, 64], sizes = [2, 32], strides = [1, 1]} : vector<2x96xf32> to vector<2x32xf32>
    %275 = arith.mulf %264, %274 : vector<2x32xf32>
    %276 = arith.addf %273, %275 : vector<2x32xf32>
    %277 = math.tanh %276 : vector<2x32xf32>
    %cst_42 = arith.constant 1.000000e+00 : f32
    %278 = vector.broadcast %cst_42 : f32 to vector<2x32xf32>
    %279 = arith.subf %278, %272 : vector<2x32xf32>
    %280 = arith.mulf %279, %277 : vector<2x32xf32>
    %281 = arith.mulf %272, %222 : vector<2x32xf32>
    %282 = arith.addf %280, %281 : vector<2x32xf32>
    %283 = tpu.concatenate %282, %255 in 1 : vector<2x32xf32>, vector<2x32xf32> -> vector<2x64xf32>
    %cst_43 = arith.constant dense<0.000000e+00> : vector<2x288xf32>
    %284 = tpu.matmul %283, %6, %cst_43 {dimension_numbers = #tpu.dot_dimension_numbers<[1], [0], [0], [1], [0, 0, 1, 1], [], []>} : vector<2x64xf32>, vector<64x288xf32>, vector<2x288xf32> -> vector<2x288xf32>
    %285 = vector.broadcast %7 : vector<1x288xf32> to vector<2x288xf32>
    %286 = arith.addf %284, %285 : vector<2x288xf32>
    %287 = vector.extract_strided_slice %286 {offsets = [0, 0], sizes = [2, 96], strides = [1, 1]} : vector<2x288xf32> to vector<2x96xf32>
    %288 = vector.extract_strided_slice %286 {offsets = [0, 96], sizes = [2, 96], strides = [1, 1]} : vector<2x288xf32> to vector<2x96xf32>
    %289 = vector.extract_strided_slice %286 {offsets = [0, 192], sizes = [2, 96], strides = [1, 1]} : vector<2x288xf32> to vector<2x96xf32>
    %290 = vector.extract_strided_slice %289 {offsets = [0, 0], sizes = [2, 32], strides = [1, 1]} : vector<2x96xf32> to vector<2x32xf32>
    %291 = vector.extract_strided_slice %288 {offsets = [0, 0], sizes = [2, 32], strides = [1, 1]} : vector<2x96xf32> to vector<2x32xf32>
    %292 = arith.addf %290, %291 : vector<2x32xf32>
    %293 = arith.negf %292 : vector<2x32xf32>
    %294 = math.exp %293 : vector<2x32xf32>
    %cst_44 = arith.constant 1.000000e+00 : f32
    %295 = vector.broadcast %cst_44 : f32 to vector<2x32xf32>
    %296 = arith.addf %295, %294 : vector<2x32xf32>
    %297 = arith.divf %295, %296 : vector<2x32xf32>
    %298 = vector.extract_strided_slice %289 {offsets = [0, 32], sizes = [2, 32], strides = [1, 1]} : vector<2x96xf32> to vector<2x32xf32>
    %299 = vector.extract_strided_slice %288 {offsets = [0, 32], sizes = [2, 32], strides = [1, 1]} : vector<2x96xf32> to vector<2x32xf32>
    %300 = arith.addf %298, %299 : vector<2x32xf32>
    %301 = arith.negf %300 : vector<2x32xf32>
    %302 = math.exp %301 : vector<2x32xf32>
    %cst_45 = arith.constant 1.000000e+00 : f32
    %303 = vector.broadcast %cst_45 : f32 to vector<2x32xf32>
    %304 = arith.addf %303, %302 : vector<2x32xf32>
    %305 = arith.divf %303, %304 : vector<2x32xf32>
    %306 = vector.extract_strided_slice %289 {offsets = [0, 64], sizes = [2, 32], strides = [1, 1]} : vector<2x96xf32> to vector<2x32xf32>
    %307 = vector.extract_strided_slice %288 {offsets = [0, 64], sizes = [2, 32], strides = [1, 1]} : vector<2x96xf32> to vector<2x32xf32>
    %308 = arith.mulf %297, %307 : vector<2x32xf32>
    %309 = arith.addf %306, %308 : vector<2x32xf32>
    %310 = math.tanh %309 : vector<2x32xf32>
    %cst_46 = arith.constant 1.000000e+00 : f32
    %311 = vector.broadcast %cst_46 : f32 to vector<2x32xf32>
    %312 = arith.subf %311, %305 : vector<2x32xf32>
    %313 = arith.mulf %312, %310 : vector<2x32xf32>
    %314 = arith.mulf %305, %255 : vector<2x32xf32>
    %315 = arith.addf %313, %314 : vector<2x32xf32>
    %316 = vector.extract_strided_slice %5 {offsets = [10, 0], sizes = [2, 96], strides = [1, 1]} : vector<16x96xf32> to vector<2x96xf32>
    %317 = vector.extract_strided_slice %316 {offsets = [0, 0], sizes = [2, 32], strides = [1, 1]} : vector<2x96xf32> to vector<2x32xf32>
    %318 = vector.extract_strided_slice %287 {offsets = [0, 0], sizes = [2, 32], strides = [1, 1]} : vector<2x96xf32> to vector<2x32xf32>
    %319 = arith.addf %317, %318 : vector<2x32xf32>
    %320 = arith.negf %319 : vector<2x32xf32>
    %321 = math.exp %320 : vector<2x32xf32>
    %cst_47 = arith.constant 1.000000e+00 : f32
    %322 = vector.broadcast %cst_47 : f32 to vector<2x32xf32>
    %323 = arith.addf %322, %321 : vector<2x32xf32>
    %324 = arith.divf %322, %323 : vector<2x32xf32>
    %325 = vector.extract_strided_slice %316 {offsets = [0, 32], sizes = [2, 32], strides = [1, 1]} : vector<2x96xf32> to vector<2x32xf32>
    %326 = vector.extract_strided_slice %287 {offsets = [0, 32], sizes = [2, 32], strides = [1, 1]} : vector<2x96xf32> to vector<2x32xf32>
    %327 = arith.addf %325, %326 : vector<2x32xf32>
    %328 = arith.negf %327 : vector<2x32xf32>
    %329 = math.exp %328 : vector<2x32xf32>
    %cst_48 = arith.constant 1.000000e+00 : f32
    %330 = vector.broadcast %cst_48 : f32 to vector<2x32xf32>
    %331 = arith.addf %330, %329 : vector<2x32xf32>
    %332 = arith.divf %330, %331 : vector<2x32xf32>
    %333 = vector.extract_strided_slice %316 {offsets = [0, 64], sizes = [2, 32], strides = [1, 1]} : vector<2x96xf32> to vector<2x32xf32>
    %334 = vector.extract_strided_slice %287 {offsets = [0, 64], sizes = [2, 32], strides = [1, 1]} : vector<2x96xf32> to vector<2x32xf32>
    %335 = arith.mulf %324, %334 : vector<2x32xf32>
    %336 = arith.addf %333, %335 : vector<2x32xf32>
    %337 = math.tanh %336 : vector<2x32xf32>
    %cst_49 = arith.constant 1.000000e+00 : f32
    %338 = vector.broadcast %cst_49 : f32 to vector<2x32xf32>
    %339 = arith.subf %338, %332 : vector<2x32xf32>
    %340 = arith.mulf %339, %337 : vector<2x32xf32>
    %341 = arith.mulf %332, %282 : vector<2x32xf32>
    %342 = arith.addf %340, %341 : vector<2x32xf32>
    %343 = tpu.concatenate %342, %315 in 1 : vector<2x32xf32>, vector<2x32xf32> -> vector<2x64xf32>
    %cst_50 = arith.constant dense<0.000000e+00> : vector<2x288xf32>
    %344 = tpu.matmul %343, %6, %cst_50 {dimension_numbers = #tpu.dot_dimension_numbers<[1], [0], [0], [1], [0, 0, 1, 1], [], []>} : vector<2x64xf32>, vector<64x288xf32>, vector<2x288xf32> -> vector<2x288xf32>
    %345 = vector.broadcast %7 : vector<1x288xf32> to vector<2x288xf32>
    %346 = arith.addf %344, %345 : vector<2x288xf32>
    %347 = vector.extract_strided_slice %346 {offsets = [0, 0], sizes = [2, 96], strides = [1, 1]} : vector<2x288xf32> to vector<2x96xf32>
    %348 = vector.extract_strided_slice %346 {offsets = [0, 96], sizes = [2, 96], strides = [1, 1]} : vector<2x288xf32> to vector<2x96xf32>
    %349 = vector.extract_strided_slice %346 {offsets = [0, 192], sizes = [2, 96], strides = [1, 1]} : vector<2x288xf32> to vector<2x96xf32>
    %350 = vector.extract_strided_slice %349 {offsets = [0, 0], sizes = [2, 32], strides = [1, 1]} : vector<2x96xf32> to vector<2x32xf32>
    %351 = vector.extract_strided_slice %348 {offsets = [0, 0], sizes = [2, 32], strides = [1, 1]} : vector<2x96xf32> to vector<2x32xf32>
    %352 = arith.addf %350, %351 : vector<2x32xf32>
    %353 = arith.negf %352 : vector<2x32xf32>
    %354 = math.exp %353 : vector<2x32xf32>
    %cst_51 = arith.constant 1.000000e+00 : f32
    %355 = vector.broadcast %cst_51 : f32 to vector<2x32xf32>
    %356 = arith.addf %355, %354 : vector<2x32xf32>
    %357 = arith.divf %355, %356 : vector<2x32xf32>
    %358 = vector.extract_strided_slice %349 {offsets = [0, 32], sizes = [2, 32], strides = [1, 1]} : vector<2x96xf32> to vector<2x32xf32>
    %359 = vector.extract_strided_slice %348 {offsets = [0, 32], sizes = [2, 32], strides = [1, 1]} : vector<2x96xf32> to vector<2x32xf32>
    %360 = arith.addf %358, %359 : vector<2x32xf32>
    %361 = arith.negf %360 : vector<2x32xf32>
    %362 = math.exp %361 : vector<2x32xf32>
    %cst_52 = arith.constant 1.000000e+00 : f32
    %363 = vector.broadcast %cst_52 : f32 to vector<2x32xf32>
    %364 = arith.addf %363, %362 : vector<2x32xf32>
    %365 = arith.divf %363, %364 : vector<2x32xf32>
    %366 = vector.extract_strided_slice %349 {offsets = [0, 64], sizes = [2, 32], strides = [1, 1]} : vector<2x96xf32> to vector<2x32xf32>
    %367 = vector.extract_strided_slice %348 {offsets = [0, 64], sizes = [2, 32], strides = [1, 1]} : vector<2x96xf32> to vector<2x32xf32>
    %368 = arith.mulf %357, %367 : vector<2x32xf32>
    %369 = arith.addf %366, %368 : vector<2x32xf32>
    %370 = math.tanh %369 : vector<2x32xf32>
    %cst_53 = arith.constant 1.000000e+00 : f32
    %371 = vector.broadcast %cst_53 : f32 to vector<2x32xf32>
    %372 = arith.subf %371, %365 : vector<2x32xf32>
    %373 = arith.mulf %372, %370 : vector<2x32xf32>
    %374 = arith.mulf %365, %315 : vector<2x32xf32>
    %375 = arith.addf %373, %374 : vector<2x32xf32>
    %376 = vector.extract_strided_slice %5 {offsets = [12, 0], sizes = [2, 96], strides = [1, 1]} : vector<16x96xf32> to vector<2x96xf32>
    %377 = vector.extract_strided_slice %376 {offsets = [0, 0], sizes = [2, 32], strides = [1, 1]} : vector<2x96xf32> to vector<2x32xf32>
    %378 = vector.extract_strided_slice %347 {offsets = [0, 0], sizes = [2, 32], strides = [1, 1]} : vector<2x96xf32> to vector<2x32xf32>
    %379 = arith.addf %377, %378 : vector<2x32xf32>
    %380 = arith.negf %379 : vector<2x32xf32>
    %381 = math.exp %380 : vector<2x32xf32>
    %cst_54 = arith.constant 1.000000e+00 : f32
    %382 = vector.broadcast %cst_54 : f32 to vector<2x32xf32>
    %383 = arith.addf %382, %381 : vector<2x32xf32>
    %384 = arith.divf %382, %383 : vector<2x32xf32>
    %385 = vector.extract_strided_slice %376 {offsets = [0, 32], sizes = [2, 32], strides = [1, 1]} : vector<2x96xf32> to vector<2x32xf32>
    %386 = vector.extract_strided_slice %347 {offsets = [0, 32], sizes = [2, 32], strides = [1, 1]} : vector<2x96xf32> to vector<2x32xf32>
    %387 = arith.addf %385, %386 : vector<2x32xf32>
    %388 = arith.negf %387 : vector<2x32xf32>
    %389 = math.exp %388 : vector<2x32xf32>
    %cst_55 = arith.constant 1.000000e+00 : f32
    %390 = vector.broadcast %cst_55 : f32 to vector<2x32xf32>
    %391 = arith.addf %390, %389 : vector<2x32xf32>
    %392 = arith.divf %390, %391 : vector<2x32xf32>
    %393 = vector.extract_strided_slice %376 {offsets = [0, 64], sizes = [2, 32], strides = [1, 1]} : vector<2x96xf32> to vector<2x32xf32>
    %394 = vector.extract_strided_slice %347 {offsets = [0, 64], sizes = [2, 32], strides = [1, 1]} : vector<2x96xf32> to vector<2x32xf32>
    %395 = arith.mulf %384, %394 : vector<2x32xf32>
    %396 = arith.addf %393, %395 : vector<2x32xf32>
    %397 = math.tanh %396 : vector<2x32xf32>
    %cst_56 = arith.constant 1.000000e+00 : f32
    %398 = vector.broadcast %cst_56 : f32 to vector<2x32xf32>
    %399 = arith.subf %398, %392 : vector<2x32xf32>
    %400 = arith.mulf %399, %397 : vector<2x32xf32>
    %401 = arith.mulf %392, %342 : vector<2x32xf32>
    %402 = arith.addf %400, %401 : vector<2x32xf32>
    %403 = tpu.concatenate %402, %375 in 1 : vector<2x32xf32>, vector<2x32xf32> -> vector<2x64xf32>
    %cst_57 = arith.constant dense<0.000000e+00> : vector<2x288xf32>
    %404 = tpu.matmul %403, %6, %cst_57 {dimension_numbers = #tpu.dot_dimension_numbers<[1], [0], [0], [1], [0, 0, 1, 1], [], []>} : vector<2x64xf32>, vector<64x288xf32>, vector<2x288xf32> -> vector<2x288xf32>
    %405 = vector.broadcast %7 : vector<1x288xf32> to vector<2x288xf32>
    %406 = arith.addf %404, %405 : vector<2x288xf32>
    %407 = vector.extract_strided_slice %406 {offsets = [0, 0], sizes = [2, 96], strides = [1, 1]} : vector<2x288xf32> to vector<2x96xf32>
    %408 = vector.extract_strided_slice %406 {offsets = [0, 96], sizes = [2, 96], strides = [1, 1]} : vector<2x288xf32> to vector<2x96xf32>
    %409 = vector.extract_strided_slice %406 {offsets = [0, 192], sizes = [2, 96], strides = [1, 1]} : vector<2x288xf32> to vector<2x96xf32>
    %410 = vector.extract_strided_slice %409 {offsets = [0, 0], sizes = [2, 32], strides = [1, 1]} : vector<2x96xf32> to vector<2x32xf32>
    %411 = vector.extract_strided_slice %408 {offsets = [0, 0], sizes = [2, 32], strides = [1, 1]} : vector<2x96xf32> to vector<2x32xf32>
    %412 = arith.addf %410, %411 : vector<2x32xf32>
    %413 = arith.negf %412 : vector<2x32xf32>
    %414 = math.exp %413 : vector<2x32xf32>
    %cst_58 = arith.constant 1.000000e+00 : f32
    %415 = vector.broadcast %cst_58 : f32 to vector<2x32xf32>
    %416 = arith.addf %415, %414 : vector<2x32xf32>
    %417 = arith.divf %415, %416 : vector<2x32xf32>
    %418 = vector.extract_strided_slice %409 {offsets = [0, 32], sizes = [2, 32], strides = [1, 1]} : vector<2x96xf32> to vector<2x32xf32>
    %419 = vector.extract_strided_slice %408 {offsets = [0, 32], sizes = [2, 32], strides = [1, 1]} : vector<2x96xf32> to vector<2x32xf32>
    %420 = arith.addf %418, %419 : vector<2x32xf32>
    %421 = arith.negf %420 : vector<2x32xf32>
    %422 = math.exp %421 : vector<2x32xf32>
    %cst_59 = arith.constant 1.000000e+00 : f32
    %423 = vector.broadcast %cst_59 : f32 to vector<2x32xf32>
    %424 = arith.addf %423, %422 : vector<2x32xf32>
    %425 = arith.divf %423, %424 : vector<2x32xf32>
    %426 = vector.extract_strided_slice %409 {offsets = [0, 64], sizes = [2, 32], strides = [1, 1]} : vector<2x96xf32> to vector<2x32xf32>
    %427 = vector.extract_strided_slice %408 {offsets = [0, 64], sizes = [2, 32], strides = [1, 1]} : vector<2x96xf32> to vector<2x32xf32>
    %428 = arith.mulf %417, %427 : vector<2x32xf32>
    %429 = arith.addf %426, %428 : vector<2x32xf32>
    %430 = math.tanh %429 : vector<2x32xf32>
    %cst_60 = arith.constant 1.000000e+00 : f32
    %431 = vector.broadcast %cst_60 : f32 to vector<2x32xf32>
    %432 = arith.subf %431, %425 : vector<2x32xf32>
    %433 = arith.mulf %432, %430 : vector<2x32xf32>
    %434 = arith.mulf %425, %375 : vector<2x32xf32>
    %435 = arith.addf %433, %434 : vector<2x32xf32>
    %436 = vector.extract_strided_slice %5 {offsets = [14, 0], sizes = [2, 96], strides = [1, 1]} : vector<16x96xf32> to vector<2x96xf32>
    %437 = vector.extract_strided_slice %436 {offsets = [0, 0], sizes = [2, 32], strides = [1, 1]} : vector<2x96xf32> to vector<2x32xf32>
    %438 = vector.extract_strided_slice %407 {offsets = [0, 0], sizes = [2, 32], strides = [1, 1]} : vector<2x96xf32> to vector<2x32xf32>
    %439 = arith.addf %437, %438 : vector<2x32xf32>
    %440 = arith.negf %439 : vector<2x32xf32>
    %441 = math.exp %440 : vector<2x32xf32>
    %cst_61 = arith.constant 1.000000e+00 : f32
    %442 = vector.broadcast %cst_61 : f32 to vector<2x32xf32>
    %443 = arith.addf %442, %441 : vector<2x32xf32>
    %444 = arith.divf %442, %443 : vector<2x32xf32>
    %445 = vector.extract_strided_slice %436 {offsets = [0, 32], sizes = [2, 32], strides = [1, 1]} : vector<2x96xf32> to vector<2x32xf32>
    %446 = vector.extract_strided_slice %407 {offsets = [0, 32], sizes = [2, 32], strides = [1, 1]} : vector<2x96xf32> to vector<2x32xf32>
    %447 = arith.addf %445, %446 : vector<2x32xf32>
    %448 = arith.negf %447 : vector<2x32xf32>
    %449 = math.exp %448 : vector<2x32xf32>
    %cst_62 = arith.constant 1.000000e+00 : f32
    %450 = vector.broadcast %cst_62 : f32 to vector<2x32xf32>
    %451 = arith.addf %450, %449 : vector<2x32xf32>
    %452 = arith.divf %450, %451 : vector<2x32xf32>
    %453 = vector.extract_strided_slice %436 {offsets = [0, 64], sizes = [2, 32], strides = [1, 1]} : vector<2x96xf32> to vector<2x32xf32>
    %454 = vector.extract_strided_slice %407 {offsets = [0, 64], sizes = [2, 32], strides = [1, 1]} : vector<2x96xf32> to vector<2x32xf32>
    %455 = arith.mulf %444, %454 : vector<2x32xf32>
    %456 = arith.addf %453, %455 : vector<2x32xf32>
    %457 = math.tanh %456 : vector<2x32xf32>
    %cst_63 = arith.constant 1.000000e+00 : f32
    %458 = vector.broadcast %cst_63 : f32 to vector<2x32xf32>
    %459 = arith.subf %458, %452 : vector<2x32xf32>
    %460 = arith.mulf %459, %457 : vector<2x32xf32>
    %461 = arith.mulf %452, %402 : vector<2x32xf32>
    %462 = arith.addf %460, %461 : vector<2x32xf32>
    %463 = tpu.concatenate %462, %435 in 1 : vector<2x32xf32>, vector<2x32xf32> -> vector<2x64xf32>
    %cst_64 = arith.constant dense<0.000000e+00> : vector<2x288xf32>
    %464 = tpu.matmul %463, %6, %cst_64 {dimension_numbers = #tpu.dot_dimension_numbers<[1], [0], [0], [1], [0, 0, 1, 1], [], []>} : vector<2x64xf32>, vector<64x288xf32>, vector<2x288xf32> -> vector<2x288xf32>
    %465 = vector.broadcast %7 : vector<1x288xf32> to vector<2x288xf32>
    %466 = arith.addf %464, %465 : vector<2x288xf32>
    %467 = vector.extract_strided_slice %466 {offsets = [0, 96], sizes = [2, 96], strides = [1, 1]} : vector<2x288xf32> to vector<2x96xf32>
    %468 = vector.extract_strided_slice %466 {offsets = [0, 192], sizes = [2, 96], strides = [1, 1]} : vector<2x288xf32> to vector<2x96xf32>
    %469 = vector.extract_strided_slice %468 {offsets = [0, 0], sizes = [2, 32], strides = [1, 1]} : vector<2x96xf32> to vector<2x32xf32>
    %470 = vector.extract_strided_slice %467 {offsets = [0, 0], sizes = [2, 32], strides = [1, 1]} : vector<2x96xf32> to vector<2x32xf32>
    %471 = arith.addf %469, %470 : vector<2x32xf32>
    %472 = arith.negf %471 : vector<2x32xf32>
    %473 = math.exp %472 : vector<2x32xf32>
    %cst_65 = arith.constant 1.000000e+00 : f32
    %474 = vector.broadcast %cst_65 : f32 to vector<2x32xf32>
    %475 = arith.addf %474, %473 : vector<2x32xf32>
    %476 = arith.divf %474, %475 : vector<2x32xf32>
    %477 = vector.extract_strided_slice %468 {offsets = [0, 32], sizes = [2, 32], strides = [1, 1]} : vector<2x96xf32> to vector<2x32xf32>
    %478 = vector.extract_strided_slice %467 {offsets = [0, 32], sizes = [2, 32], strides = [1, 1]} : vector<2x96xf32> to vector<2x32xf32>
    %479 = arith.addf %477, %478 : vector<2x32xf32>
    %480 = arith.negf %479 : vector<2x32xf32>
    %481 = math.exp %480 : vector<2x32xf32>
    %cst_66 = arith.constant 1.000000e+00 : f32
    %482 = vector.broadcast %cst_66 : f32 to vector<2x32xf32>
    %483 = arith.addf %482, %481 : vector<2x32xf32>
    %484 = arith.divf %482, %483 : vector<2x32xf32>
    %485 = vector.extract_strided_slice %468 {offsets = [0, 64], sizes = [2, 32], strides = [1, 1]} : vector<2x96xf32> to vector<2x32xf32>
    %486 = vector.extract_strided_slice %467 {offsets = [0, 64], sizes = [2, 32], strides = [1, 1]} : vector<2x96xf32> to vector<2x32xf32>
    %487 = arith.mulf %476, %486 : vector<2x32xf32>
    %488 = arith.addf %485, %487 : vector<2x32xf32>
    %489 = math.tanh %488 : vector<2x32xf32>
    %cst_67 = arith.constant 1.000000e+00 : f32
    %490 = vector.broadcast %cst_67 : f32 to vector<2x32xf32>
    %491 = arith.subf %490, %484 : vector<2x32xf32>
    %492 = arith.mulf %491, %489 : vector<2x32xf32>
    %493 = arith.mulf %484, %435 : vector<2x32xf32>
    %494 = arith.addf %492, %493 : vector<2x32xf32>
    %495 = tpu.concatenate %75, %135, %195, %255, %315, %375, %435, %494 in 0 : vector<2x32xf32>, vector<2x32xf32>, vector<2x32xf32>, vector<2x32xf32>, vector<2x32xf32>, vector<2x32xf32>, vector<2x32xf32>, vector<2x32xf32> -> vector<16x32xf32>
    %c0_68 = arith.constant 0 : index
    %c0_69 = arith.constant 0 : index
    %496 = vector.load %arg7[%c0_68, %c0_69] : memref<32x128xf32, #tpu.memory_space<vmem>>, vector<32x128xf32>
    %cst_70 = arith.constant dense<0.000000e+00> : vector<16x128xf32>
    %497 = tpu.matmul %495, %496, %cst_70 {dimension_numbers = #tpu.dot_dimension_numbers<[1], [0], [0], [1], [0, 0, 1, 1], [], []>} : vector<16x32xf32>, vector<32x128xf32>, vector<16x128xf32> -> vector<16x128xf32>
    %c0_71 = arith.constant 0 : index
    %c0_72 = arith.constant 0 : index
    %498 = vector.load %arg8[%c0_71, %c0_72] : memref<1x128xf32, #tpu.memory_space<vmem>>, vector<1x128xf32>
    %499 = vector.broadcast %498 : vector<1x128xf32> to vector<16x128xf32>
    %500 = arith.addf %497, %499 : vector<16x128xf32>
    %cst_73 = arith.constant dense<0xFF800000> : vector<16xf32>
    %501 = vector.multi_reduction <maximumf>, %500, %cst_73 [1] : vector<16x128xf32> to vector<16xf32>
    %502 = vector.shape_cast %501 : vector<16xf32> to vector<16x1xf32>
    %503 = vector.broadcast %502 : vector<16x1xf32> to vector<16x128xf32>
    %504 = arith.subf %500, %503 : vector<16x128xf32>
    %505 = math.exp %504 : vector<16x128xf32>
    %cst_74 = arith.constant dense<0.000000e+00> : vector<16xf32>
    %506 = vector.multi_reduction <add>, %505, %cst_74 [1] : vector<16x128xf32> to vector<16xf32>
    %507 = vector.shape_cast %506 : vector<16xf32> to vector<16x1xf32>
    %508 = vector.broadcast %507 : vector<16x1xf32> to vector<16x128xf32>
    %509 = arith.divf %505, %508 : vector<16x128xf32>
    %c0_75 = arith.constant 0 : index
    %c0_76 = arith.constant 0 : index
    %510 = vector.load %arg9[%c0_75, %c0_76] : memref<16x128xf32, #tpu.memory_space<vmem>>, vector<16x128xf32>
    tpu.vector_store %arg9[%c0_75, %c0_76], %509 {strides = array<i32>} : memref<16x128xf32, #tpu.memory_space<vmem>>, vector<16x128xf32>,
    %511 = tpu.concatenate %462, %494 in 0 : vector<2x32xf32>, vector<2x32xf32> -> vector<4x32xf32>
    %c0_77 = arith.constant 0 : index
    %c0_78 = arith.constant 0 : index
    %512 = vector.load %arg10[%c0_77, %c0_78] : memref<4x32xf32, #tpu.memory_space<vmem>>, vector<4x32xf32>
    tpu.vector_store %arg10[%c0_77, %c0_78], %511 {strides = array<i32>} : memref<4x32xf32, #tpu.memory_space<vmem>>, vector<4x32xf32>,
    return
  }
  func.func @transform_0(%arg0: i32) -> (i32, i32) {
    %c0_i32 = arith.constant 0 : i32
    %c0_i32_0 = arith.constant 0 : i32
    %c0_i32_1 = arith.constant 0 : i32
    return %c0_i32, %c0_i32_0 : i32, i32
  }
  func.func @transform_1(%arg0: i32) -> (i32, i32) {
    %c0_i32 = arith.constant 0 : i32
    %c0_i32_0 = arith.constant 0 : i32
    %c0_i32_1 = arith.constant 0 : i32
    return %c0_i32, %c0_i32_0 : i32, i32
  }
  func.func @transform_2(%arg0: i32) -> (i32, i32) {
    %c0_i32 = arith.constant 0 : i32
    %c0_i32_0 = arith.constant 0 : i32
    %c0_i32_1 = arith.constant 0 : i32
    return %c0_i32, %c0_i32_0 : i32, i32
  }
  func.func @transform_3(%arg0: i32) -> (i32, i32) {
    %c0_i32 = arith.constant 0 : i32
    %c0_i32_0 = arith.constant 0 : i32
    %c0_i32_1 = arith.constant 0 : i32
    return %c0_i32, %c0_i32_0 : i32, i32
  }
  func.func @transform_4(%arg0: i32) -> (i32, i32) {
    %c0_i32 = arith.constant 0 : i32
    %c0_i32_0 = arith.constant 0 : i32
    %c0_i32_1 = arith.constant 0 : i32
    return %c0_i32, %c0_i32_0 : i32, i32
  }
  func.func @transform_5(%arg0: i32) -> (i32, i32) {
    %c0_i32 = arith.constant 0 : i32
    %c0_i32_0 = arith.constant 0 : i32
    %c0_i32_1 = arith.constant 0 : i32
    return %c0_i32, %c0_i32_0 : i32, i32
  }
  func.func @transform_6(%arg0: i32) -> (i32, i32) {
    %c0_i32 = arith.constant 0 : i32
    %c0_i32_0 = arith.constant 0 : i32
    %c0_i32_1 = arith.constant 0 : i32
    return %c0_i32, %c0_i32_0 : i32, i32
  }
  func.func @transform_7(%arg0: i32) -> (i32, i32) {
    %c0_i32 = arith.constant 0 : i32
    %c0_i32_0 = arith.constant 0 : i32
    %c0_i32_1 = arith.constant 0 : i32
    return %c0_i32, %c0_i32_0 : i32, i32
  }
  func.func @transform_8(%arg0: i32) -> (i32, i32) {
    %c0_i32 = arith.constant 0 : i32
    %c0_i32_0 = arith.constant 0 : i32
    %c0_i32_1 = arith.constant 0 : i32
    return %c0_i32, %c0_i32_0 : i32, i32
  }
  func.func @transform_9(%arg0: i32) -> (i32, i32) {
    %c0_i32 = arith.constant 0 : i32
    %c0_i32_0 = arith.constant 0 : i32
    %c0_i32_1 = arith.constant 0 : i32
    return %c0_i32, %c0_i32_0 : i32, i32
  }
}

</mosaic_0001>

<llo_original>
// kernel: forward.1
$region0: #{forward.1}
  #allocation0 [shape = 'u32[]', space=smem, size = 0x4, offset = 0x4, fixed_abs, tag = 'smem constant byte address 0x4 - core index']
  #allocation1 [shape = 'u32[144,128]{1,0:T(1,128)}', space=vmem, size = 0x12000, scoped, tag = 'internal scratch']
  %s0 = inlined_call_operand.vmem [shape: f32[16,384], index: 0, kind: input, shape index: {}]
  %s1 = inlined_call_operand.vmem [shape: f32[4,32], index: 1, kind: input, shape index: {}]
  %s2 = inlined_call_operand.vmem [shape: f32[384,96], index: 2, kind: input, shape index: {}]
  %s3 = inlined_call_operand.vmem [shape: f32[1,96], index: 3, kind: input, shape index: {}]
  %s4 = inlined_call_operand.vmem [shape: f32[64,288], index: 4, kind: input, shape index: {}]
  %s5 = inlined_call_operand.vmem [shape: f32[1,288], index: 5, kind: input, shape index: {}]
  %s6 = inlined_call_operand.vmem [shape: f32[32,128], index: 6, kind: input, shape index: {}]
  %s7 = inlined_call_operand.vmem [shape: f32[1,128], index: 7, kind: input, shape index: {}]
  %s8 = inlined_call_operand.hbm [shape: f32[16,128], index: 8, kind: output, shape index: {0}]
  %s9 = inlined_call_operand.hbm [shape: f32[4,32], index: 9, kind: output, shape index: {1}]
  %10 = xla_tuple %s8, %s9
  %s11 = sld [smem:[#allocation0]]
  $region50: #{forward.1} parent=0
    _
  %s13 = ssub.s32 1, %s11
  %s14 = scalar_select 0, %s13, %s11
  $region1: #{forward.1} parent=0
    #allocation2 [shape = 'u8[8192]{0}', space=vmem, size = 0x2000, scoped, tag = 'output window, operand 0, single buffered']
    #allocation3 [shape = 's32[1]{0}', space=sflag, size = 0x4, scoped, tag = 'scoped memory for forward.1']
    #allocation4 [shape = 'u8[2048]{0}', space=vmem, size = 0x800, scoped, tag = 'output window, operand 1, single buffered']
    #allocation5 [shape = 's32[1]{0}', space=sflag, size = 0x4, scoped, tag = 'scoped memory for forward.1']
    %15 = vsyncpa [#allocation3], 0
    %16 = vsyncpa [#allocation5], 0
    // Predicated region
    $region2: #{forward.1} parent=1 // pred_check
      _
    $region3: #{forward.1} parent=1 // pred_check_branch
      %18 = sbr.rel (0) target = $region5
    $region4: #{forward.1} parent=1 // pred_region
      _
    $region5: #{forward.1} parent=1 // pred_fallthru
      _
    // Predicated region
    $region6: #{forward.1} parent=1 // pred_check
      _
    $region7: #{forward.1} parent=1 // pred_check_branch
      %20 = sbr.rel (0) target = $region9
    $region8: #{forward.1} parent=1 // pred_region
      _
    $region9: #{forward.1} parent=1 // pred_fallthru
      _
    // Predicated region
    $region10: #{forward.1} parent=1 // pred_check
      _
    $region11: #{forward.1} parent=1 // pred_check_branch
      %22 = sbr.rel (0) target = $region13
    $region12: #{forward.1} parent=1 // pred_region
      _
    $region13: #{forward.1} parent=1 // pred_fallthru
      _
    // Predicated region
    $region14: #{forward.1} parent=1 // pred_check
      _
    $region15: #{forward.1} parent=1 // pred_check_branch
      %24 = sbr.rel (0) target = $region17
    $region16: #{forward.1} parent=1 // pred_region
      _
    $region17: #{forward.1} parent=1 // pred_fallthru
      _
    // Predicated region
    $region18: #{forward.1} parent=1 // pred_check
      _
    $region19: #{forward.1} parent=1 // pred_check_branch
      %26 = sbr.rel (0) target = $region21
    $region20: #{forward.1} parent=1 // pred_region
      _
    $region21: #{forward.1} parent=1 // pred_fallthru
      _
    // Predicated region
    $region22: #{forward.1} parent=1 // pred_check
      _
    $region23: #{forward.1} parent=1 // pred_check_branch
      %28 = sbr.rel (0) target = $region25
    $region24: #{forward.1} parent=1 // pred_region
      _
    $region25: #{forward.1} parent=1 // pred_fallthru
      _
    // Predicated region
    $region26: #{forward.1} parent=1 // pred_check
      _
    $region27: #{forward.1} parent=1 // pred_check_branch
      %30 = sbr.rel (0) target = $region29
    $region28: #{forward.1} parent=1 // pred_region
      _
    $region29: #{forward.1} parent=1 // pred_fallthru
      _
    // Predicated region
    $region30: #{forward.1} parent=1 // pred_check
      _
    $region31: #{forward.1} parent=1 // pred_check_branch
      %32 = sbr.rel (0) target = $region33
    $region32: #{forward.1} parent=1 // pred_region
      _
    $region33: #{forward.1} parent=1 // pred_fallthru
      _
    %v33 = vld [vmem:[%s0] sm:$0xff]
    %v34 = vld [vmem:[%s0 + $0x8] sm:$0xff]
    %v35 = vld [vmem:[%s0 + $0x10] sm:$0xff]
    %v36 = vld [vmem:[%s0 + $0x18] sm:$0xff]
    %v37 = vld [vmem:[%s0 + $0x20] sm:$0xff]
    %v38 = vld [vmem:[%s0 + $0x28] sm:$0xff]
    %v39 = vld [vmem:[%s2] sm:$0xff]
    %v40 = vld [vmem:[%s2 + $0x8] sm:$0xff]
    %v41 = vld [vmem:[%s2 + $0x10] sm:$0xff]
    %v42 = vld [vmem:[%s2 + $0x18] sm:$0xff]
    %v43 = vld [vmem:[%s2 + $0x20] sm:$0xff]
    %v44 = vld [vmem:[%s2 + $0x28] sm:$0xff]
    %v45 = vld [vmem:[%s2 + $0x30] sm:$0xff]
    %v46 = vld [vmem:[%s2 + $0x38] sm:$0xff]
    %v47 = vld [vmem:[%s2 + $0x40] sm:$0xff]
    %v48 = vld [vmem:[%s2 + $0x48] sm:$0xff]
    %v49 = vld [vmem:[%s2 + $0x50] sm:$0xff]
    %v50 = vld [vmem:[%s2 + $0x58] sm:$0xff]
    %v51 = vld [vmem:[%s2 + $0x60] sm:$0xff]
    %v52 = vld [vmem:[%s2 + $0x68] sm:$0xff]
    %v53 = vld [vmem:[%s2 + $0x70] sm:$0xff]
    %v54 = vld [vmem:[%s2 + $0x78] sm:$0xff]
    %v55 = vld [vmem:[%s2 + $0x80] sm:$0xff]
    %v56 = vld [vmem:[%s2 + $0x88] sm:$0xff]
    %v57 = vld [vmem:[%s2 + $0x90] sm:$0xff]
    %v58 = vld [vmem:[%s2 + $0x98] sm:$0xff]
    %v59 = vld [vmem:[%s2 + $0xa0] sm:$0xff]
    %v60 = vld [vmem:[%s2 + $0xa8] sm:$0xff]
    %v61 = vld [vmem:[%s2 + $0xb0] sm:$0xff]
    %v62 = vld [vmem:[%s2 + $0xb8] sm:$0xff]
    %v63 = vld [vmem:[%s2 + $0xc0] sm:$0xff]
    %v64 = vld [vmem:[%s2 + $0xc8] sm:$0xff]
    %v65 = vld [vmem:[%s2 + $0xd0] sm:$0xff]
    %v66 = vld [vmem:[%s2 + $0xd8] sm:$0xff]
    %v67 = vld [vmem:[%s2 + $0xe0] sm:$0xff]
    %v68 = vld [vmem:[%s2 + $0xe8] sm:$0xff]
    %v69 = vld [vmem:[%s2 + $0xf0] sm:$0xff]
    %v70 = vld [vmem:[%s2 + $0xf8] sm:$0xff]
    %v71 = vld [vmem:[%s2 + $0x100] sm:$0xff]
    %v72 = vld [vmem:[%s2 + $0x108] sm:$0xff]
    %v73 = vld [vmem:[%s2 + $0x110] sm:$0xff]
    %v74 = vld [vmem:[%s2 + $0x118] sm:$0xff]
    %v75 = vld [vmem:[%s2 + $0x120] sm:$0xff]
    %v76 = vld [vmem:[%s2 + $0x128] sm:$0xff]
    %v77 = vld [vmem:[%s2 + $0x130] sm:$0xff]
    %v78 = vld [vmem:[%s2 + $0x138] sm:$0xff]
    %v79 = vld [vmem:[%s2 + $0x140] sm:$0xff]
    %v80 = vld [vmem:[%s2 + $0x148] sm:$0xff]
    %v81 = vld [vmem:[%s2 + $0x150] sm:$0xff]
    %v82 = vld [vmem:[%s2 + $0x158] sm:$0xff]
    %v83 = vld [vmem:[%s2 + $0x160] sm:$0xff]
    %v84 = vld [vmem:[%s2 + $0x168] sm:$0xff]
    %v85 = vld [vmem:[%s2 + $0x170] sm:$0xff]
    %v86 = vld [vmem:[%s2 + $0x178] sm:$0xff]
    %v87 = vld [vmem:[%s3] sm:$0x1]
    %v89 = vlaneseq
    %v90 = vshrl.u32 %v89, 7
    %v91 = vsub.s32 0, %v90
    %v92 = vrot.slane %v87, %v91
    %94 = vmatprep.subr.mxu0 0.0
    %95 = vmatpush1.msra.mxu0 %v39
    %96 = vmatprep.subr.mxu0 0.0
    %97 = vmatpush1.msra.mxu0 %v40
    %98 = vmatprep.subr.mxu0 0.0
    %99 = vmatpush1.msra.mxu0 %v41
    %100 = vmatprep.subr.mxu0 0.0
    %101 = vmatpush1.msra.mxu0 %v42
    %102 = vmatprep.subr.mxu0 0.0
    %103 = vmatpush1.msra.mxu0 %v43
    %104 = vmatprep.subr.mxu0 0.0
    %105 = vmatpush1.msra.mxu0 %v44
    %106 = vmatprep.subr.mxu0 0.0
    %107 = vmatpush1.msra.mxu0 %v45
    %108 = vmatprep.subr.mxu0 0.0
    %109 = vmatpush1.msra.mxu0 %v46
    %110 = vmatprep.subr.mxu0 0.0
    %111 = vmatpush1.msra.mxu0 %v47
    %112 = vmatprep.subr.mxu0 0.0
    %113 = vmatpush1.msra.mxu0 %v48
    %114 = vmatprep.subr.mxu0 0.0
    %115 = vmatpush1.msra.mxu0 %v49
    %116 = vmatprep.subr.mxu0 0.0
    %117 = vmatpush1.msra.mxu0 %v50
    %118 = vmatprep.subr.mxu0 0.0
    %119 = vmatpush1.msra.mxu0 %v51
    %120 = vmatprep.subr.mxu0 0.0
    %121 = vmatpush1.msra.mxu0 %v52
    %122 = vmatprep.subr.mxu0 0.0
    %123 = vmatpush1.msra.mxu0 %v53
    %124 = vmatprep.subr.mxu0 0.0
    %125 = vmatpush1.msra.mxu0 %v54
    %126 = vmatprep.subr.mxu0 0.0
    %127 = vmatpush1.msra.mxu0 %v55
    %128 = vmatprep.subr.mxu0 0.0
    %129 = vmatpush1.msra.mxu0 %v56
    %130 = vmatprep.subr.mxu0 0.0
    %131 = vmatpush1.msra.mxu0 %v57
    %132 = vmatprep.subr.mxu0 0.0
    %133 = vmatpush1.msra.mxu0 %v58
    %134 = vmatprep.subr.mxu0 0.0
    %135 = vmatpush1.msra.mxu0 %v59
    %136 = vmatprep.subr.mxu0 0.0
    %137 = vmatpush1.msra.mxu0 %v60
    %138 = vmatprep.subr.mxu0 0.0
    %139 = vmatpush1.msra.mxu0 %v61
    %140 = vmatprep.subr.mxu0 0.0
    %141 = vmatpush1.msra.mxu0 %v62
    %142 = vmatprep.subr.mxu0 0.0
    %143 = vmatpush1.msra.mxu0 %v63
    %144 = vmatprep.subr.mxu0 0.0
    %145 = vmatpush1.msra.mxu0 %v64
    %146 = vmatprep.subr.mxu0 0.0
    %147 = vmatpush1.msra.mxu0 %v65
    %148 = vmatprep.subr.mxu0 0.0
    %149 = vmatpush1.msra.mxu0 %v66
    %150 = vmatprep.subr.mxu0 0.0
    %151 = vmatpush1.msra.mxu0 %v67
    %152 = vmatprep.subr.mxu0 0.0
    %153 = vmatpush1.msra.mxu0 %v68
    %154 = vmatprep.subr.mxu0 0.0
    %155 = vmatpush1.msra.mxu0 %v69
    %156 = vmatprep.subr.mxu0 0.0
    %157 = vmatpush1.msra.mxu0 %v70
    %158 = vmatprep.mubr.f32.mxu0 %v34
    %159 = vmatmul.mubr.f32.gmra.mrb[0].mxu0 %v33
    %v160 = vpop.f32.mrb[0].mxu0
    %v161 = vadd.f32 %v92, %v160
    %v162 = vpop.f32.mrb[0].mxu0
    %163 = vmatprep.mubr.f32.mxu0 %v37
    %164 = vmatmul.mubr.f32.gmra.mrb[0].mxu0 %v36
    %v165 = vpop.f32.mrb[0].mxu0
    %v166 = vadd.f32 %v92, %v165
    %v167 = vpop.f32.mrb[0].mxu0
    %168 = vdwg.mxu0
    %169 = vmatprep.subr.mxu0 0.0
    %170 = vmatpush1.msra.mxu0 %v71
    %171 = vmatprep.subr.mxu0 0.0
    %172 = vmatpush1.msra.mxu0 %v72
    %173 = vmatprep.subr.mxu0 0.0
    %174 = vmatpush1.msra.mxu0 %v73
    %175 = vmatprep.subr.mxu0 0.0
    %176 = vmatpush1.msra.mxu0 %v74
    %177 = vmatprep.subr.mxu0 0.0
    %178 = vmatpush1.msra.mxu0 %v75
    %179 = vmatprep.subr.mxu0 0.0
    %180 = vmatpush1.msra.mxu0 %v76
    %181 = vmatprep.subr.mxu0 0.0
    %182 = vmatpush1.msra.mxu0 %v77
    %183 = vmatprep.subr.mxu0 0.0
    %184 = vmatpush1.msra.mxu0 %v78
    %185 = vmatprep.subr.mxu0 0.0
    %186 = vmatpush1.msra.mxu0 %v79
    %187 = vmatprep.subr.mxu0 0.0
    %188 = vmatpush1.msra.mxu0 %v80
    %189 = vmatprep.subr.mxu0 0.0
    %190 = vmatpush1.msra.mxu0 %v81
    %191 = vmatprep.subr.mxu0 0.0
    %192 = vmatpush1.msra.mxu0 %v82
    %193 = vmatprep.subr.mxu0 0.0
    %194 = vmatpush1.msra.mxu0 %v83
    %195 = vmatprep.subr.mxu0 0.0
    %196 = vmatpush1.msra.mxu0 %v84
    %197 = vmatprep.subr.mxu0 0.0
    %198 = vmatpush1.msra.mxu0 %v85
    %199 = vmatprep.subr.mxu0 0.0
    %200 = vmatpush1.msra.mxu0 %v86
    %201 = vmatprep.subr.mxu0 0.0
    %202 = vmatpush1.msra.mxu0 0.0
    %203 = vmatprep.subr.mxu0 0.0
    %204 = vmatpush1.msra.mxu0 0.0
    %205 = vmatprep.subr.mxu0 0.0
    %206 = vmatpush1.msra.mxu0 0.0
    %207 = vmatprep.subr.mxu0 0.0
    %208 = vmatpush1.msra.mxu0 0.0
    %209 = vmatprep.subr.mxu0 0.0
    %210 = vmatpush1.msra.mxu0 0.0
    %211 = vmatprep.subr.mxu0 0.0
    %212 = vmatpush1.msra.mxu0 0.0
    %213 = vmatprep.subr.mxu0 0.0
    %214 = vmatpush1.msra.mxu0 0.0
    %215 = vmatprep.subr.mxu0 0.0
    %216 = vmatpush1.msra.mxu0 0.0
    %217 = vmatprep.subr.mxu0 0.0
    %218 = vmatpush1.msra.mxu0 0.0
    %219 = vmatprep.subr.mxu0 0.0
    %220 = vmatpush1.msra.mxu0 0.0
    %221 = vmatprep.subr.mxu0 0.0
    %222 = vmatpush1.msra.mxu0 0.0
    %223 = vmatprep.subr.mxu0 0.0
    %224 = vmatpush1.msra.mxu0 0.0
    %225 = vmatprep.subr.mxu0 0.0
    %226 = vmatpush1.msra.mxu0 0.0
    %227 = vmatprep.subr.mxu0 0.0
    %228 = vmatpush1.msra.mxu0 0.0
    %229 = vmatprep.subr.mxu0 0.0
    %230 = vmatpush1.msra.mxu0 0.0
    %231 = vmatprep.subr.mxu0 0.0
    %232 = vmatpush1.msra.mxu0 0.0
    %233 = vmatprep.mubr.f32.mxu0 0.0
    %234 = vmatmul.mubr.f32.gmra.mrb[0].mxu0 %v35
    %v235 = vpop.f32.mrb[0].mxu0
    %v236 = vadd.f32 %v161, %v235
    %v237 = vpop.f32.mrb[0].mxu0
    %238 = vmatprep.mubr.f32.mxu0 0.0
    %239 = vmatmul.mubr.f32.gmra.mrb[0].mxu0 %v38
    %v240 = vpop.f32.mrb[0].mxu0
    %v241 = vadd.f32 %v166, %v240
    %v242 = vpop.f32.mrb[0].mxu0
    %243 = vdwg.mxu0
    %v244 = vld [vmem:[%s4] sm:$0xff]
    %v245 = vld [vmem:[%s4 + $0x8] sm:$0xff]
    %v246 = vld [vmem:[%s4 + $0x10] sm:$0xff]
    %v247 = vld [vmem:[%s4 + $0x18] sm:$0xff]
    %v248 = vld [vmem:[%s4 + $0x20] sm:$0xff]
    %v249 = vld [vmem:[%s4 + $0x28] sm:$0xff]
    %v250 = vld [vmem:[%s4 + $0x30] sm:$0xff]
    %v251 = vld [vmem:[%s4 + $0x38] sm:$0xff]
    %v252 = vld [vmem:[%s4 + $0x40] sm:$0xff]
    %v253 = vld [vmem:[%s4 + $0x48] sm:$0xff]
    %v254 = vld [vmem:[%s4 + $0x50] sm:$0xff]
    %v255 = vld [vmem:[%s4 + $0x58] sm:$0xff]
    %v256 = vld [vmem:[%s4 + $0x60] sm:$0xff]
    %v257 = vld [vmem:[%s4 + $0x68] sm:$0xff]
    %v258 = vld [vmem:[%s4 + $0x70] sm:$0xff]
    %v259 = vld [vmem:[%s4 + $0x78] sm:$0xff]
    %v260 = vld [vmem:[%s4 + $0x80] sm:$0xff]
    %v261 = vld [vmem:[%s4 + $0x88] sm:$0xff]
    %v262 = vld [vmem:[%s4 + $0x90] sm:$0xff]
    %v263 = vld [vmem:[%s4 + $0x98] sm:$0xff]
    %v264 = vld [vmem:[%s4 + $0xa0] sm:$0xff]
    %v265 = vld [vmem:[%s4 + $0xa8] sm:$0xff]
    %v266 = vld [vmem:[%s4 + $0xb0] sm:$0xff]
    %v267 = vld [vmem:[%s4 + $0xb8] sm:$0xff]
    %v268 = vld [vmem:[%s5] sm:$0x7]
    %v269 = vld [vmem:[%s1] sm:$0xf]
    %v271 = vrot.slane %v269, 2
    %272 = vrot.lane.b32.xlu0 %v271, 32
    %v273 = vpop.permute.xlu0 %272
    %vm275 = vcmask 261120
    %v276 = vsel %vm275, %v269, %v273
    %v278 = vlaneseq
    %v279 = vshrl.u32 %v278, 7
    %v280 = vsub.s32 0, %v279
    %v281 = vrot.slane %v268, %v280
    %v282 = vlaneseq
    %v283 = vshrl.u32 %v282, 7
    %v284 = vsub.s32 1, %v283
    %v285 = vrot.slane %v268, %v284
    %v286 = vlaneseq
    %v287 = vshrl.u32 %v286, 7
    %v288 = vsub.s32 2, %v287
    %v289 = vrot.slane %v268, %v288
    %vm293 = vcmask 523264
    %v295 = vsel %vm293, %v276, 0
    %297 = vmatprep.subr.mxu0 %v245
    %298 = vmatpush1.msra.mxu0 %v244
    %299 = vmatprep.subr.mxu0 %v248
    %300 = vmatpush1.msra.mxu0 %v247
    %301 = vmatprep.subr.mxu0 %v251
    %302 = vmatpush1.msra.mxu0 %v250
    %303 = vmatprep.subr.mxu0 %v254
    %304 = vmatpush1.msra.mxu0 %v253
    %305 = vmatprep.subr.mxu0 %v257
    %306 = vmatpush1.msra.mxu0 %v256
    %307 = vmatprep.subr.mxu0 %v260
    %308 = vmatpush1.msra.mxu0 %v259
    %309 = vmatprep.subr.mxu0 %v263
    %310 = vmatpush1.msra.mxu0 %v262
    %311 = vmatprep.subr.mxu0 %v266
    %312 = vmatpush1.msra.mxu0 %v265
    %313 = vmatprep.subr.mxu0 0.0
    %314 = vmatpush1.msra.mxu0 0.0
    %315 = vmatprep.subr.mxu0 0.0
    %316 = vmatpush1.msra.mxu0 0.0
    %317 = vmatprep.subr.mxu0 0.0
    %318 = vmatpush1.msra.mxu0 0.0
    %319 = vmatprep.subr.mxu0 0.0
    %320 = vmatpush1.msra.mxu0 0.0
    %321 = vmatprep.subr.mxu0 0.0
    %322 = vmatpush1.msra.mxu0 0.0
    %323 = vmatprep.subr.mxu0 0.0
    %324 = vmatpush1.msra.mxu0 0.0
    %325 = vmatprep.subr.mxu0 0.0
    %326 = vmatpush1.msra.mxu0 0.0
    %327 = vmatprep.subr.mxu0 0.0
    %328 = vmatpush1.msra.mxu0 0.0
    %329 = vmatprep.subr.mxu0 0.0
    %330 = vmatpush1.msra.mxu0 0.0
    %331 = vmatprep.subr.mxu0 0.0
    %332 = vmatpush1.msra.mxu0 0.0
    %333 = vmatprep.subr.mxu0 0.0
    %334 = vmatpush1.msra.mxu0 0.0
    %335 = vmatprep.subr.mxu0 0.0
    %336 = vmatpush1.msra.mxu0 0.0
    %337 = vmatprep.subr.mxu0 0.0
    %338 = vmatpush1.msra.mxu0 0.0
    %339 = vmatprep.subr.mxu0 0.0
    %340 = vmatpush1.msra.mxu0 0.0
    %341 = vmatprep.subr.mxu0 0.0
    %342 = vmatpush1.msra.mxu0 0.0
    %343 = vmatprep.subr.mxu0 0.0
    %344 = vmatpush1.msra.mxu0 0.0
    %345 = vmatprep.subr.mxu0 0.0
    %346 = vmatpush1.msra.mxu0 0.0
    %347 = vmatprep.subr.mxu0 0.0
    %348 = vmatpush1.msra.mxu0 0.0
    %349 = vmatprep.subr.mxu0 0.0
    %350 = vmatpush1.msra.mxu0 0.0
    %351 = vmatprep.subr.mxu0 0.0
    %352 = vmatpush1.msra.mxu0 0.0
    %353 = vmatprep.subr.mxu0 0.0
    %354 = vmatpush1.msra.mxu0 0.0
    %355 = vmatprep.subr.mxu0 0.0
    %356 = vmatpush1.msra.mxu0 0.0
    %357 = vmatprep.subr.mxu0 0.0
    %358 = vmatpush1.msra.mxu0 0.0
    %359 = vmatprep.subr.mxu0 0.0
    %360 = vmatpush1.msra.mxu0 0.0
    %361 = vmatprep.mubr.f32.mxu0 0.0
    %362 = vmatmul.mubr.f32.gmra.mrb[0].mxu0 %v295
    %v363 = vpop.f32.mrb[0].mxu0
    %v364 = vadd.f32 %v281, %v363
    %v365 = vpop.f32.mrb[0].mxu0
    %366 = vdwg.mxu0
    %v367 = vadd.f32 %v236, %v364
    %v368 = vxor.u32 %v367, 2147483648
    %v369 = vmul.f32 %v368, 1.442695
    %v370 = vpow.pop %v369
    %v371 = vadd.f32 %v370, 1.0
    %v372 = vrcp.pop %v371
    %v373 = vmul.f32 1.0, %v372
    %375 = vrot.lane.b32.xlu0 %v364, 64
    %v376 = vpop.permute.xlu0 %375
    %v378 = vmul.f32 %v373, %v376
    %380 = vrot.lane.b32.xlu0 %v378, 64
    %v381 = vpop.permute.xlu0 %380
    %v383 = vadd.f32 %v236, %v381
    %v384 = vtanh.pop %v383
    %v385 = vsub.f32 1.0, %v373
    %387 = vrot.lane.b32.xlu0 %v384, 96
    %v388 = vpop.permute.xlu0 %387
    %v390 = vmul.f32 %v385, %v388
    %391 = vrot.lane.b32.xlu0 %v269, 32
    %v392 = vpop.permute.xlu0 %391
    %v394 = vmul.f32 %v373, %v392
    %v395 = vadd.f32 %v390, %v394
    %397 = vrot.lane.b32.xlu0 %v395, 96
    %v398 = vpop.permute.xlu0 %397
    %v400 = vsel %vm275, %v398, %v273
    %v402 = vsel %vm293, %v400, 0
    %404 = vmatprep.subr.mxu0 %v245
    %405 = vmatpush1.msra.mxu0 %v244
    %406 = vmatprep.subr.mxu0 %v248
    %407 = vmatpush1.msra.mxu0 %v247
    %408 = vmatprep.subr.mxu0 %v251
    %409 = vmatpush1.msra.mxu0 %v250
    %410 = vmatprep.subr.mxu0 %v254
    %411 = vmatpush1.msra.mxu0 %v253
    %412 = vmatprep.subr.mxu0 %v257
    %413 = vmatpush1.msra.mxu0 %v256
    %414 = vmatprep.subr.mxu0 %v260
    %415 = vmatpush1.msra.mxu0 %v259
    %416 = vmatprep.subr.mxu0 %v263
    %417 = vmatpush1.msra.mxu0 %v262
    %418 = vmatprep.subr.mxu0 %v266
    %419 = vmatpush1.msra.mxu0 %v265
    %420 = vmatprep.subr.mxu0 0.0
    %421 = vmatpush1.msra.mxu0 0.0
    %422 = vmatprep.subr.mxu0 0.0
    %423 = vmatpush1.msra.mxu0 0.0
    %424 = vmatprep.subr.mxu0 0.0
    %425 = vmatpush1.msra.mxu0 0.0
    %426 = vmatprep.subr.mxu0 0.0
    %427 = vmatpush1.msra.mxu0 0.0
    %428 = vmatprep.subr.mxu0 0.0
    %429 = vmatpush1.msra.mxu0 0.0
    %430 = vmatprep.subr.mxu0 0.0
    %431 = vmatpush1.msra.mxu0 0.0
    %432 = vmatprep.subr.mxu0 0.0
    %433 = vmatpush1.msra.mxu0 0.0
    %434 = vmatprep.subr.mxu0 0.0
    %435 = vmatpush1.msra.mxu0 0.0
    %436 = vmatprep.subr.mxu0 0.0
    %437 = vmatpush1.msra.mxu0 0.0
    %438 = vmatprep.subr.mxu0 0.0
    %439 = vmatpush1.msra.mxu0 0.0
    %440 = vmatprep.subr.mxu0 0.0
    %441 = vmatpush1.msra.mxu0 0.0
    %442 = vmatprep.subr.mxu0 0.0
    %443 = vmatpush1.msra.mxu0 0.0
    %444 = vmatprep.subr.mxu0 0.0
    %445 = vmatpush1.msra.mxu0 0.0
    %446 = vmatprep.subr.mxu0 0.0
    %447 = vmatpush1.msra.mxu0 0.0
    %448 = vmatprep.subr.mxu0 0.0
    %449 = vmatpush1.msra.mxu0 0.0
    %450 = vmatprep.subr.mxu0 0.0
    %451 = vmatpush1.msra.mxu0 0.0
    %452 = vmatprep.subr.mxu0 0.0
    %453 = vmatpush1.msra.mxu0 0.0
    %454 = vmatprep.subr.mxu0 0.0
    %455 = vmatpush1.msra.mxu0 0.0
    %456 = vmatprep.subr.mxu0 0.0
    %457 = vmatpush1.msra.mxu0 0.0
    %458 = vmatprep.subr.mxu0 0.0
    %459 = vmatpush1.msra.mxu0 0.0
    %460 = vmatprep.subr.mxu0 0.0
    %461 = vmatpush1.msra.mxu0 0.0
    %462 = vmatprep.subr.mxu0 0.0
    %463 = vmatpush1.msra.mxu0 0.0
    %464 = vmatprep.subr.mxu0 0.0
    %465 = vmatpush1.msra.mxu0 0.0
    %466 = vmatprep.subr.mxu0 0.0
    %467 = vmatpush1.msra.mxu0 0.0
    %468 = vmatprep.mubr.f32.mxu0 0.0
    %469 = vmatmul.mubr.f32.gmra.mrb[0].mxu0 %v402
    %v470 = vpop.f32.mrb[0].mxu0
    %v471 = vadd.f32 %v281, %v470
    %v472 = vpop.f32.mrb[0].mxu0
    %v473 = vadd.f32 %v285, %v472
    %474 = vdwg.mxu0
    %475 = vmatprep.subr.mxu0 0.0
    %476 = vmatpush1.msra.mxu0 %v246
    %477 = vmatprep.subr.mxu0 0.0
    %478 = vmatpush1.msra.mxu0 %v249
    %479 = vmatprep.subr.mxu0 0.0
    %480 = vmatpush1.msra.mxu0 %v252
    %481 = vmatprep.subr.mxu0 0.0
    %482 = vmatpush1.msra.mxu0 %v255
    %483 = vmatprep.subr.mxu0 0.0
    %484 = vmatpush1.msra.mxu0 %v258
    %485 = vmatprep.subr.mxu0 0.0
    %486 = vmatpush1.msra.mxu0 %v261
    %487 = vmatprep.subr.mxu0 0.0
    %488 = vmatpush1.msra.mxu0 %v264
    %489 = vmatprep.subr.mxu0 0.0
    %490 = vmatpush1.msra.mxu0 %v267
    %491 = vmatprep.subr.mxu0 0.0
    %492 = vmatpush1.msra.mxu0 0.0
    %493 = vmatprep.subr.mxu0 0.0
    %494 = vmatpush1.msra.mxu0 0.0
    %495 = vmatprep.subr.mxu0 0.0
    %496 = vmatpush1.msra.mxu0 0.0
    %497 = vmatprep.subr.mxu0 0.0
    %498 = vmatpush1.msra.mxu0 0.0
    %499 = vmatprep.subr.mxu0 0.0
    %500 = vmatpush1.msra.mxu0 0.0
    %501 = vmatprep.subr.mxu0 0.0
    %502 = vmatpush1.msra.mxu0 0.0
    %503 = vmatprep.subr.mxu0 0.0
    %504 = vmatpush1.msra.mxu0 0.0
    %505 = vmatprep.subr.mxu0 0.0
    %506 = vmatpush1.msra.mxu0 0.0
    %507 = vmatprep.subr.mxu0 0.0
    %508 = vmatpush1.msra.mxu0 0.0
    %509 = vmatprep.subr.mxu0 0.0
    %510 = vmatpush1.msra.mxu0 0.0
    %511 = vmatprep.subr.mxu0 0.0
    %512 = vmatpush1.msra.mxu0 0.0
    %513 = vmatprep.subr.mxu0 0.0
    %514 = vmatpush1.msra.mxu0 0.0
    %515 = vmatprep.subr.mxu0 0.0
    %516 = vmatpush1.msra.mxu0 0.0
    %517 = vmatprep.subr.mxu0 0.0
    %518 = vmatpush1.msra.mxu0 0.0
    %519 = vmatprep.subr.mxu0 0.0
    %520 = vmatpush1.msra.mxu0 0.0
    %521 = vmatprep.subr.mxu0 0.0
    %522 = vmatpush1.msra.mxu0 0.0
    %523 = vmatprep.subr.mxu0 0.0
    %524 = vmatpush1.msra.mxu0 0.0
    %525 = vmatprep.subr.mxu0 0.0
    %526 = vmatpush1.msra.mxu0 0.0
    %527 = vmatprep.subr.mxu0 0.0
    %528 = vmatpush1.msra.mxu0 0.0
    %529 = vmatprep.subr.mxu0 0.0
    %530 = vmatpush1.msra.mxu0 0.0
    %531 = vmatprep.subr.mxu0 0.0
    %532 = vmatpush1.msra.mxu0 0.0
    %533 = vmatprep.subr.mxu0 0.0
    %534 = vmatpush1.msra.mxu0 0.0
    %535 = vmatprep.subr.mxu0 0.0
    %536 = vmatpush1.msra.mxu0 0.0
    %537 = vmatprep.subr.mxu0 0.0
    %538 = vmatpush1.msra.mxu0 0.0
    %539 = vmatprep.mubr.f32.mxu0 0.0
    %540 = vmatmul.mubr.f32.gmra.mrb[0].mxu0 %v402
    %v541 = vpop.f32.mrb[0].mxu0
    %v542 = vadd.f32 %v289, %v541
    %v543 = vpop.f32.mrb[0].mxu0
    %544 = vdwg.mxu0
    %546 = vrot.lane.b32.xlu0 %v471, 96
    %v547 = vpop.permute.xlu0 %546
    %v549 = vadd.f32 %v473, %v547
    %v550 = vxor.u32 %v549, 2147483648
    %v551 = vmul.f32 %v550, 1.442695
    %v552 = vpow.pop %v551
    %v553 = vadd.f32 %v552, 1.0
    %v554 = vrcp.pop %v553
    %v555 = vmul.f32 1.0, %v554
    %557 = vrot.lane.b32.xlu0 %v473, 96
    %v558 = vpop.permute.xlu0 %557
    %v560 = vadd.f32 %v473, %v558
    %v561 = vxor.u32 %v560, 2147483648
    %v562 = vmul.f32 %v561, 1.442695
    %v563 = vpow.pop %v562
    %v564 = vadd.f32 %v563, 1.0
    %v565 = vrcp.pop %v564
    %v566 = vmul.f32 1.0, %v565
    %567 = vrot.lane.b32.xlu0 %v473, 32
    %v568 = vpop.permute.xlu0 %567
    %v570 = vmul.f32 %v555, %v568
    %572 = vrot.lane.b32.xlu0 %v570, 64
    %v573 = vpop.permute.xlu0 %572
    %v575 = vadd.f32 %v542, %v573
    %v576 = vtanh.pop %v575
    %v577 = vsub.f32 1.0, %v566
    %579 = vrot.lane.b32.xlu0 %v576, 96
    %v580 = vpop.permute.xlu0 %579
    %v582 = vmul.f32 %v577, %v580
    %583 = vrot.lane.b32.xlu0 %v271, 96
    %v584 = vpop.permute.xlu0 %583
    %v586 = vmul.f32 %v566, %v584
    %v587 = vadd.f32 %v582, %v586
    %v588 = vrot.slane %v471, 6
    %v590 = vadd.f32 %v236, %v588
    %v591 = vxor.u32 %v590, 2147483648
    %v592 = vmul.f32 %v591, 1.442695
    %v593 = vpow.pop %v592
    %v594 = vadd.f32 %v593, 1.0
    %v595 = vrcp.pop %v594
    %v596 = vmul.f32 1.0, %v595
    %597 = vrot.lane.b32.xlu0 %v588, 64
    %v598 = vpop.permute.xlu0 %597
    %v600 = vmul.f32 %v596, %v598
    %602 = vrot.lane.b32.xlu0 %v600, 64
    %v603 = vpop.permute.xlu0 %602
    %v605 = vadd.f32 %v236, %v603
    %v606 = vtanh.pop %v605
    %v607 = vsub.f32 1.0, %v596
    %609 = vrot.lane.b32.xlu0 %v606, 96
    %v610 = vpop.permute.xlu0 %609
    %v612 = vmul.f32 %v607, %v610
    %v613 = vrot.slane %v395, 6
    %v615 = vmul.f32 %v596, %v613
    %v616 = vadd.f32 %v612, %v615
    %618 = vrot.lane.b32.xlu0 %v616, 96
    %v619 = vpop.permute.xlu0 %618
    %v622 = vrot.slane %v587, 6
    %623 = vrot.lane.b32.xlu0 %v622, 64
    %v624 = vpop.permute.xlu0 %623
    %v626 = vsel %vm275, %v619, %v624
    %v628 = vrot.slane %v626, 2
    %v629 = vsel %vm293, %v628, 0
    %631 = vmatprep.subr.mxu0 %v245
    %632 = vmatpush1.msra.mxu0 %v244
    %633 = vmatprep.subr.mxu0 %v248
    %634 = vmatpush1.msra.mxu0 %v247
    %635 = vmatprep.subr.mxu0 %v251
    %636 = vmatpush1.msra.mxu0 %v250
    %637 = vmatprep.subr.mxu0 %v254
    %638 = vmatpush1.msra.mxu0 %v253
    %639 = vmatprep.subr.mxu0 %v257
    %640 = vmatpush1.msra.mxu0 %v256
    %641 = vmatprep.subr.mxu0 %v260
    %642 = vmatpush1.msra.mxu0 %v259
    %643 = vmatprep.subr.mxu0 %v263
    %644 = vmatpush1.msra.mxu0 %v262
    %645 = vmatprep.subr.mxu0 %v266
    %646 = vmatpush1.msra.mxu0 %v265
    %647 = vmatprep.subr.mxu0 0.0
    %648 = vmatpush1.msra.mxu0 0.0
    %649 = vmatprep.subr.mxu0 0.0
    %650 = vmatpush1.msra.mxu0 0.0
    %651 = vmatprep.subr.mxu0 0.0
    %652 = vmatpush1.msra.mxu0 0.0
    %653 = vmatprep.subr.mxu0 0.0
    %654 = vmatpush1.msra.mxu0 0.0
    %655 = vmatprep.subr.mxu0 0.0
    %656 = vmatpush1.msra.mxu0 0.0
    %657 = vmatprep.subr.mxu0 0.0
    %658 = vmatpush1.msra.mxu0 0.0
    %659 = vmatprep.subr.mxu0 0.0
    %660 = vmatpush1.msra.mxu0 0.0
    %661 = vmatprep.subr.mxu0 0.0
    %662 = vmatpush1.msra.mxu0 0.0
    %663 = vmatprep.subr.mxu0 0.0
    %664 = vmatpush1.msra.mxu0 0.0
    %665 = vmatprep.subr.mxu0 0.0
    %666 = vmatpush1.msra.mxu0 0.0
    %667 = vmatprep.subr.mxu0 0.0
    %668 = vmatpush1.msra.mxu0 0.0
    %669 = vmatprep.subr.mxu0 0.0
    %670 = vmatpush1.msra.mxu0 0.0
    %671 = vmatprep.subr.mxu0 0.0
    %672 = vmatpush1.msra.mxu0 0.0
    %673 = vmatprep.subr.mxu0 0.0
    %674 = vmatpush1.msra.mxu0 0.0
    %675 = vmatprep.subr.mxu0 0.0
    %676 = vmatpush1.msra.mxu0 0.0
    %677 = vmatprep.subr.mxu0 0.0
    %678 = vmatpush1.msra.mxu0 0.0
    %679 = vmatprep.subr.mxu0 0.0
    %680 = vmatpush1.msra.mxu0 0.0
    %681 = vmatprep.subr.mxu0 0.0
    %682 = vmatpush1.msra.mxu0 0.0
    %683 = vmatprep.subr.mxu0 0.0
    %684 = vmatpush1.msra.mxu0 0.0
    %685 = vmatprep.subr.mxu0 0.0
    %686 = vmatpush1.msra.mxu0 0.0
    %687 = vmatprep.subr.mxu0 0.0
    %688 = vmatpush1.msra.mxu0 0.0
    %689 = vmatprep.subr.mxu0 0.0
    %690 = vmatpush1.msra.mxu0 0.0
    %691 = vmatprep.subr.mxu0 0.0
    %692 = vmatpush1.msra.mxu0 0.0
    %693 = vmatprep.subr.mxu0 0.0
    %694 = vmatpush1.msra.mxu0 0.0
    %695 = vmatprep.mubr.f32.mxu0 0.0
    %696 = vmatmul.mubr.f32.gmra.mrb[0].mxu0 %v629
    %v697 = vpop.f32.mrb[0].mxu0
    %v698 = vadd.f32 %v281, %v697
    %v699 = vpop.f32.mrb[0].mxu0
    %v700 = vadd.f32 %v285, %v699
    %701 = vdwg.mxu0
    %702 = vmatprep.subr.mxu0 0.0
    %703 = vmatpush1.msra.mxu0 %v246
    %704 = vmatprep.subr.mxu0 0.0
    %705 = vmatpush1.msra.mxu0 %v249
    %706 = vmatprep.subr.mxu0 0.0
    %707 = vmatpush1.msra.mxu0 %v252
    %708 = vmatprep.subr.mxu0 0.0
    %709 = vmatpush1.msra.mxu0 %v255
    %710 = vmatprep.subr.mxu0 0.0
    %711 = vmatpush1.msra.mxu0 %v258
    %712 = vmatprep.subr.mxu0 0.0
    %713 = vmatpush1.msra.mxu0 %v261
    %714 = vmatprep.subr.mxu0 0.0
    %715 = vmatpush1.msra.mxu0 %v264
    %716 = vmatprep.subr.mxu0 0.0
    %717 = vmatpush1.msra.mxu0 %v267
    %718 = vmatprep.subr.mxu0 0.0
    %719 = vmatpush1.msra.mxu0 0.0
    %720 = vmatprep.subr.mxu0 0.0
    %721 = vmatpush1.msra.mxu0 0.0
    %722 = vmatprep.subr.mxu0 0.0
    %723 = vmatpush1.msra.mxu0 0.0
    %724 = vmatprep.subr.mxu0 0.0
    %725 = vmatpush1.msra.mxu0 0.0
    %726 = vmatprep.subr.mxu0 0.0
    %727 = vmatpush1.msra.mxu0 0.0
    %728 = vmatprep.subr.mxu0 0.0
    %729 = vmatpush1.msra.mxu0 0.0
    %730 = vmatprep.subr.mxu0 0.0
    %731 = vmatpush1.msra.mxu0 0.0
    %732 = vmatprep.subr.mxu0 0.0
    %733 = vmatpush1.msra.mxu0 0.0
    %734 = vmatprep.subr.mxu0 0.0
    %735 = vmatpush1.msra.mxu0 0.0
    %736 = vmatprep.subr.mxu0 0.0
    %737 = vmatpush1.msra.mxu0 0.0
    %738 = vmatprep.subr.mxu0 0.0
    %739 = vmatpush1.msra.mxu0 0.0
    %740 = vmatprep.subr.mxu0 0.0
    %741 = vmatpush1.msra.mxu0 0.0
    %742 = vmatprep.subr.mxu0 0.0
    %743 = vmatpush1.msra.mxu0 0.0
    %744 = vmatprep.subr.mxu0 0.0
    %745 = vmatpush1.msra.mxu0 0.0
    %746 = vmatprep.subr.mxu0 0.0
    %747 = vmatpush1.msra.mxu0 0.0
    %748 = vmatprep.subr.mxu0 0.0
    %749 = vmatpush1.msra.mxu0 0.0
    %750 = vmatprep.subr.mxu0 0.0
    %751 = vmatpush1.msra.mxu0 0.0
    %752 = vmatprep.subr.mxu0 0.0
    %753 = vmatpush1.msra.mxu0 0.0
    %754 = vmatprep.subr.mxu0 0.0
    %755 = vmatpush1.msra.mxu0 0.0
    %756 = vmatprep.subr.mxu0 0.0
    %757 = vmatpush1.msra.mxu0 0.0
    %758 = vmatprep.subr.mxu0 0.0
    %759 = vmatpush1.msra.mxu0 0.0
    %760 = vmatprep.subr.mxu0 0.0
    %761 = vmatpush1.msra.mxu0 0.0
    %762 = vmatprep.subr.mxu0 0.0
    %763 = vmatpush1.msra.mxu0 0.0
    %764 = vmatprep.subr.mxu0 0.0
    %765 = vmatpush1.msra.mxu0 0.0
    %766 = vmatprep.mubr.f32.mxu0 0.0
    %767 = vmatmul.mubr.f32.gmra.mrb[0].mxu0 %v629
    %v768 = vpop.f32.mrb[0].mxu0
    %v769 = vadd.f32 %v289, %v768
    %v770 = vpop.f32.mrb[0].mxu0
    %771 = vdwg.mxu0
    %773 = vrot.lane.b32.xlu0 %v698, 96
    %v774 = vpop.permute.xlu0 %773
    %v776 = vadd.f32 %v700, %v774
    %v777 = vxor.u32 %v776, 2147483648
    %v778 = vmul.f32 %v777, 1.442695
    %v779 = vpow.pop %v778
    %v780 = vadd.f32 %v779, 1.0
    %v781 = vrcp.pop %v780
    %v782 = vmul.f32 1.0, %v781
    %784 = vrot.lane.b32.xlu0 %v700, 96
    %v785 = vpop.permute.xlu0 %784
    %v787 = vadd.f32 %v700, %v785
    %v788 = vxor.u32 %v787, 2147483648
    %v789 = vmul.f32 %v788, 1.442695
    %v790 = vpow.pop %v789
    %v791 = vadd.f32 %v790, 1.0
    %v792 = vrcp.pop %v791
    %v793 = vmul.f32 1.0, %v792
    %794 = vrot.lane.b32.xlu0 %v700, 32
    %v795 = vpop.permute.xlu0 %794
    %v797 = vmul.f32 %v782, %v795
    %799 = vrot.lane.b32.xlu0 %v797, 64
    %v800 = vpop.permute.xlu0 %799
    %v802 = vadd.f32 %v769, %v800
    %v803 = vtanh.pop %v802
    %v804 = vsub.f32 1.0, %v793
    %806 = vrot.lane.b32.xlu0 %v803, 96
    %v807 = vpop.permute.xlu0 %806
    %v809 = vmul.f32 %v804, %v807
    %v810 = vmul.f32 %v793, %v587
    %v811 = vadd.f32 %v809, %v810
    %v812 = vrot.slane %v698, 4
    %v814 = vadd.f32 %v236, %v812
    %v815 = vxor.u32 %v814, 2147483648
    %v816 = vmul.f32 %v815, 1.442695
    %v817 = vpow.pop %v816
    %v818 = vadd.f32 %v817, 1.0
    %v819 = vrcp.pop %v818
    %v820 = vmul.f32 1.0, %v819
    %821 = vrot.lane.b32.xlu0 %v812, 64
    %v822 = vpop.permute.xlu0 %821
    %v824 = vmul.f32 %v820, %v822
    %826 = vrot.lane.b32.xlu0 %v824, 64
    %v827 = vpop.permute.xlu0 %826
    %v829 = vadd.f32 %v236, %v827
    %v830 = vtanh.pop %v829
    %v831 = vsub.f32 1.0, %v820
    %833 = vrot.lane.b32.xlu0 %v830, 96
    %v834 = vpop.permute.xlu0 %833
    %v836 = vmul.f32 %v831, %v834
    %v837 = vrot.slane %v616, 6
    %v839 = vmul.f32 %v820, %v837
    %v840 = vadd.f32 %v836, %v839
    %842 = vrot.lane.b32.xlu0 %v840, 96
    %v843 = vpop.permute.xlu0 %842
    %v846 = vrot.slane %v811, 4
    %847 = vrot.lane.b32.xlu0 %v846, 64
    %v848 = vpop.permute.xlu0 %847
    %v850 = vsel %vm275, %v843, %v848
    %v852 = vrot.slane %v850, 4
    %v853 = vsel %vm293, %v852, 0
    %855 = vmatprep.subr.mxu0 %v245
    %856 = vmatpush1.msra.mxu0 %v244
    %857 = vmatprep.subr.mxu0 %v248
    %858 = vmatpush1.msra.mxu0 %v247
    %859 = vmatprep.subr.mxu0 %v251
    %860 = vmatpush1.msra.mxu0 %v250
    %861 = vmatprep.subr.mxu0 %v254
    %862 = vmatpush1.msra.mxu0 %v253
    %863 = vmatprep.subr.mxu0 %v257
    %864 = vmatpush1.msra.mxu0 %v256
    %865 = vmatprep.subr.mxu0 %v260
    %866 = vmatpush1.msra.mxu0 %v259
    %867 = vmatprep.subr.mxu0 %v263
    %868 = vmatpush1.msra.mxu0 %v262
    %869 = vmatprep.subr.mxu0 %v266
    %870 = vmatpush1.msra.mxu0 %v265
    %871 = vmatprep.subr.mxu0 0.0
    %872 = vmatpush1.msra.mxu0 0.0
    %873 = vmatprep.subr.mxu0 0.0
    %874 = vmatpush1.msra.mxu0 0.0
    %875 = vmatprep.subr.mxu0 0.0
    %876 = vmatpush1.msra.mxu0 0.0
    %877 = vmatprep.subr.mxu0 0.0
    %878 = vmatpush1.msra.mxu0 0.0
    %879 = vmatprep.subr.mxu0 0.0
    %880 = vmatpush1.msra.mxu0 0.0
    %881 = vmatprep.subr.mxu0 0.0
    %882 = vmatpush1.msra.mxu0 0.0
    %883 = vmatprep.subr.mxu0 0.0
    %884 = vmatpush1.msra.mxu0 0.0
    %885 = vmatprep.subr.mxu0 0.0
    %886 = vmatpush1.msra.mxu0 0.0
    %887 = vmatprep.subr.mxu0 0.0
    %888 = vmatpush1.msra.mxu0 0.0
    %889 = vmatprep.subr.mxu0 0.0
    %890 = vmatpush1.msra.mxu0 0.0
    %891 = vmatprep.subr.mxu0 0.0
    %892 = vmatpush1.msra.mxu0 0.0
    %893 = vmatprep.subr.mxu0 0.0
    %894 = vmatpush1.msra.mxu0 0.0
    %895 = vmatprep.subr.mxu0 0.0
    %896 = vmatpush1.msra.mxu0 0.0
    %897 = vmatprep.subr.mxu0 0.0
    %898 = vmatpush1.msra.mxu0 0.0
    %899 = vmatprep.subr.mxu0 0.0
    %900 = vmatpush1.msra.mxu0 0.0
    %901 = vmatprep.subr.mxu0 0.0
    %902 = vmatpush1.msra.mxu0 0.0
    %903 = vmatprep.subr.mxu0 0.0
    %904 = vmatpush1.msra.mxu0 0.0
    %905 = vmatprep.subr.mxu0 0.0
    %906 = vmatpush1.msra.mxu0 0.0
    %907 = vmatprep.subr.mxu0 0.0
    %908 = vmatpush1.msra.mxu0 0.0
    %909 = vmatprep.subr.mxu0 0.0
    %910 = vmatpush1.msra.mxu0 0.0
    %911 = vmatprep.subr.mxu0 0.0
    %912 = vmatpush1.msra.mxu0 0.0
    %913 = vmatprep.subr.mxu0 0.0
    %914 = vmatpush1.msra.mxu0 0.0
    %915 = vmatprep.subr.mxu0 0.0
    %916 = vmatpush1.msra.mxu0 0.0
    %917 = vmatprep.subr.mxu0 0.0
    %918 = vmatpush1.msra.mxu0 0.0
    %919 = vmatprep.mubr.f32.mxu0 0.0
    %920 = vmatmul.mubr.f32.gmra.mrb[0].mxu0 %v853
    %v921 = vpop.f32.mrb[0].mxu0
    %v922 = vadd.f32 %v281, %v921
    %v923 = vpop.f32.mrb[0].mxu0
    %v924 = vadd.f32 %v285, %v923
    %925 = vdwg.mxu0
    %926 = vmatprep.subr.mxu0 0.0
    %927 = vmatpush1.msra.mxu0 %v246
    %928 = vmatprep.subr.mxu0 0.0
    %929 = vmatpush1.msra.mxu0 %v249
    %930 = vmatprep.subr.mxu0 0.0
    %931 = vmatpush1.msra.mxu0 %v252
    %932 = vmatprep.subr.mxu0 0.0
    %933 = vmatpush1.msra.mxu0 %v255
    %934 = vmatprep.subr.mxu0 0.0
    %935 = vmatpush1.msra.mxu0 %v258
    %936 = vmatprep.subr.mxu0 0.0
    %937 = vmatpush1.msra.mxu0 %v261
    %938 = vmatprep.subr.mxu0 0.0
    %939 = vmatpush1.msra.mxu0 %v264
    %940 = vmatprep.subr.mxu0 0.0
    %941 = vmatpush1.msra.mxu0 %v267
    %942 = vmatprep.subr.mxu0 0.0
    %943 = vmatpush1.msra.mxu0 0.0
    %944 = vmatprep.subr.mxu0 0.0
    %945 = vmatpush1.msra.mxu0 0.0
    %946 = vmatprep.subr.mxu0 0.0
    %947 = vmatpush1.msra.mxu0 0.0
    %948 = vmatprep.subr.mxu0 0.0
    %949 = vmatpush1.msra.mxu0 0.0
    %950 = vmatprep.subr.mxu0 0.0
    %951 = vmatpush1.msra.mxu0 0.0
    %952 = vmatprep.subr.mxu0 0.0
    %953 = vmatpush1.msra.mxu0 0.0
    %954 = vmatprep.subr.mxu0 0.0
    %955 = vmatpush1.msra.mxu0 0.0
    %956 = vmatprep.subr.mxu0 0.0
    %957 = vmatpush1.msra.mxu0 0.0
    %958 = vmatprep.subr.mxu0 0.0
    %959 = vmatpush1.msra.mxu0 0.0
    %960 = vmatprep.subr.mxu0 0.0
    %961 = vmatpush1.msra.mxu0 0.0
    %962 = vmatprep.subr.mxu0 0.0
    %963 = vmatpush1.msra.mxu0 0.0
    %964 = vmatprep.subr.mxu0 0.0
    %965 = vmatpush1.msra.mxu0 0.0
    %966 = vmatprep.subr.mxu0 0.0
    %967 = vmatpush1.msra.mxu0 0.0
    %968 = vmatprep.subr.mxu0 0.0
    %969 = vmatpush1.msra.mxu0 0.0
    %970 = vmatprep.subr.mxu0 0.0
    %971 = vmatpush1.msra.mxu0 0.0
    %972 = vmatprep.subr.mxu0 0.0
    %973 = vmatpush1.msra.mxu0 0.0
    %974 = vmatprep.subr.mxu0 0.0
    %975 = vmatpush1.msra.mxu0 0.0
    %976 = vmatprep.subr.mxu0 0.0
    %977 = vmatpush1.msra.mxu0 0.0
    %978 = vmatprep.subr.mxu0 0.0
    %979 = vmatpush1.msra.mxu0 0.0
    %980 = vmatprep.subr.mxu0 0.0
    %981 = vmatpush1.msra.mxu0 0.0
    %982 = vmatprep.subr.mxu0 0.0
    %983 = vmatpush1.msra.mxu0 0.0
    %984 = vmatprep.subr.mxu0 0.0
    %985 = vmatpush1.msra.mxu0 0.0
    %986 = vmatprep.subr.mxu0 0.0
    %987 = vmatpush1.msra.mxu0 0.0
    %988 = vmatprep.subr.mxu0 0.0
    %989 = vmatpush1.msra.mxu0 0.0
    %990 = vmatprep.mubr.f32.mxu0 0.0
    %991 = vmatmul.mubr.f32.gmra.mrb[0].mxu0 %v853
    %v992 = vpop.f32.mrb[0].mxu0
    %v993 = vadd.f32 %v289, %v992
    %v994 = vpop.f32.mrb[0].mxu0
    %995 = vdwg.mxu0
    %997 = vrot.lane.b32.xlu0 %v922, 96
    %v998 = vpop.permute.xlu0 %997
    %v1000 = vadd.f32 %v924, %v998
    %v1001 = vxor.u32 %v1000, 2147483648
    %v1002 = vmul.f32 %v1001, 1.442695
    %v1003 = vpow.pop %v1002
    %v1004 = vadd.f32 %v1003, 1.0
    %v1005 = vrcp.pop %v1004
    %v1006 = vmul.f32 1.0, %v1005
    %1008 = vrot.lane.b32.xlu0 %v924, 96
    %v1009 = vpop.permute.xlu0 %1008
    %v1011 = vadd.f32 %v924, %v1009
    %v1012 = vxor.u32 %v1011, 2147483648
    %v1013 = vmul.f32 %v1012, 1.442695
    %v1014 = vpow.pop %v1013
    %v1015 = vadd.f32 %v1014, 1.0
    %v1016 = vrcp.pop %v1015
    %v1017 = vmul.f32 1.0, %v1016
    %1018 = vrot.lane.b32.xlu0 %v924, 32
    %v1019 = vpop.permute.xlu0 %1018
    %v1021 = vmul.f32 %v1006, %v1019
    %1023 = vrot.lane.b32.xlu0 %v1021, 64
    %v1024 = vpop.permute.xlu0 %1023
    %v1026 = vadd.f32 %v993, %v1024
    %v1027 = vtanh.pop %v1026
    %v1028 = vsub.f32 1.0, %v1017
    %1030 = vrot.lane.b32.xlu0 %v1027, 96
    %v1031 = vpop.permute.xlu0 %1030
    %v1033 = vmul.f32 %v1028, %v1031
    %v1034 = vmul.f32 %v1017, %v811
    %v1035 = vadd.f32 %v1033, %v1034
    %v1036 = vrot.slane %v922, 2
    %v1038 = vadd.f32 %v236, %v1036
    %v1039 = vxor.u32 %v1038, 2147483648
    %v1040 = vmul.f32 %v1039, 1.442695
    %v1041 = vpow.pop %v1040
    %v1042 = vadd.f32 %v1041, 1.0
    %v1043 = vrcp.pop %v1042
    %v1044 = vmul.f32 1.0, %v1043
    %1045 = vrot.lane.b32.xlu0 %v1036, 64
    %v1046 = vpop.permute.xlu0 %1045
    %v1048 = vmul.f32 %v1044, %v1046
    %1050 = vrot.lane.b32.xlu0 %v1048, 64
    %v1051 = vpop.permute.xlu0 %1050
    %v1053 = vadd.f32 %v236, %v1051
    %v1054 = vtanh.pop %v1053
    %v1055 = vsub.f32 1.0, %v1044
    %1057 = vrot.lane.b32.xlu0 %v1054, 96
    %v1058 = vpop.permute.xlu0 %1057
    %v1060 = vmul.f32 %v1055, %v1058
    %v1061 = vrot.slane %v840, 6
    %v1063 = vmul.f32 %v1044, %v1061
    %v1064 = vadd.f32 %v1060, %v1063
    %1066 = vrot.lane.b32.xlu0 %v1064, 96
    %v1067 = vpop.permute.xlu0 %1066
    %v1070 = vrot.slane %v1035, 2
    %1071 = vrot.lane.b32.xlu0 %v1070, 64
    %v1072 = vpop.permute.xlu0 %1071
    %v1074 = vsel %vm275, %v1067, %v1072
    %v1076 = vrot.slane %v1074, 6
    %v1077 = vsel %vm293, %v1076, 0
    %1079 = vmatprep.subr.mxu0 %v245
    %1080 = vmatpush1.msra.mxu0 %v244
    %1081 = vmatprep.subr.mxu0 %v248
    %1082 = vmatpush1.msra.mxu0 %v247
    %1083 = vmatprep.subr.mxu0 %v251
    %1084 = vmatpush1.msra.mxu0 %v250
    %1085 = vmatprep.subr.mxu0 %v254
    %1086 = vmatpush1.msra.mxu0 %v253
    %1087 = vmatprep.subr.mxu0 %v257
    %1088 = vmatpush1.msra.mxu0 %v256
    %1089 = vmatprep.subr.mxu0 %v260
    %1090 = vmatpush1.msra.mxu0 %v259
    %1091 = vmatprep.subr.mxu0 %v263
    %1092 = vmatpush1.msra.mxu0 %v262
    %1093 = vmatprep.subr.mxu0 %v266
    %1094 = vmatpush1.msra.mxu0 %v265
    %1095 = vmatprep.subr.mxu0 0.0
    %1096 = vmatpush1.msra.mxu0 0.0
    %1097 = vmatprep.subr.mxu0 0.0
    %1098 = vmatpush1.msra.mxu0 0.0
    %1099 = vmatprep.subr.mxu0 0.0
    %1100 = vmatpush1.msra.mxu0 0.0
    %1101 = vmatprep.subr.mxu0 0.0
    %1102 = vmatpush1.msra.mxu0 0.0
    %1103 = vmatprep.subr.mxu0 0.0
    %1104 = vmatpush1.msra.mxu0 0.0
    %1105 = vmatprep.subr.mxu0 0.0
    %1106 = vmatpush1.msra.mxu0 0.0
    %1107 = vmatprep.subr.mxu0 0.0
    %1108 = vmatpush1.msra.mxu0 0.0
    %1109 = vmatprep.subr.mxu0 0.0
    %1110 = vmatpush1.msra.mxu0 0.0
    %1111 = vmatprep.subr.mxu0 0.0
    %1112 = vmatpush1.msra.mxu0 0.0
    %1113 = vmatprep.subr.mxu0 0.0
    %1114 = vmatpush1.msra.mxu0 0.0
    %1115 = vmatprep.subr.mxu0 0.0
    %1116 = vmatpush1.msra.mxu0 0.0
    %1117 = vmatprep.subr.mxu0 0.0
    %1118 = vmatpush1.msra.mxu0 0.0
    %1119 = vmatprep.subr.mxu0 0.0
    %1120 = vmatpush1.msra.mxu0 0.0
    %1121 = vmatprep.subr.mxu0 0.0
    %1122 = vmatpush1.msra.mxu0 0.0
    %1123 = vmatprep.subr.mxu0 0.0
    %1124 = vmatpush1.msra.mxu0 0.0
    %1125 = vmatprep.subr.mxu0 0.0
    %1126 = vmatpush1.msra.mxu0 0.0
    %1127 = vmatprep.subr.mxu0 0.0
    %1128 = vmatpush1.msra.mxu0 0.0
    %1129 = vmatprep.subr.mxu0 0.0
    %1130 = vmatpush1.msra.mxu0 0.0
    %1131 = vmatprep.subr.mxu0 0.0
    %1132 = vmatpush1.msra.mxu0 0.0
    %1133 = vmatprep.subr.mxu0 0.0
    %1134 = vmatpush1.msra.mxu0 0.0
    %1135 = vmatprep.subr.mxu0 0.0
    %1136 = vmatpush1.msra.mxu0 0.0
    %1137 = vmatprep.subr.mxu0 0.0
    %1138 = vmatpush1.msra.mxu0 0.0
    %1139 = vmatprep.subr.mxu0 0.0
    %1140 = vmatpush1.msra.mxu0 0.0
    %1141 = vmatprep.subr.mxu0 0.0
    %1142 = vmatpush1.msra.mxu0 0.0
    %1143 = vmatprep.mubr.f32.mxu0 0.0
    %1144 = vmatmul.mubr.f32.gmra.mrb[0].mxu0 %v1077
    %v1145 = vpop.f32.mrb[0].mxu0
    %v1146 = vadd.f32 %v281, %v1145
    %v1147 = vpop.f32.mrb[0].mxu0
    %v1148 = vadd.f32 %v285, %v1147
    %1149 = vdwg.mxu0
    %1150 = vmatprep.subr.mxu0 0.0
    %1151 = vmatpush1.msra.mxu0 %v246
    %1152 = vmatprep.subr.mxu0 0.0
    %1153 = vmatpush1.msra.mxu0 %v249
    %1154 = vmatprep.subr.mxu0 0.0
    %1155 = vmatpush1.msra.mxu0 %v252
    %1156 = vmatprep.subr.mxu0 0.0
    %1157 = vmatpush1.msra.mxu0 %v255
    %1158 = vmatprep.subr.mxu0 0.0
    %1159 = vmatpush1.msra.mxu0 %v258
    %1160 = vmatprep.subr.mxu0 0.0
    %1161 = vmatpush1.msra.mxu0 %v261
    %1162 = vmatprep.subr.mxu0 0.0
    %1163 = vmatpush1.msra.mxu0 %v264
    %1164 = vmatprep.subr.mxu0 0.0
    %1165 = vmatpush1.msra.mxu0 %v267
    %1166 = vmatprep.subr.mxu0 0.0
    %1167 = vmatpush1.msra.mxu0 0.0
    %1168 = vmatprep.subr.mxu0 0.0
    %1169 = vmatpush1.msra.mxu0 0.0
    %1170 = vmatprep.subr.mxu0 0.0
    %1171 = vmatpush1.msra.mxu0 0.0
    %1172 = vmatprep.subr.mxu0 0.0
    %1173 = vmatpush1.msra.mxu0 0.0
    %1174 = vmatprep.subr.mxu0 0.0
    %1175 = vmatpush1.msra.mxu0 0.0
    %1176 = vmatprep.subr.mxu0 0.0
    %1177 = vmatpush1.msra.mxu0 0.0
    %1178 = vmatprep.subr.mxu0 0.0
    %1179 = vmatpush1.msra.mxu0 0.0
    %1180 = vmatprep.subr.mxu0 0.0
    %1181 = vmatpush1.msra.mxu0 0.0
    %1182 = vmatprep.subr.mxu0 0.0
    %1183 = vmatpush1.msra.mxu0 0.0
    %1184 = vmatprep.subr.mxu0 0.0
    %1185 = vmatpush1.msra.mxu0 0.0
    %1186 = vmatprep.subr.mxu0 0.0
    %1187 = vmatpush1.msra.mxu0 0.0
    %1188 = vmatprep.subr.mxu0 0.0
    %1189 = vmatpush1.msra.mxu0 0.0
    %1190 = vmatprep.subr.mxu0 0.0
    %1191 = vmatpush1.msra.mxu0 0.0
    %1192 = vmatprep.subr.mxu0 0.0
    %1193 = vmatpush1.msra.mxu0 0.0
    %1194 = vmatprep.subr.mxu0 0.0
    %1195 = vmatpush1.msra.mxu0 0.0
    %1196 = vmatprep.subr.mxu0 0.0
    %1197 = vmatpush1.msra.mxu0 0.0
    %1198 = vmatprep.subr.mxu0 0.0
    %1199 = vmatpush1.msra.mxu0 0.0
    %1200 = vmatprep.subr.mxu0 0.0
    %1201 = vmatpush1.msra.mxu0 0.0
    %1202 = vmatprep.subr.mxu0 0.0
    %1203 = vmatpush1.msra.mxu0 0.0
    %1204 = vmatprep.subr.mxu0 0.0
    %1205 = vmatpush1.msra.mxu0 0.0
    %1206 = vmatprep.subr.mxu0 0.0
    %1207 = vmatpush1.msra.mxu0 0.0
    %1208 = vmatprep.subr.mxu0 0.0
    %1209 = vmatpush1.msra.mxu0 0.0
    %1210 = vmatprep.subr.mxu0 0.0
    %1211 = vmatpush1.msra.mxu0 0.0
    %1212 = vmatprep.subr.mxu0 0.0
    %1213 = vmatpush1.msra.mxu0 0.0
    %1214 = vmatprep.mubr.f32.mxu0 0.0
    %1215 = vmatmul.mubr.f32.gmra.mrb[0].mxu0 %v1077
    %v1216 = vpop.f32.mrb[0].mxu0
    %v1217 = vadd.f32 %v289, %v1216
    %v1218 = vpop.f32.mrb[0].mxu0
    %1219 = vdwg.mxu0
    %1221 = vrot.lane.b32.xlu0 %v1146, 96
    %v1222 = vpop.permute.xlu0 %1221
    %v1224 = vadd.f32 %v1148, %v1222
    %v1225 = vxor.u32 %v1224, 2147483648
    %v1226 = vmul.f32 %v1225, 1.442695
    %v1227 = vpow.pop %v1226
    %v1228 = vadd.f32 %v1227, 1.0
    %v1229 = vrcp.pop %v1228
    %v1230 = vmul.f32 1.0, %v1229
    %1232 = vrot.lane.b32.xlu0 %v1148, 96
    %v1233 = vpop.permute.xlu0 %1232
    %v1235 = vadd.f32 %v1148, %v1233
    %v1236 = vxor.u32 %v1235, 2147483648
    %v1237 = vmul.f32 %v1236, 1.442695
    %v1238 = vpow.pop %v1237
    %v1239 = vadd.f32 %v1238, 1.0
    %v1240 = vrcp.pop %v1239
    %v1241 = vmul.f32 1.0, %v1240
    %1242 = vrot.lane.b32.xlu0 %v1148, 32
    %v1243 = vpop.permute.xlu0 %1242
    %v1245 = vmul.f32 %v1230, %v1243
    %1247 = vrot.lane.b32.xlu0 %v1245, 64
    %v1248 = vpop.permute.xlu0 %1247
    %v1250 = vadd.f32 %v1217, %v1248
    %v1251 = vtanh.pop %v1250
    %v1252 = vsub.f32 1.0, %v1241
    %1254 = vrot.lane.b32.xlu0 %v1251, 96
    %v1255 = vpop.permute.xlu0 %1254
    %v1257 = vmul.f32 %v1252, %v1255
    %v1258 = vmul.f32 %v1241, %v1035
    %v1259 = vadd.f32 %v1257, %v1258
    %v1260 = vadd.f32 %v241, %v1146
    %v1261 = vxor.u32 %v1260, 2147483648
    %v1262 = vmul.f32 %v1261, 1.442695
    %v1263 = vpow.pop %v1262
    %v1264 = vadd.f32 %v1263, 1.0
    %v1265 = vrcp.pop %v1264
    %v1266 = vmul.f32 1.0, %v1265
    %1267 = vrot.lane.b32.xlu0 %v1146, 64
    %v1268 = vpop.permute.xlu0 %1267
    %v1270 = vmul.f32 %v1266, %v1268
    %1272 = vrot.lane.b32.xlu0 %v1270, 64
    %v1273 = vpop.permute.xlu0 %1272
    %v1275 = vadd.f32 %v241, %v1273
    %v1276 = vtanh.pop %v1275
    %v1277 = vsub.f32 1.0, %v1266
    %1279 = vrot.lane.b32.xlu0 %v1276, 96
    %v1280 = vpop.permute.xlu0 %1279
    %v1282 = vmul.f32 %v1277, %v1280
    %v1283 = vrot.slane %v1064, 6
    %v1285 = vmul.f32 %v1266, %v1283
    %v1286 = vadd.f32 %v1282, %v1285
    %1288 = vrot.lane.b32.xlu0 %v1286, 96
    %v1289 = vpop.permute.xlu0 %1288
    %1292 = vrot.lane.b32.xlu0 %v1259, 64
    %v1293 = vpop.permute.xlu0 %1292
    %v1295 = vsel %vm275, %v1289, %v1293
    %v1297 = vsel %vm293, %v1295, 0
    %1299 = vmatprep.subr.mxu0 %v245
    %1300 = vmatpush1.msra.mxu0 %v244
    %1301 = vmatprep.subr.mxu0 %v248
    %1302 = vmatpush1.msra.mxu0 %v247
    %1303 = vmatprep.subr.mxu0 %v251
    %1304 = vmatpush1.msra.mxu0 %v250
    %1305 = vmatprep.subr.mxu0 %v254
    %1306 = vmatpush1.msra.mxu0 %v253
    %1307 = vmatprep.subr.mxu0 %v257
    %1308 = vmatpush1.msra.mxu0 %v256
    %1309 = vmatprep.subr.mxu0 %v260
    %1310 = vmatpush1.msra.mxu0 %v259
    %1311 = vmatprep.subr.mxu0 %v263
    %1312 = vmatpush1.msra.mxu0 %v262
    %1313 = vmatprep.subr.mxu0 %v266
    %1314 = vmatpush1.msra.mxu0 %v265
    %1315 = vmatprep.subr.mxu0 0.0
    %1316 = vmatpush1.msra.mxu0 0.0
    %1317 = vmatprep.subr.mxu0 0.0
    %1318 = vmatpush1.msra.mxu0 0.0
    %1319 = vmatprep.subr.mxu0 0.0
    %1320 = vmatpush1.msra.mxu0 0.0
    %1321 = vmatprep.subr.mxu0 0.0
    %1322 = vmatpush1.msra.mxu0 0.0
    %1323 = vmatprep.subr.mxu0 0.0
    %1324 = vmatpush1.msra.mxu0 0.0
    %1325 = vmatprep.subr.mxu0 0.0
    %1326 = vmatpush1.msra.mxu0 0.0
    %1327 = vmatprep.subr.mxu0 0.0
    %1328 = vmatpush1.msra.mxu0 0.0
    %1329 = vmatprep.subr.mxu0 0.0
    %1330 = vmatpush1.msra.mxu0 0.0
    %1331 = vmatprep.subr.mxu0 0.0
    %1332 = vmatpush1.msra.mxu0 0.0
    %1333 = vmatprep.subr.mxu0 0.0
    %1334 = vmatpush1.msra.mxu0 0.0
    %1335 = vmatprep.subr.mxu0 0.0
    %1336 = vmatpush1.msra.mxu0 0.0
    %1337 = vmatprep.subr.mxu0 0.0
    %1338 = vmatpush1.msra.mxu0 0.0
    %1339 = vmatprep.subr.mxu0 0.0
    %1340 = vmatpush1.msra.mxu0 0.0
    %1341 = vmatprep.subr.mxu0 0.0
    %1342 = vmatpush1.msra.mxu0 0.0
    %1343 = vmatprep.subr.mxu0 0.0
    %1344 = vmatpush1.msra.mxu0 0.0
    %1345 = vmatprep.subr.mxu0 0.0
    %1346 = vmatpush1.msra.mxu0 0.0
    %1347 = vmatprep.subr.mxu0 0.0
    %1348 = vmatpush1.msra.mxu0 0.0
    %1349 = vmatprep.subr.mxu0 0.0
    %1350 = vmatpush1.msra.mxu0 0.0
    %1351 = vmatprep.subr.mxu0 0.0
    %1352 = vmatpush1.msra.mxu0 0.0
    %1353 = vmatprep.subr.mxu0 0.0
    %1354 = vmatpush1.msra.mxu0 0.0
    %1355 = vmatprep.subr.mxu0 0.0
    %1356 = vmatpush1.msra.mxu0 0.0
    %1357 = vmatprep.subr.mxu0 0.0
    %1358 = vmatpush1.msra.mxu0 0.0
    %1359 = vmatprep.subr.mxu0 0.0
    %1360 = vmatpush1.msra.mxu0 0.0
    %1361 = vmatprep.subr.mxu0 0.0
    %1362 = vmatpush1.msra.mxu0 0.0
    %1363 = vmatprep.mubr.f32.mxu0 0.0
    %1364 = vmatmul.mubr.f32.gmra.mrb[0].mxu0 %v1297
    %v1365 = vpop.f32.mrb[0].mxu0
    %v1366 = vadd.f32 %v281, %v1365
    %v1367 = vpop.f32.mrb[0].mxu0
    %v1368 = vadd.f32 %v285, %v1367
    %1369 = vdwg.mxu0
    %1370 = vmatprep.subr.mxu0 0.0
    %1371 = vmatpush1.msra.mxu0 %v246
    %1372 = vmatprep.subr.mxu0 0.0
    %1373 = vmatpush1.msra.mxu0 %v249
    %1374 = vmatprep.subr.mxu0 0.0
    %1375 = vmatpush1.msra.mxu0 %v252
    %1376 = vmatprep.subr.mxu0 0.0
    %1377 = vmatpush1.msra.mxu0 %v255
    %1378 = vmatprep.subr.mxu0 0.0
    %1379 = vmatpush1.msra.mxu0 %v258
    %1380 = vmatprep.subr.mxu0 0.0
    %1381 = vmatpush1.msra.mxu0 %v261
    %1382 = vmatprep.subr.mxu0 0.0
    %1383 = vmatpush1.msra.mxu0 %v264
    %1384 = vmatprep.subr.mxu0 0.0
    %1385 = vmatpush1.msra.mxu0 %v267
    %1386 = vmatprep.subr.mxu0 0.0
    %1387 = vmatpush1.msra.mxu0 0.0
    %1388 = vmatprep.subr.mxu0 0.0
    %1389 = vmatpush1.msra.mxu0 0.0
    %1390 = vmatprep.subr.mxu0 0.0
    %1391 = vmatpush1.msra.mxu0 0.0
    %1392 = vmatprep.subr.mxu0 0.0
    %1393 = vmatpush1.msra.mxu0 0.0
    %1394 = vmatprep.subr.mxu0 0.0
    %1395 = vmatpush1.msra.mxu0 0.0
    %1396 = vmatprep.subr.mxu0 0.0
    %1397 = vmatpush1.msra.mxu0 0.0
    %1398 = vmatprep.subr.mxu0 0.0
    %1399 = vmatpush1.msra.mxu0 0.0
    %1400 = vmatprep.subr.mxu0 0.0
    %1401 = vmatpush1.msra.mxu0 0.0
    %1402 = vmatprep.subr.mxu0 0.0
    %1403 = vmatpush1.msra.mxu0 0.0
    %1404 = vmatprep.subr.mxu0 0.0
    %1405 = vmatpush1.msra.mxu0 0.0
    %1406 = vmatprep.subr.mxu0 0.0
    %1407 = vmatpush1.msra.mxu0 0.0
    %1408 = vmatprep.subr.mxu0 0.0
    %1409 = vmatpush1.msra.mxu0 0.0
    %1410 = vmatprep.subr.mxu0 0.0
    %1411 = vmatpush1.msra.mxu0 0.0
    %1412 = vmatprep.subr.mxu0 0.0
    %1413 = vmatpush1.msra.mxu0 0.0
    %1414 = vmatprep.subr.mxu0 0.0
    %1415 = vmatpush1.msra.mxu0 0.0
    %1416 = vmatprep.subr.mxu0 0.0
    %1417 = vmatpush1.msra.mxu0 0.0
    %1418 = vmatprep.subr.mxu0 0.0
    %1419 = vmatpush1.msra.mxu0 0.0
    %1420 = vmatprep.subr.mxu0 0.0
    %1421 = vmatpush1.msra.mxu0 0.0
    %1422 = vmatprep.subr.mxu0 0.0
    %1423 = vmatpush1.msra.mxu0 0.0
    %1424 = vmatprep.subr.mxu0 0.0
    %1425 = vmatpush1.msra.mxu0 0.0
    %1426 = vmatprep.subr.mxu0 0.0
    %1427 = vmatpush1.msra.mxu0 0.0
    %1428 = vmatprep.subr.mxu0 0.0
    %1429 = vmatpush1.msra.mxu0 0.0
    %1430 = vmatprep.subr.mxu0 0.0
    %1431 = vmatpush1.msra.mxu0 0.0
    %1432 = vmatprep.subr.mxu0 0.0
    %1433 = vmatpush1.msra.mxu0 0.0
    %1434 = vmatprep.mubr.f32.mxu0 0.0
    %1435 = vmatmul.mubr.f32.gmra.mrb[0].mxu0 %v1297
    %v1436 = vpop.f32.mrb[0].mxu0
    %v1437 = vadd.f32 %v289, %v1436
    %v1438 = vpop.f32.mrb[0].mxu0
    %1439 = vdwg.mxu0
    %1441 = vrot.lane.b32.xlu0 %v1366, 96
    %v1442 = vpop.permute.xlu0 %1441
    %v1444 = vadd.f32 %v1368, %v1442
    %v1445 = vxor.u32 %v1444, 2147483648
    %v1446 = vmul.f32 %v1445, 1.442695
    %v1447 = vpow.pop %v1446
    %v1448 = vadd.f32 %v1447, 1.0
    %v1449 = vrcp.pop %v1448
    %v1450 = vmul.f32 1.0, %v1449
    %1452 = vrot.lane.b32.xlu0 %v1368, 96
    %v1453 = vpop.permute.xlu0 %1452
    %v1455 = vadd.f32 %v1368, %v1453
    %v1456 = vxor.u32 %v1455, 2147483648
    %v1457 = vmul.f32 %v1456, 1.442695
    %v1458 = vpow.pop %v1457
    %v1459 = vadd.f32 %v1458, 1.0
    %v1460 = vrcp.pop %v1459
    %v1461 = vmul.f32 1.0, %v1460
    %1462 = vrot.lane.b32.xlu0 %v1368, 32
    %v1463 = vpop.permute.xlu0 %1462
    %v1465 = vmul.f32 %v1450, %v1463
    %1467 = vrot.lane.b32.xlu0 %v1465, 64
    %v1468 = vpop.permute.xlu0 %1467
    %v1470 = vadd.f32 %v1437, %v1468
    %v1471 = vtanh.pop %v1470
    %v1472 = vsub.f32 1.0, %v1461
    %1474 = vrot.lane.b32.xlu0 %v1471, 96
    %v1475 = vpop.permute.xlu0 %1474
    %v1477 = vmul.f32 %v1472, %v1475
    %v1478 = vmul.f32 %v1461, %v1259
    %v1479 = vadd.f32 %v1477, %v1478
    %v1480 = vrot.slane %v1366, 6
    %v1482 = vadd.f32 %v241, %v1480
    %v1483 = vxor.u32 %v1482, 2147483648
    %v1484 = vmul.f32 %v1483, 1.442695
    %v1485 = vpow.pop %v1484
    %v1486 = vadd.f32 %v1485, 1.0
    %v1487 = vrcp.pop %v1486
    %v1488 = vmul.f32 1.0, %v1487
    %1489 = vrot.lane.b32.xlu0 %v1480, 64
    %v1490 = vpop.permute.xlu0 %1489
    %v1492 = vmul.f32 %v1488, %v1490
    %1494 = vrot.lane.b32.xlu0 %v1492, 64
    %v1495 = vpop.permute.xlu0 %1494
    %v1497 = vadd.f32 %v241, %v1495
    %v1498 = vtanh.pop %v1497
    %v1499 = vsub.f32 1.0, %v1488
    %1501 = vrot.lane.b32.xlu0 %v1498, 96
    %v1502 = vpop.permute.xlu0 %1501
    %v1504 = vmul.f32 %v1499, %v1502
    %v1505 = vrot.slane %v1286, 6
    %v1507 = vmul.f32 %v1488, %v1505
    %v1508 = vadd.f32 %v1504, %v1507
    %1510 = vrot.lane.b32.xlu0 %v1508, 96
    %v1511 = vpop.permute.xlu0 %1510
    %v1514 = vrot.slane %v1479, 6
    %1515 = vrot.lane.b32.xlu0 %v1514, 64
    %v1516 = vpop.permute.xlu0 %1515
    %v1518 = vsel %vm275, %v1511, %v1516
    %v1520 = vrot.slane %v1518, 2
    %v1521 = vsel %vm293, %v1520, 0
    %1523 = vmatprep.subr.mxu0 %v245
    %1524 = vmatpush1.msra.mxu0 %v244
    %1525 = vmatprep.subr.mxu0 %v248
    %1526 = vmatpush1.msra.mxu0 %v247
    %1527 = vmatprep.subr.mxu0 %v251
    %1528 = vmatpush1.msra.mxu0 %v250
    %1529 = vmatprep.subr.mxu0 %v254
    %1530 = vmatpush1.msra.mxu0 %v253
    %1531 = vmatprep.subr.mxu0 %v257
    %1532 = vmatpush1.msra.mxu0 %v256
    %1533 = vmatprep.subr.mxu0 %v260
    %1534 = vmatpush1.msra.mxu0 %v259
    %1535 = vmatprep.subr.mxu0 %v263
    %1536 = vmatpush1.msra.mxu0 %v262
    %1537 = vmatprep.subr.mxu0 %v266
    %1538 = vmatpush1.msra.mxu0 %v265
    %1539 = vmatprep.subr.mxu0 0.0
    %1540 = vmatpush1.msra.mxu0 0.0
    %1541 = vmatprep.subr.mxu0 0.0
    %1542 = vmatpush1.msra.mxu0 0.0
    %1543 = vmatprep.subr.mxu0 0.0
    %1544 = vmatpush1.msra.mxu0 0.0
    %1545 = vmatprep.subr.mxu0 0.0
    %1546 = vmatpush1.msra.mxu0 0.0
    %1547 = vmatprep.subr.mxu0 0.0
    %1548 = vmatpush1.msra.mxu0 0.0
    %1549 = vmatprep.subr.mxu0 0.0
    %1550 = vmatpush1.msra.mxu0 0.0
    %1551 = vmatprep.subr.mxu0 0.0
    %1552 = vmatpush1.msra.mxu0 0.0
    %1553 = vmatprep.subr.mxu0 0.0
    %1554 = vmatpush1.msra.mxu0 0.0
    %1555 = vmatprep.subr.mxu0 0.0
    %1556 = vmatpush1.msra.mxu0 0.0
    %1557 = vmatprep.subr.mxu0 0.0
    %1558 = vmatpush1.msra.mxu0 0.0
    %1559 = vmatprep.subr.mxu0 0.0
    %1560 = vmatpush1.msra.mxu0 0.0
    %1561 = vmatprep.subr.mxu0 0.0
    %1562 = vmatpush1.msra.mxu0 0.0
    %1563 = vmatprep.subr.mxu0 0.0
    %1564 = vmatpush1.msra.mxu0 0.0
    %1565 = vmatprep.subr.mxu0 0.0
    %1566 = vmatpush1.msra.mxu0 0.0
    %1567 = vmatprep.subr.mxu0 0.0
    %1568 = vmatpush1.msra.mxu0 0.0
    %1569 = vmatprep.subr.mxu0 0.0
    %1570 = vmatpush1.msra.mxu0 0.0
    %1571 = vmatprep.subr.mxu0 0.0
    %1572 = vmatpush1.msra.mxu0 0.0
    %1573 = vmatprep.subr.mxu0 0.0
    %1574 = vmatpush1.msra.mxu0 0.0
    %1575 = vmatprep.subr.mxu0 0.0
    %1576 = vmatpush1.msra.mxu0 0.0
    %1577 = vmatprep.subr.mxu0 0.0
    %1578 = vmatpush1.msra.mxu0 0.0
    %1579 = vmatprep.subr.mxu0 0.0
    %1580 = vmatpush1.msra.mxu0 0.0
    %1581 = vmatprep.subr.mxu0 0.0
    %1582 = vmatpush1.msra.mxu0 0.0
    %1583 = vmatprep.subr.mxu0 0.0
    %1584 = vmatpush1.msra.mxu0 0.0
    %1585 = vmatprep.subr.mxu0 0.0
    %1586 = vmatpush1.msra.mxu0 0.0
    %1587 = vmatprep.mubr.f32.mxu0 0.0
    %1588 = vmatmul.mubr.f32.gmra.mrb[0].mxu0 %v1521
    %v1589 = vpop.f32.mrb[0].mxu0
    %v1590 = vadd.f32 %v281, %v1589
    %v1591 = vpop.f32.mrb[0].mxu0
    %v1592 = vadd.f32 %v285, %v1591
    %1593 = vdwg.mxu0
    %1594 = vmatprep.subr.mxu0 0.0
    %1595 = vmatpush1.msra.mxu0 %v246
    %1596 = vmatprep.subr.mxu0 0.0
    %1597 = vmatpush1.msra.mxu0 %v249
    %1598 = vmatprep.subr.mxu0 0.0
    %1599 = vmatpush1.msra.mxu0 %v252
    %1600 = vmatprep.subr.mxu0 0.0
    %1601 = vmatpush1.msra.mxu0 %v255
    %1602 = vmatprep.subr.mxu0 0.0
    %1603 = vmatpush1.msra.mxu0 %v258
    %1604 = vmatprep.subr.mxu0 0.0
    %1605 = vmatpush1.msra.mxu0 %v261
    %1606 = vmatprep.subr.mxu0 0.0
    %1607 = vmatpush1.msra.mxu0 %v264
    %1608 = vmatprep.subr.mxu0 0.0
    %1609 = vmatpush1.msra.mxu0 %v267
    %1610 = vmatprep.subr.mxu0 0.0
    %1611 = vmatpush1.msra.mxu0 0.0
    %1612 = vmatprep.subr.mxu0 0.0
    %1613 = vmatpush1.msra.mxu0 0.0
    %1614 = vmatprep.subr.mxu0 0.0
    %1615 = vmatpush1.msra.mxu0 0.0
    %1616 = vmatprep.subr.mxu0 0.0
    %1617 = vmatpush1.msra.mxu0 0.0
    %1618 = vmatprep.subr.mxu0 0.0
    %1619 = vmatpush1.msra.mxu0 0.0
    %1620 = vmatprep.subr.mxu0 0.0
    %1621 = vmatpush1.msra.mxu0 0.0
    %1622 = vmatprep.subr.mxu0 0.0
    %1623 = vmatpush1.msra.mxu0 0.0
    %1624 = vmatprep.subr.mxu0 0.0
    %1625 = vmatpush1.msra.mxu0 0.0
    %1626 = vmatprep.subr.mxu0 0.0
    %1627 = vmatpush1.msra.mxu0 0.0
    %1628 = vmatprep.subr.mxu0 0.0
    %1629 = vmatpush1.msra.mxu0 0.0
    %1630 = vmatprep.subr.mxu0 0.0
    %1631 = vmatpush1.msra.mxu0 0.0
    %1632 = vmatprep.subr.mxu0 0.0
    %1633 = vmatpush1.msra.mxu0 0.0
    %1634 = vmatprep.subr.mxu0 0.0
    %1635 = vmatpush1.msra.mxu0 0.0
    %1636 = vmatprep.subr.mxu0 0.0
    %1637 = vmatpush1.msra.mxu0 0.0
    %1638 = vmatprep.subr.mxu0 0.0
    %1639 = vmatpush1.msra.mxu0 0.0
    %1640 = vmatprep.subr.mxu0 0.0
    %1641 = vmatpush1.msra.mxu0 0.0
    %1642 = vmatprep.subr.mxu0 0.0
    %1643 = vmatpush1.msra.mxu0 0.0
    %1644 = vmatprep.subr.mxu0 0.0
    %1645 = vmatpush1.msra.mxu0 0.0
    %1646 = vmatprep.subr.mxu0 0.0
    %1647 = vmatpush1.msra.mxu0 0.0
    %1648 = vmatprep.subr.mxu0 0.0
    %1649 = vmatpush1.msra.mxu0 0.0
    %1650 = vmatprep.subr.mxu0 0.0
    %1651 = vmatpush1.msra.mxu0 0.0
    %1652 = vmatprep.subr.mxu0 0.0
    %1653 = vmatpush1.msra.mxu0 0.0
    %1654 = vmatprep.subr.mxu0 0.0
    %1655 = vmatpush1.msra.mxu0 0.0
    %1656 = vmatprep.subr.mxu0 0.0
    %1657 = vmatpush1.msra.mxu0 0.0
    %1658 = vmatprep.mubr.f32.mxu0 0.0
    %1659 = vmatmul.mubr.f32.gmra.mrb[0].mxu0 %v1521
    %v1660 = vpop.f32.mrb[0].mxu0
    %v1661 = vadd.f32 %v289, %v1660
    %v1662 = vpop.f32.mrb[0].mxu0
    %1663 = vdwg.mxu0
    %1665 = vrot.lane.b32.xlu0 %v1590, 96
    %v1666 = vpop.permute.xlu0 %1665
    %v1668 = vadd.f32 %v1592, %v1666
    %v1669 = vxor.u32 %v1668, 2147483648
    %v1670 = vmul.f32 %v1669, 1.442695
    %v1671 = vpow.pop %v1670
    %v1672 = vadd.f32 %v1671, 1.0
    %v1673 = vrcp.pop %v1672
    %v1674 = vmul.f32 1.0, %v1673
    %1676 = vrot.lane.b32.xlu0 %v1592, 96
    %v1677 = vpop.permute.xlu0 %1676
    %v1679 = vadd.f32 %v1592, %v1677
    %v1680 = vxor.u32 %v1679, 2147483648
    %v1681 = vmul.f32 %v1680, 1.442695
    %v1682 = vpow.pop %v1681
    %v1683 = vadd.f32 %v1682, 1.0
    %v1684 = vrcp.pop %v1683
    %v1685 = vmul.f32 1.0, %v1684
    %1686 = vrot.lane.b32.xlu0 %v1592, 32
    %v1687 = vpop.permute.xlu0 %1686
    %v1689 = vmul.f32 %v1674, %v1687
    %1691 = vrot.lane.b32.xlu0 %v1689, 64
    %v1692 = vpop.permute.xlu0 %1691
    %v1694 = vadd.f32 %v1661, %v1692
    %v1695 = vtanh.pop %v1694
    %v1696 = vsub.f32 1.0, %v1685
    %1698 = vrot.lane.b32.xlu0 %v1695, 96
    %v1699 = vpop.permute.xlu0 %1698
    %v1701 = vmul.f32 %v1696, %v1699
    %v1702 = vmul.f32 %v1685, %v1479
    %v1703 = vadd.f32 %v1701, %v1702
    %v1704 = vrot.slane %v1590, 4
    %v1706 = vadd.f32 %v241, %v1704
    %v1707 = vxor.u32 %v1706, 2147483648
    %v1708 = vmul.f32 %v1707, 1.442695
    %v1709 = vpow.pop %v1708
    %v1710 = vadd.f32 %v1709, 1.0
    %v1711 = vrcp.pop %v1710
    %v1712 = vmul.f32 1.0, %v1711
    %1713 = vrot.lane.b32.xlu0 %v1704, 64
    %v1714 = vpop.permute.xlu0 %1713
    %v1716 = vmul.f32 %v1712, %v1714
    %1718 = vrot.lane.b32.xlu0 %v1716, 64
    %v1719 = vpop.permute.xlu0 %1718
    %v1721 = vadd.f32 %v241, %v1719
    %v1722 = vtanh.pop %v1721
    %v1723 = vsub.f32 1.0, %v1712
    %1725 = vrot.lane.b32.xlu0 %v1722, 96
    %v1726 = vpop.permute.xlu0 %1725
    %v1728 = vmul.f32 %v1723, %v1726
    %v1729 = vrot.slane %v1508, 6
    %v1731 = vmul.f32 %v1712, %v1729
    %v1732 = vadd.f32 %v1728, %v1731
    %1734 = vrot.lane.b32.xlu0 %v1732, 96
    %v1735 = vpop.permute.xlu0 %1734
    %v1738 = vrot.slane %v1703, 4
    %1739 = vrot.lane.b32.xlu0 %v1738, 64
    %v1740 = vpop.permute.xlu0 %1739
    %v1742 = vsel %vm275, %v1735, %v1740
    %v1744 = vrot.slane %v1742, 4
    %v1745 = vsel %vm293, %v1744, 0
    %1747 = vmatprep.subr.mxu0 %v245
    %1748 = vmatpush1.msra.mxu0 %v244
    %1749 = vmatprep.subr.mxu0 %v248
    %1750 = vmatpush1.msra.mxu0 %v247
    %1751 = vmatprep.subr.mxu0 %v251
    %1752 = vmatpush1.msra.mxu0 %v250
    %1753 = vmatprep.subr.mxu0 %v254
    %1754 = vmatpush1.msra.mxu0 %v253
    %1755 = vmatprep.subr.mxu0 %v257
    %1756 = vmatpush1.msra.mxu0 %v256
    %1757 = vmatprep.subr.mxu0 %v260
    %1758 = vmatpush1.msra.mxu0 %v259
    %1759 = vmatprep.subr.mxu0 %v263
    %1760 = vmatpush1.msra.mxu0 %v262
    %1761 = vmatprep.subr.mxu0 %v266
    %1762 = vmatpush1.msra.mxu0 %v265
    %1763 = vmatprep.subr.mxu0 0.0
    %1764 = vmatpush1.msra.mxu0 0.0
    %1765 = vmatprep.subr.mxu0 0.0
    %1766 = vmatpush1.msra.mxu0 0.0
    %1767 = vmatprep.subr.mxu0 0.0
    %1768 = vmatpush1.msra.mxu0 0.0
    %1769 = vmatprep.subr.mxu0 0.0
    %1770 = vmatpush1.msra.mxu0 0.0
    %1771 = vmatprep.subr.mxu0 0.0
    %1772 = vmatpush1.msra.mxu0 0.0
    %1773 = vmatprep.subr.mxu0 0.0
    %1774 = vmatpush1.msra.mxu0 0.0
    %1775 = vmatprep.subr.mxu0 0.0
    %1776 = vmatpush1.msra.mxu0 0.0
    %1777 = vmatprep.subr.mxu0 0.0
    %1778 = vmatpush1.msra.mxu0 0.0
    %1779 = vmatprep.subr.mxu0 0.0
    %1780 = vmatpush1.msra.mxu0 0.0
    %1781 = vmatprep.subr.mxu0 0.0
    %1782 = vmatpush1.msra.mxu0 0.0
    %1783 = vmatprep.subr.mxu0 0.0
    %1784 = vmatpush1.msra.mxu0 0.0
    %1785 = vmatprep.subr.mxu0 0.0
    %1786 = vmatpush1.msra.mxu0 0.0
    %1787 = vmatprep.subr.mxu0 0.0
    %1788 = vmatpush1.msra.mxu0 0.0
    %1789 = vmatprep.subr.mxu0 0.0
    %1790 = vmatpush1.msra.mxu0 0.0
    %1791 = vmatprep.subr.mxu0 0.0
    %1792 = vmatpush1.msra.mxu0 0.0
    %1793 = vmatprep.subr.mxu0 0.0
    %1794 = vmatpush1.msra.mxu0 0.0
    %1795 = vmatprep.subr.mxu0 0.0
    %1796 = vmatpush1.msra.mxu0 0.0
    %1797 = vmatprep.subr.mxu0 0.0
    %1798 = vmatpush1.msra.mxu0 0.0
    %1799 = vmatprep.subr.mxu0 0.0
    %1800 = vmatpush1.msra.mxu0 0.0
    %1801 = vmatprep.subr.mxu0 0.0
    %1802 = vmatpush1.msra.mxu0 0.0
    %1803 = vmatprep.subr.mxu0 0.0
    %1804 = vmatpush1.msra.mxu0 0.0
    %1805 = vmatprep.subr.mxu0 0.0
    %1806 = vmatpush1.msra.mxu0 0.0
    %1807 = vmatprep.subr.mxu0 0.0
    %1808 = vmatpush1.msra.mxu0 0.0
    %1809 = vmatprep.subr.mxu0 0.0
    %1810 = vmatpush1.msra.mxu0 0.0
    %1811 = vmatprep.mubr.f32.mxu0 0.0
    %1812 = vmatmul.mubr.f32.gmra.mrb[0].mxu0 %v1745
    %v1813 = vpop.f32.mrb[0].mxu0
    %v1814 = vadd.f32 %v281, %v1813
    %v1815 = vpop.f32.mrb[0].mxu0
    %v1816 = vadd.f32 %v285, %v1815
    %1817 = vdwg.mxu0
    %1818 = vmatprep.subr.mxu0 0.0
    %1819 = vmatpush1.msra.mxu0 %v246
    %1820 = vmatprep.subr.mxu0 0.0
    %1821 = vmatpush1.msra.mxu0 %v249
    %1822 = vmatprep.subr.mxu0 0.0
    %1823 = vmatpush1.msra.mxu0 %v252
    %1824 = vmatprep.subr.mxu0 0.0
    %1825 = vmatpush1.msra.mxu0 %v255
    %1826 = vmatprep.subr.mxu0 0.0
    %1827 = vmatpush1.msra.mxu0 %v258
    %1828 = vmatprep.subr.mxu0 0.0
    %1829 = vmatpush1.msra.mxu0 %v261
    %1830 = vmatprep.subr.mxu0 0.0
    %1831 = vmatpush1.msra.mxu0 %v264
    %1832 = vmatprep.subr.mxu0 0.0
    %1833 = vmatpush1.msra.mxu0 %v267
    %1834 = vmatprep.subr.mxu0 0.0
    %1835 = vmatpush1.msra.mxu0 0.0
    %1836 = vmatprep.subr.mxu0 0.0
    %1837 = vmatpush1.msra.mxu0 0.0
    %1838 = vmatprep.subr.mxu0 0.0
    %1839 = vmatpush1.msra.mxu0 0.0
    %1840 = vmatprep.subr.mxu0 0.0
    %1841 = vmatpush1.msra.mxu0 0.0
    %1842 = vmatprep.subr.mxu0 0.0
    %1843 = vmatpush1.msra.mxu0 0.0
    %1844 = vmatprep.subr.mxu0 0.0
    %1845 = vmatpush1.msra.mxu0 0.0
    %1846 = vmatprep.subr.mxu0 0.0
    %1847 = vmatpush1.msra.mxu0 0.0
    %1848 = vmatprep.subr.mxu0 0.0
    %1849 = vmatpush1.msra.mxu0 0.0
    %1850 = vmatprep.subr.mxu0 0.0
    %1851 = vmatpush1.msra.mxu0 0.0
    %1852 = vmatprep.subr.mxu0 0.0
    %1853 = vmatpush1.msra.mxu0 0.0
    %1854 = vmatprep.subr.mxu0 0.0
    %1855 = vmatpush1.msra.mxu0 0.0
    %1856 = vmatprep.subr.mxu0 0.0
    %1857 = vmatpush1.msra.mxu0 0.0
    %1858 = vmatprep.subr.mxu0 0.0
    %1859 = vmatpush1.msra.mxu0 0.0
    %1860 = vmatprep.subr.mxu0 0.0
    %1861 = vmatpush1.msra.mxu0 0.0
    %1862 = vmatprep.subr.mxu0 0.0
    %1863 = vmatpush1.msra.mxu0 0.0
    %1864 = vmatprep.subr.mxu0 0.0
    %1865 = vmatpush1.msra.mxu0 0.0
    %1866 = vmatprep.subr.mxu0 0.0
    %1867 = vmatpush1.msra.mxu0 0.0
    %1868 = vmatprep.subr.mxu0 0.0
    %1869 = vmatpush1.msra.mxu0 0.0
    %1870 = vmatprep.subr.mxu0 0.0
    %1871 = vmatpush1.msra.mxu0 0.0
    %1872 = vmatprep.subr.mxu0 0.0
    %1873 = vmatpush1.msra.mxu0 0.0
    %1874 = vmatprep.subr.mxu0 0.0
    %1875 = vmatpush1.msra.mxu0 0.0
    %1876 = vmatprep.subr.mxu0 0.0
    %1877 = vmatpush1.msra.mxu0 0.0
    %1878 = vmatprep.subr.mxu0 0.0
    %1879 = vmatpush1.msra.mxu0 0.0
    %1880 = vmatprep.subr.mxu0 0.0
    %1881 = vmatpush1.msra.mxu0 0.0
    %1882 = vmatprep.mubr.f32.mxu0 0.0
    %1883 = vmatmul.mubr.f32.gmra.mrb[0].mxu0 %v1745
    %v1884 = vpop.f32.mrb[0].mxu0
    %v1885 = vadd.f32 %v289, %v1884
    %v1886 = vpop.f32.mrb[0].mxu0
    %1887 = vdwg.mxu0
    %1889 = vrot.lane.b32.xlu0 %v1814, 96
    %v1890 = vpop.permute.xlu0 %1889
    %v1892 = vadd.f32 %v1816, %v1890
    %v1893 = vxor.u32 %v1892, 2147483648
    %v1894 = vmul.f32 %v1893, 1.442695
    %v1895 = vpow.pop %v1894
    %v1896 = vadd.f32 %v1895, 1.0
    %v1897 = vrcp.pop %v1896
    %v1898 = vmul.f32 1.0, %v1897
    %1900 = vrot.lane.b32.xlu0 %v1816, 96
    %v1901 = vpop.permute.xlu0 %1900
    %v1903 = vadd.f32 %v1816, %v1901
    %v1904 = vxor.u32 %v1903, 2147483648
    %v1905 = vmul.f32 %v1904, 1.442695
    %v1906 = vpow.pop %v1905
    %v1907 = vadd.f32 %v1906, 1.0
    %v1908 = vrcp.pop %v1907
    %v1909 = vmul.f32 1.0, %v1908
    %1910 = vrot.lane.b32.xlu0 %v1816, 32
    %v1911 = vpop.permute.xlu0 %1910
    %v1913 = vmul.f32 %v1898, %v1911
    %1915 = vrot.lane.b32.xlu0 %v1913, 64
    %v1916 = vpop.permute.xlu0 %1915
    %v1918 = vadd.f32 %v1885, %v1916
    %v1919 = vtanh.pop %v1918
    %v1920 = vsub.f32 1.0, %v1909
    %1922 = vrot.lane.b32.xlu0 %v1919, 96
    %v1923 = vpop.permute.xlu0 %1922
    %v1925 = vmul.f32 %v1920, %v1923
    %v1926 = vmul.f32 %v1909, %v1703
    %v1927 = vadd.f32 %v1925, %v1926
    %v1928 = vrot.slane %v1814, 2
    %v1930 = vadd.f32 %v241, %v1928
    %v1931 = vxor.u32 %v1930, 2147483648
    %v1932 = vmul.f32 %v1931, 1.442695
    %v1933 = vpow.pop %v1932
    %v1934 = vadd.f32 %v1933, 1.0
    %v1935 = vrcp.pop %v1934
    %v1936 = vmul.f32 1.0, %v1935
    %1937 = vrot.lane.b32.xlu0 %v1928, 64
    %v1938 = vpop.permute.xlu0 %1937
    %v1940 = vmul.f32 %v1936, %v1938
    %1942 = vrot.lane.b32.xlu0 %v1940, 64
    %v1943 = vpop.permute.xlu0 %1942
    %v1945 = vadd.f32 %v241, %v1943
    %v1946 = vtanh.pop %v1945
    %v1947 = vsub.f32 1.0, %v1936
    %1949 = vrot.lane.b32.xlu0 %v1946, 96
    %v1950 = vpop.permute.xlu0 %1949
    %v1952 = vmul.f32 %v1947, %v1950
    %v1953 = vrot.slane %v1732, 6
    %v1955 = vmul.f32 %v1936, %v1953
    %v1956 = vadd.f32 %v1952, %v1955
    %1958 = vrot.lane.b32.xlu0 %v1956, 96
    %v1959 = vpop.permute.xlu0 %1958
    %v1962 = vrot.slane %v1927, 2
    %1963 = vrot.lane.b32.xlu0 %v1962, 64
    %v1964 = vpop.permute.xlu0 %1963
    %v1966 = vsel %vm275, %v1959, %v1964
    %v1968 = vrot.slane %v1966, 6
    %v1969 = vsel %vm293, %v1968, 0
    %1971 = vmatprep.subr.mxu0 %v245
    %1972 = vmatpush1.msra.mxu0 %v244
    %1973 = vmatprep.subr.mxu0 %v248
    %1974 = vmatpush1.msra.mxu0 %v247
    %1975 = vmatprep.subr.mxu0 %v251
    %1976 = vmatpush1.msra.mxu0 %v250
    %1977 = vmatprep.subr.mxu0 %v254
    %1978 = vmatpush1.msra.mxu0 %v253
    %1979 = vmatprep.subr.mxu0 %v257
    %1980 = vmatpush1.msra.mxu0 %v256
    %1981 = vmatprep.subr.mxu0 %v260
    %1982 = vmatpush1.msra.mxu0 %v259
    %1983 = vmatprep.subr.mxu0 %v263
    %1984 = vmatpush1.msra.mxu0 %v262
    %1985 = vmatprep.subr.mxu0 %v266
    %1986 = vmatpush1.msra.mxu0 %v265
    %1987 = vmatprep.subr.mxu0 0.0
    %1988 = vmatpush1.msra.mxu0 0.0
    %1989 = vmatprep.subr.mxu0 0.0
    %1990 = vmatpush1.msra.mxu0 0.0
    %1991 = vmatprep.subr.mxu0 0.0
    %1992 = vmatpush1.msra.mxu0 0.0
    %1993 = vmatprep.subr.mxu0 0.0
    %1994 = vmatpush1.msra.mxu0 0.0
    %1995 = vmatprep.subr.mxu0 0.0
    %1996 = vmatpush1.msra.mxu0 0.0
    %1997 = vmatprep.subr.mxu0 0.0
    %1998 = vmatpush1.msra.mxu0 0.0
    %1999 = vmatprep.subr.mxu0 0.0
    %2000 = vmatpush1.msra.mxu0 0.0
    %2001 = vmatprep.subr.mxu0 0.0
    %2002 = vmatpush1.msra.mxu0 0.0
    %2003 = vmatprep.subr.mxu0 0.0
    %2004 = vmatpush1.msra.mxu0 0.0
    %2005 = vmatprep.subr.mxu0 0.0
    %2006 = vmatpush1.msra.mxu0 0.0
    %2007 = vmatprep.subr.mxu0 0.0
    %2008 = vmatpush1.msra.mxu0 0.0
    %2009 = vmatprep.subr.mxu0 0.0
    %2010 = vmatpush1.msra.mxu0 0.0
    %2011 = vmatprep.subr.mxu0 0.0
    %2012 = vmatpush1.msra.mxu0 0.0
    %2013 = vmatprep.subr.mxu0 0.0
    %2014 = vmatpush1.msra.mxu0 0.0
    %2015 = vmatprep.subr.mxu0 0.0
    %2016 = vmatpush1.msra.mxu0 0.0
    %2017 = vmatprep.subr.mxu0 0.0
    %2018 = vmatpush1.msra.mxu0 0.0
    %2019 = vmatprep.subr.mxu0 0.0
    %2020 = vmatpush1.msra.mxu0 0.0
    %2021 = vmatprep.subr.mxu0 0.0
    %2022 = vmatpush1.msra.mxu0 0.0
    %2023 = vmatprep.subr.mxu0 0.0
    %2024 = vmatpush1.msra.mxu0 0.0
    %2025 = vmatprep.subr.mxu0 0.0
    %2026 = vmatpush1.msra.mxu0 0.0
    %2027 = vmatprep.subr.mxu0 0.0
    %2028 = vmatpush1.msra.mxu0 0.0
    %2029 = vmatprep.subr.mxu0 0.0
    %2030 = vmatpush1.msra.mxu0 0.0
    %2031 = vmatprep.subr.mxu0 0.0
    %2032 = vmatpush1.msra.mxu0 0.0
    %2033 = vmatprep.subr.mxu0 0.0
    %2034 = vmatpush1.msra.mxu0 0.0
    %2035 = vmatprep.mubr.f32.mxu0 0.0
    %2036 = vmatmul.mubr.f32.gmra.mrb[0].mxu0 %v1969
    %v2037 = vpop.f32.mrb[0].mxu0
    %v2038 = vadd.f32 %v281, %v2037
    %v2039 = vpop.f32.mrb[0].mxu0
    %v2040 = vadd.f32 %v285, %v2039
    %2041 = vdwg.mxu0
    %2042 = vmatprep.subr.mxu0 0.0
    %2043 = vmatpush1.msra.mxu0 %v246
    %2044 = vmatprep.subr.mxu0 0.0
    %2045 = vmatpush1.msra.mxu0 %v249
    %2046 = vmatprep.subr.mxu0 0.0
    %2047 = vmatpush1.msra.mxu0 %v252
    %2048 = vmatprep.subr.mxu0 0.0
    %2049 = vmatpush1.msra.mxu0 %v255
    %2050 = vmatprep.subr.mxu0 0.0
    %2051 = vmatpush1.msra.mxu0 %v258
    %2052 = vmatprep.subr.mxu0 0.0
    %2053 = vmatpush1.msra.mxu0 %v261
    %2054 = vmatprep.subr.mxu0 0.0
    %2055 = vmatpush1.msra.mxu0 %v264
    %2056 = vmatprep.subr.mxu0 0.0
    %2057 = vmatpush1.msra.mxu0 %v267
    %2058 = vmatprep.subr.mxu0 0.0
    %2059 = vmatpush1.msra.mxu0 0.0
    %2060 = vmatprep.subr.mxu0 0.0
    %2061 = vmatpush1.msra.mxu0 0.0
    %2062 = vmatprep.subr.mxu0 0.0
    %2063 = vmatpush1.msra.mxu0 0.0
    %2064 = vmatprep.subr.mxu0 0.0
    %2065 = vmatpush1.msra.mxu0 0.0
    %2066 = vmatprep.subr.mxu0 0.0
    %2067 = vmatpush1.msra.mxu0 0.0
    %2068 = vmatprep.subr.mxu0 0.0
    %2069 = vmatpush1.msra.mxu0 0.0
    %2070 = vmatprep.subr.mxu0 0.0
    %2071 = vmatpush1.msra.mxu0 0.0
    %2072 = vmatprep.subr.mxu0 0.0
    %2073 = vmatpush1.msra.mxu0 0.0
    %2074 = vmatprep.subr.mxu0 0.0
    %2075 = vmatpush1.msra.mxu0 0.0
    %2076 = vmatprep.subr.mxu0 0.0
    %2077 = vmatpush1.msra.mxu0 0.0
    %2078 = vmatprep.subr.mxu0 0.0
    %2079 = vmatpush1.msra.mxu0 0.0
    %2080 = vmatprep.subr.mxu0 0.0
    %2081 = vmatpush1.msra.mxu0 0.0
    %2082 = vmatprep.subr.mxu0 0.0
    %2083 = vmatpush1.msra.mxu0 0.0
    %2084 = vmatprep.subr.mxu0 0.0
    %2085 = vmatpush1.msra.mxu0 0.0
    %2086 = vmatprep.subr.mxu0 0.0
    %2087 = vmatpush1.msra.mxu0 0.0
    %2088 = vmatprep.subr.mxu0 0.0
    %2089 = vmatpush1.msra.mxu0 0.0
    %2090 = vmatprep.subr.mxu0 0.0
    %2091 = vmatpush1.msra.mxu0 0.0
    %2092 = vmatprep.subr.mxu0 0.0
    %2093 = vmatpush1.msra.mxu0 0.0
    %2094 = vmatprep.subr.mxu0 0.0
    %2095 = vmatpush1.msra.mxu0 0.0
    %2096 = vmatprep.subr.mxu0 0.0
    %2097 = vmatpush1.msra.mxu0 0.0
    %2098 = vmatprep.subr.mxu0 0.0
    %2099 = vmatpush1.msra.mxu0 0.0
    %2100 = vmatprep.subr.mxu0 0.0
    %2101 = vmatpush1.msra.mxu0 0.0
    %2102 = vmatprep.subr.mxu0 0.0
    %2103 = vmatpush1.msra.mxu0 0.0
    %2104 = vmatprep.subr.mxu0 0.0
    %2105 = vmatpush1.msra.mxu0 0.0
    %2106 = vmatprep.mubr.f32.mxu0 0.0
    %2107 = vmatmul.mubr.f32.gmra.mrb[0].mxu0 %v1969
    %v2108 = vpop.f32.mrb[0].mxu0
    %v2109 = vadd.f32 %v289, %v2108
    %v2110 = vpop.f32.mrb[0].mxu0
    %2111 = vdwg.mxu0
    %2113 = vrot.lane.b32.xlu0 %v2038, 96
    %v2114 = vpop.permute.xlu0 %2113
    %v2116 = vadd.f32 %v2040, %v2114
    %v2117 = vxor.u32 %v2116, 2147483648
    %v2118 = vmul.f32 %v2117, 1.442695
    %v2119 = vpow.pop %v2118
    %v2120 = vadd.f32 %v2119, 1.0
    %v2121 = vrcp.pop %v2120
    %v2122 = vmul.f32 1.0, %v2121
    %2124 = vrot.lane.b32.xlu0 %v2040, 96
    %v2125 = vpop.permute.xlu0 %2124
    %v2127 = vadd.f32 %v2040, %v2125
    %v2128 = vxor.u32 %v2127, 2147483648
    %v2129 = vmul.f32 %v2128, 1.442695
    %v2130 = vpow.pop %v2129
    %v2131 = vadd.f32 %v2130, 1.0
    %v2132 = vrcp.pop %v2131
    %v2133 = vmul.f32 1.0, %v2132
    %2134 = vrot.lane.b32.xlu0 %v2040, 32
    %v2135 = vpop.permute.xlu0 %2134
    %v2137 = vmul.f32 %v2122, %v2135
    %2139 = vrot.lane.b32.xlu0 %v2137, 64
    %v2140 = vpop.permute.xlu0 %2139
    %v2142 = vadd.f32 %v2109, %v2140
    %v2143 = vtanh.pop %v2142
    %v2144 = vsub.f32 1.0, %v2133
    %2146 = vrot.lane.b32.xlu0 %v2143, 96
    %v2147 = vpop.permute.xlu0 %2146
    %v2149 = vmul.f32 %v2144, %v2147
    %v2150 = vmul.f32 %v2133, %v1927
    %v2151 = vadd.f32 %v2149, %v2150
    %v2152 = vrot.slane %v811, 6
    %v2154 = vrot.slane %v1035, 4
    %v2156 = vrot.slane %v1259, 2
    %v2158 = vrot.slane %v1703, 6
    %v2160 = vrot.slane %v1927, 4
    %v2163 = vrot.slane %v2151, 2
    %vm2165 = vcmask 1041408
    %v2166 = vsel %vm2165, %v587, %v2152
    %vm2167 = vcmask 1043456
    %v2168 = vsel %vm2167, %v2166, %v2154
    %vm2169 = vcmask 1045504
    %v2170 = vsel %vm2169, %v2168, %v2156
    %v2171 = vsel %vm2165, %v1479, %v2158
    %v2172 = vsel %vm2167, %v2171, %v2160
    %v2173 = vsel %vm2169, %v2172, %v2163
    %v2174 = vld [vmem:[%s6] sm:$0xff]
    %v2175 = vld [vmem:[%s6 + $0x8] sm:$0xff]
    %v2176 = vld [vmem:[%s6 + $0x10] sm:$0xff]
    %v2177 = vld [vmem:[%s6 + $0x18] sm:$0xff]
    %v2178 = vld [vmem:[%s7] sm:$0x1]
    %v2180 = vlaneseq
    %v2181 = vshrl.u32 %v2180, 7
    %v2182 = vsub.s32 0, %v2181
    %v2183 = vrot.slane %v2178, %v2182
    %2187 = vrot.lane.b32.xlu0 %v2170, 32
    %v2188 = vpop.permute.xlu0 %2187
    %2189 = vrot.lane.b32.xlu0 %v2173, 32
    %v2190 = vpop.permute.xlu0 %2189
    %v2191 = vsel %vm275, %v2188, 0
    %v2193 = vsel %vm275, %v2190, 0
    %2195 = vmatprep.subr.mxu0 0.0
    %2196 = vmatpush1.msra.mxu0 %v2174
    %2197 = vmatprep.subr.mxu0 0.0
    %2198 = vmatpush1.msra.mxu0 %v2175
    %2199 = vmatprep.subr.mxu0 0.0
    %2200 = vmatpush1.msra.mxu0 %v2176
    %2201 = vmatprep.subr.mxu0 0.0
    %2202 = vmatpush1.msra.mxu0 %v2177
    %2203 = vmatprep.subr.mxu0 0.0
    %2204 = vmatpush1.msra.mxu0 0.0
    %2205 = vmatprep.subr.mxu0 0.0
    %2206 = vmatpush1.msra.mxu0 0.0
    %2207 = vmatprep.subr.mxu0 0.0
    %2208 = vmatpush1.msra.mxu0 0.0
    %2209 = vmatprep.subr.mxu0 0.0
    %2210 = vmatpush1.msra.mxu0 0.0
    %2211 = vmatprep.subr.mxu0 0.0
    %2212 = vmatpush1.msra.mxu0 0.0
    %2213 = vmatprep.subr.mxu0 0.0
    %2214 = vmatpush1.msra.mxu0 0.0
    %2215 = vmatprep.subr.mxu0 0.0
    %2216 = vmatpush1.msra.mxu0 0.0
    %2217 = vmatprep.subr.mxu0 0.0
    %2218 = vmatpush1.msra.mxu0 0.0
    %2219 = vmatprep.subr.mxu0 0.0
    %2220 = vmatpush1.msra.mxu0 0.0
    %2221 = vmatprep.subr.mxu0 0.0
    %2222 = vmatpush1.msra.mxu0 0.0
    %2223 = vmatprep.subr.mxu0 0.0
    %2224 = vmatpush1.msra.mxu0 0.0
    %2225 = vmatprep.subr.mxu0 0.0
    %2226 = vmatpush1.msra.mxu0 0.0
    %2227 = vmatprep.subr.mxu0 0.0
    %2228 = vmatpush1.msra.mxu0 0.0
    %2229 = vmatprep.subr.mxu0 0.0
    %2230 = vmatpush1.msra.mxu0 0.0
    %2231 = vmatprep.subr.mxu0 0.0
    %2232 = vmatpush1.msra.mxu0 0.0
    %2233 = vmatprep.subr.mxu0 0.0
    %2234 = vmatpush1.msra.mxu0 0.0
    %2235 = vmatprep.subr.mxu0 0.0
    %2236 = vmatpush1.msra.mxu0 0.0
    %2237 = vmatprep.subr.mxu0 0.0
    %2238 = vmatpush1.msra.mxu0 0.0
    %2239 = vmatprep.subr.mxu0 0.0
    %2240 = vmatpush1.msra.mxu0 0.0
    %2241 = vmatprep.subr.mxu0 0.0
    %2242 = vmatpush1.msra.mxu0 0.0
    %2243 = vmatprep.subr.mxu0 0.0
    %2244 = vmatpush1.msra.mxu0 0.0
    %2245 = vmatprep.subr.mxu0 0.0
    %2246 = vmatpush1.msra.mxu0 0.0
    %2247 = vmatprep.subr.mxu0 0.0
    %2248 = vmatpush1.msra.mxu0 0.0
    %2249 = vmatprep.subr.mxu0 0.0
    %2250 = vmatpush1.msra.mxu0 0.0
    %2251 = vmatprep.subr.mxu0 0.0
    %2252 = vmatpush1.msra.mxu0 0.0
    %2253 = vmatprep.subr.mxu0 0.0
    %2254 = vmatpush1.msra.mxu0 0.0
    %2255 = vmatprep.subr.mxu0 0.0
    %2256 = vmatpush1.msra.mxu0 0.0
    %2257 = vmatprep.subr.mxu0 0.0
    %2258 = vmatpush1.msra.mxu0 0.0
    %2259 = vmatprep.mubr.f32.mxu0 0.0
    %2260 = vmatmul.mubr.f32.gmra.mrb[0].mxu0 %v2191
    %v2261 = vpop.f32.mrb[0].mxu0
    %v2262 = vadd.f32 %v2183, %v2261
    %v2263 = vpop.f32.mrb[0].mxu0
    %2264 = vmatprep.mubr.f32.mxu0 0.0
    %2265 = vmatmul.mubr.f32.gmra.mrb[0].mxu0 %v2193
    %v2266 = vpop.f32.mrb[0].mxu0
    %v2267 = vadd.f32 %v2183, %v2266
    %v2268 = vpop.f32.mrb[0].mxu0
    %2269 = vdwg.mxu0
    %2270 = vmax.xlane.f32.xlu0 %v2262
    %v2271 = vpop.xlane.xlu0 %2270
    %2272 = vmax.xlane.f32.xlu0 %v2267
    %v2273 = vpop.xlane.xlu0 %2272
    %v2274 = vsub.f32 %v2262, %v2271
    %v2275 = vsub.f32 %v2267, %v2273
    %v2276 = vmul.f32 %v2274, 1.442695
    %v2277 = vpow.pop %v2276
    %v2278 = vmul.f32 %v2275, 1.442695
    %v2279 = vpow.pop %v2278
    %2280 = vadd.xlane.f32.xlu0 %v2277
    %v2281 = vpop.xlane.xlu0 %2280
    %2282 = vadd.xlane.f32.xlu0 %v2279
    %v2283 = vpop.xlane.xlu0 %2282
    %v2284 = vrcp.pop %v2281
    %v2285 = vmul.f32 %v2277, %v2284
    %v2286 = vrcp.pop %v2283
    %v2287 = vmul.f32 %v2279, %v2286
    %2288 = vst [vmem:[#allocation2] sm:$0xff] %v2285
    %2289 = vst [vmem:[#allocation2 + $0x8] sm:$0xff] %v2287
    %v2290 = vrot.slane %v1956, 6
    %v2292 = vrot.slane %v2151, 6
    %2293 = vrot.lane.b32.xlu0 %v2292, 64
    %v2294 = vpop.permute.xlu0 %2293
    %v2296 = vsel %vm2165, %v2290, %v2294
    %2298 = vrot.lane.b32.xlu0 %v2296, 96
    %v2299 = vpop.permute.xlu0 %2298
    %vm2301 = vcmask 257024
    %2302 = vst.msk [vmem:[#allocation4] sm:$0xf] %vm2301, %v2299
    // Predicated region
    $region34: #{forward.1} parent=1 // pred_check
      _
    $region35: #{forward.1} parent=1 // pred_check_branch
      %2304 = sbr.rel (0) target = $region37
    $region36: #{forward.1} parent=1 // pred_region
      %s2306 = ssub.s32 256, 256
      %2307 = vsyncadd [#allocation3], %s2306
      %s2308 = sshll.u32 [#allocation2], 4
      %s2309 = int_to_ptr.vmem [resolvable:$true] %s2308
      %2314 = dma.vmem_to_hbm [thread:$0]  %s2309, 256, %s8, [#allocation3], 128, 128, 8
    $region37: #{forward.1} parent=1 // pred_fallthru
      _
    // Predicated region
    $region38: #{forward.1} parent=1 // pred_check
      _
    $region39: #{forward.1} parent=1 // pred_check_branch
      %2316 = sbr.rel (0) target = $region41
    $region40: #{forward.1} parent=1 // pred_region
      %s2318 = ssub.s32 64, 64
      %2319 = vsyncadd [#allocation5], %s2318
      %s2321 = sshll.u32 [#allocation4], 4
      %s2322 = int_to_ptr.vmem [resolvable:$true] %s2321
      %2324 = dma.vmem_to_hbm [thread:$0]  %s2322, 64, %s9, [#allocation5]
    $region41: #{forward.1} parent=1 // pred_fallthru
      _
    // Predicated region
    $region42: #{forward.1} parent=1 // pred_check
      _
    $region43: #{forward.1} parent=1 // pred_check_branch
      %2326 = sbr.rel (0) target = $region45
    $region44: #{forward.1} parent=1 // pred_region
      %2327 = dma.done [#allocation3], 256
    $region45: #{forward.1} parent=1 // pred_fallthru
      _
    // Predicated region
    $region46: #{forward.1} parent=1 // pred_check
      _
    $region47: #{forward.1} parent=1 // pred_check_branch
      %2329 = sbr.rel (0) target = $region49
    $region48: #{forward.1} parent=1 // pred_region
      %2330 = dma.done [#allocation5], 64
    $region49: #{forward.1} parent=1 // pred_fallthru
      _
    %2331 = vsyncpa [#allocation3], 1
    %2332 = vsyncpa [#allocation5], 1

</llo_original>
